<compile_context>
chip_gen: v7x
topology: tpu7x:2x2x1
jax: 0.10.0
libtpu: 0.0.40
codegen_flags: <defaults>
</compile_context>

<pallas_src>
import jax
import jax.numpy as jnp
from jax.experimental import pallas as pl
from jax.experimental.pallas import tpu as pltpu

BN_EPS = 1e-5
LANE = 128


def _cdiv(a, b):
    return -(-a // b)


# --------------------------------------------------------------------------
# Bilinear 2x upsample (align_corners=True) as an interpolation matrix.
# --------------------------------------------------------------------------
def _bilinear_matrix_align_corners(n_in, n_out):
    if n_in == 1:          # degenerate case: pure replication
        return jnp.ones((n_out, 1), jnp.float32)
    idx = jnp.arange(n_out, dtype=jnp.float32)
    src = idx * (n_in - 1) / max(n_out - 1, 1)
    lo = jnp.clip(jnp.floor(src).astype(jnp.int32), 0, n_in - 2)
    frac = src - lo.astype(jnp.float32)
    rows = jnp.arange(n_out)
    A = jnp.zeros((n_out, n_in), jnp.float32)
    A = A.at[rows, lo].add(1.0 - frac)
    A = A.at[rows, lo + 1].add(frac)
    return A


# --------------------------------------------------------------------------
# Kernel factory: both passes share the in-VMEM im2col + single MXU matmul.
#   slab_ref:  (1, TH+2, W+2, Cin)  bf16 halo slab for this row tile
#   w_ref:     (9*Cin, Cout)        bf16 flattened conv weights
# --------------------------------------------------------------------------
def _make_kernels(TH, W, Cin, Cout):
    K = 9 * Cin

    def conv_tile(slab_ref, w_ref):
        # Build im2col entirely in VMEM/vregs (f32 for layout-friendly slices,
        # bf16 operands on the MXU).  Nothing but the halo slab crosses HBM.
        slab = slab_ref[0].astype(jnp.float32)           # (TH+2, W+2, Cin)
        taps = [slab[kh:kh + TH, kw:kw + W, :]
                for kh in range(3) for kw in range(3)]    # 9 x (TH, W, Cin)
        xcol = jnp.concatenate(taps, axis=-1).reshape(TH * W, K)
        return jnp.dot(xcol.astype(w_ref.dtype), w_ref[...],
                       preferred_element_type=jnp.float32)  # (TH*W, Cout) f32

    # Pass 1: per-tile partial BN statistics only (no conv output to HBM).
    # Zero-padded bottom rows contribute exactly 0 (no bias), so they are
    # harmless; the true pixel count is used for the mean/variance.
    def stats_kernel(slab_ref, w_ref, stats_ref):
        y = conv_tile(slab_ref, w_ref)
        stats_ref[0] = jnp.concatenate(
            [jnp.sum(y, axis=0, keepdims=True),
             jnp.sum(y * y, axis=0, keepdims=True)], axis=0)   # (2, Cout)

    # Pass 2: recompute the (cheap, small-K) conv and apply the already
    # globally-reduced BN affine transform; write a Cout-wide output tile.
    def bn_kernel(slab_ref, w_ref, scale_ref, shift_ref, o_ref):
        y = conv_tile(slab_ref, w_ref)
        o_ref[0] = (y * scale_ref[...] + shift_ref[...]).astype(o_ref.dtype)

    return stats_kernel, bn_kernel


# --------------------------------------------------------------------------
# Wrapper: UpConv.forward (bilinear_interp=True, residual=False), NCHW in/out.
# --------------------------------------------------------------------------
def upconv_forward(x_small, x_big, params, *, target_tile_rows=2048,
                   compute_dtype=jnp.bfloat16, out_dtype=jnp.float32):
    # 1) bilinear 2x upsample, align_corners=True (matches F.interpolate)
    N, _, Hs, Ws = x_small.shape
    Ah = _bilinear_matrix_align_corners(Hs, 2 * Hs)
    Aw = _bilinear_matrix_align_corners(Ws, 2 * Ws)
    x_up = jnp.einsum('nchw,Hh,Ww->ncHW', x_small, Ah, Aw)

    # 2) pad to x_big's spatial size, channel-concat (NCHW); tiny XLA prologue
    diffY = x_big.shape[2] - x_up.shape[2]
    diffX = x_big.shape[3] - x_up.shape[3]
    x_up = jnp.pad(x_up, ((0, 0), (0, 0),
                          (diffY // 2, diffY - diffY // 2),
                          (diffX // 2, diffX - diffX // 2)))
    x = jnp.concatenate([x_big, x_up], axis=1)           # (N, Cin, H, W)
    N, Cin, H, W = x.shape
    Cout = params['w'].shape[0]
    K = 9 * Cin

    # 3) tile-size choice: big tiles (amortize ~0.35us/step), but keep >= 2
    #    tiles so the "parallel" grid axis still splits v7x's two TensorCores.
    TH = max(1, min(H, max(8, target_tile_rows // max(W, 1))))
    if N * _cdiv(H, TH) < 2 and H >= 2:
        TH = _cdiv(H, 2)
    n_h = _cdiv(H, TH)
    H_pad = n_h * TH
    T = N * n_h                 # total grid tiles
    R = TH * W                  # output pixels per tile

    # 4) NHWC + 'same' padding + halo row-slabs.  Only a (TH+2)/TH duplication
    #    (plus the 1-pixel conv halo) -- NOT a 9x im2col materialization.
    x_nhwc = jnp.transpose(x, (0, 2, 3, 1))
    x_padded = jnp.pad(x_nhwc, ((0, 0), (1, 1 + H_pad - H), (1, 1), (0, 0)))
    row_idx = (jnp.arange(n_h)[:, None] * TH
               + jnp.arange(TH + 2)[None, :]).reshape(-1)
    x_slabs = x_padded[:, row_idx, :, :].reshape(T, TH + 2, W + 2, Cin)
    x_slabs = x_slabs.astype(compute_dtype)              # bf16 in HBM

    # conv weights: OIHW -> HWIO -> (K, Cout), bf16.  NOTE: conv bias is not
    # applied -- training-mode BatchNorm subtracts the per-channel batch mean
    # right after the conv, which cancels any per-channel constant exactly.
    w2d = jnp.transpose(params['w'], (2, 3, 1, 0)).reshape(K, Cout)
    w2d = w2d.astype(compute_dtype)

    stats_kernel, bn_kernel = _make_kernels(TH, W, Cin, Cout)

    slab_spec = pl.BlockSpec((1, TH + 2, W + 2, Cin), lambda t: (t, 0, 0, 0))
    w_spec = pl.BlockSpec((K, Cout), lambda t: (0, 0))
    itemsize = jnp.dtype(compute_dtype).itemsize
    in_bytes = T * (TH + 2) * (W + 2) * Cin * itemsize + K * Cout * itemsize
    mm_flops = 2 * T * R * K * Cout
    cparams = pltpu.CompilerParams(
        dimension_semantics=("parallel",),
        vmem_limit_bytes=48 * 1024 * 1024)   # safe on v5e/v6e (128 MiB) and v7x (64 MiB)

    # 5) pass 1: conv + per-tile BN partials (sum, sumsq) -- no y intermediate
    partial = pl.pallas_call(
        stats_kernel,
        out_shape=jax.ShapeDtypeStruct((T, 2, Cout), jnp.float32),
        grid=(T,),
        in_specs=[slab_spec, w_spec],
        out_specs=pl.BlockSpec((1, 2, Cout), lambda t: (t, 0, 0)),
        compiler_params=cparams,
        cost_estimate=pl.CostEstimate(
            flops=mm_flops, transcendentals=0,
            bytes_accessed=in_bytes + T * 2 * Cout * 4),
    )(x_slabs, w2d)

    # 6) global BN reduction -> scale/shift (tiny, kept in f32).
    #    NOTE: sumsq/count - mean^2 is fine at these row counts; for very large
    #    feature maps a per-tile mean-shifted / Welford combine would be safer.
    stats = jnp.sum(partial, axis=0)                      # (2, Cout)
    count = jnp.float32(N * H * W)
    mean = stats[0] / count
    var = jnp.maximum(stats[1] / count - mean * mean, 0.0)   # biased variance
    scale = params['gamma'].astype(jnp.float32) * jax.lax.rsqrt(var + BN_EPS)
    shift = params['beta'].astype(jnp.float32) - mean * scale

    # 7) pass 2: recompute conv, apply BN affine, write Cout-wide output
    out = pl.pallas_call(
        bn_kernel,
        out_shape=jax.ShapeDtypeStruct((T, R, Cout), out_dtype),
        grid=(T,),
        in_specs=[slab_spec, w_spec,
                  pl.BlockSpec((1, Cout), lambda t: (0, 0)),
                  pl.BlockSpec((1, Cout), lambda t: (0, 0))],
        out_specs=pl.BlockSpec((1, R, Cout), lambda t: (t, 0, 0)),
        compiler_params=cparams,
        cost_estimate=pl.CostEstimate(
            flops=mm_flops + 2 * T * R * Cout, transcendentals=0,
            bytes_accessed=in_bytes + T * R * Cout * jnp.dtype(out_dtype).itemsize),
    )(x_slabs, w2d, scale.reshape(1, Cout), shift.reshape(1, Cout))

    # 8) un-pad, back to NCHW
    out = out.reshape(N, H_pad, W, Cout)[:, :H]
    return jnp.transpose(out, (0, 3, 1, 2))


# --------------------------------------------------------------------------
# Pure-JAX/XLA reference (matches the PyTorch module in training mode, f32).
# --------------------------------------------------------------------------
def _reference_upconv(x_small, x_big, params):
    N, _, Hs, Ws = x_small.shape
    Ah = _bilinear_matrix_align_corners(Hs, 2 * Hs)
    Aw = _bilinear_matrix_align_corners(Ws, 2 * Ws)
    x_up = jnp.einsum('nchw,Hh,Ww->ncHW', x_small, Ah, Aw)
    diffY = x_big.shape[2] - x_up.shape[2]
    diffX = x_big.shape[3] - x_up.shape[3]
    x_up = jnp.pad(x_up, ((0, 0), (0, 0),
                          (diffY // 2, diffY - diffY // 2),
                          (diffX // 2, diffX - diffX // 2)))
    x = jnp.concatenate([x_big, x_up], axis=1)
    conv = jax.lax.conv_general_dilated(
        x, params['w'], window_strides=(1, 1), padding='SAME',
        dimension_numbers=('NCHW', 'OIHW', 'NCHW'))
    conv = conv + params['b'][None, :, None, None]
    mean = jnp.mean(conv, axis=(0, 2, 3), keepdims=True)
    var = jnp.mean((conv - mean) ** 2, axis=(0, 2, 3), keepdims=True)
    y = (conv - mean) * jax.lax.rsqrt(var + BN_EPS)
    return (y * params['gamma'][None, :, None, None]
            + params['beta'][None, :, None, None])


if __name__ == "__main__":
    key = jax.random.PRNGKey(0)
    k1, k2, k3, k4 = jax.random.split(key, 4)

    # UpConv(input_channels=8, output_channels=8): each input branch has 4 chans.
    input_channels = 8
    output_channels = 8
    N, Hs, Ws = 2, 8, 8

    x_small = jax.random.normal(k1, (N, input_channels // 2, Hs, Ws), jnp.float32)
    x_big = jax.random.normal(k2, (N, input_channels // 2, 2 * Hs, 2 * Ws),
                              jnp.float32)

    params = {
        # nn.Conv2d(input_channels, output_channels, (3,3)) -> OIHW weight + bias
        'w': 0.1 * jax.random.normal(
            k3, (output_channels, input_channels, 3, 3), jnp.float32),
        'b': 0.1 * jax.random.normal(k4, (output_channels,), jnp.float32),
        # nn.BatchNorm2d default affine init: gamma=1, beta=0
        'gamma': jnp.ones((output_channels,), jnp.float32),
        'beta': jnp.zeros((output_channels,), jnp.float32),
    }

    out = jax.jit(upconv_forward)(x_small, x_big, params)
    jax.block_until_ready(out)
    assert out.shape == (N, output_channels, 2 * Hs, 2 * Ws)

    ref = _reference_upconv(x_small, x_big, params)
    err = float(jnp.max(jnp.abs(out - ref)))
    # bf16 MXU operands with f32 accumulation / f32 BN stats vs f32 reference.
    assert err < 6e-2, f"max abs error vs reference: {err}"
    print("KERNEL_OK")
</pallas_src>

<mosaic_0001>
module attributes {stable_mosaic.version = 11 : i64} {
  func.func private @main(%arg0: i32) attributes {dimension_semantics = [#tpu.dimension_semantics<core_parallel>], iteration_bounds = array<i64: 2>, tpu.core_type = #tpu.core_type<sc_scalar_subcore>, window_params = []} {
    return
  }
}

module attributes {stable_mosaic.version = 11 : i64} {
  func.func private @main(%arg0: i32) attributes {dimension_semantics = [#tpu.dimension_semantics<core_parallel>], iteration_bounds = array<i64: 2>, tpu.core_type = #tpu.core_type<sc_scalar_subcore>, window_params = []} {
    return
  }
}

module attributes {stable_mosaic.version = 11 : i64} {
  func.func @bn_kernel(%arg0: i32, %arg1: memref<1x18x18x8xbf16, #tpu.memory_space<vmem>>, %arg2: memref<72x8xbf16, #tpu.memory_space<vmem>>, %arg3: memref<1x8xf32, #tpu.memory_space<vmem>>, %arg4: memref<1x8xf32, #tpu.memory_space<vmem>>, %arg5: memref<1x256x8xf32, #tpu.memory_space<vmem>>) attributes {dimension_semantics = [#tpu.dimension_semantics<parallel>], iteration_bounds = array<i64: 2>, scalar_prefetch = 0 : i64, scratch_operands = 0 : i64, tpu.core_type = #tpu.core_type<tc>, window_params = [{transform_indices = @transform_0, window_bounds = array<i64: 1, 18, 18, 8>}, {pipeline_mode = #tpu.pipeline_mode<synchronous>, transform_indices = @transform_1, window_bounds = array<i64: 72, 8>}, {pipeline_mode = #tpu.pipeline_mode<synchronous>, transform_indices = @transform_2, window_bounds = array<i64: 1, 8>}, {pipeline_mode = #tpu.pipeline_mode<synchronous>, transform_indices = @transform_3, window_bounds = array<i64: 1, 8>}, {transform_indices = @transform_4, window_bounds = array<i64: 1, 256, 8>}]} {
    %c0 = arith.constant 0 : index
    %c0_0 = arith.constant 0 : index
    %c0_1 = arith.constant 0 : index
    %c0_2 = arith.constant 0 : index
    %0 = vector.load %arg1[%c0, %c0_0, %c0_1, %c0_2] : memref<1x18x18x8xbf16, #tpu.memory_space<vmem>>, vector<1x18x18x8xbf16>
    %1 = vector.shape_cast %0 : vector<1x18x18x8xbf16> to vector<18x18x8xbf16>
    %2 = arith.extf %1 : vector<18x18x8xbf16> to vector<18x18x8xf32>
    %3 = vector.extract_strided_slice %2 {offsets = [0, 0, 0], sizes = [16, 16, 8], strides = [1, 1, 1]} : vector<18x18x8xf32> to vector<16x16x8xf32>
    %4 = vector.extract_strided_slice %2 {offsets = [0, 1, 0], sizes = [16, 16, 8], strides = [1, 1, 1]} : vector<18x18x8xf32> to vector<16x16x8xf32>
    %5 = vector.extract_strided_slice %2 {offsets = [0, 2, 0], sizes = [16, 16, 8], strides = [1, 1, 1]} : vector<18x18x8xf32> to vector<16x16x8xf32>
    %6 = vector.extract_strided_slice %2 {offsets = [1, 0, 0], sizes = [16, 16, 8], strides = [1, 1, 1]} : vector<18x18x8xf32> to vector<16x16x8xf32>
    %7 = vector.extract_strided_slice %2 {offsets = [1, 1, 0], sizes = [16, 16, 8], strides = [1, 1, 1]} : vector<18x18x8xf32> to vector<16x16x8xf32>
    %8 = vector.extract_strided_slice %2 {offsets = [1, 2, 0], sizes = [16, 16, 8], strides = [1, 1, 1]} : vector<18x18x8xf32> to vector<16x16x8xf32>
    %9 = vector.extract_strided_slice %2 {offsets = [2, 0, 0], sizes = [16, 16, 8], strides = [1, 1, 1]} : vector<18x18x8xf32> to vector<16x16x8xf32>
    %10 = vector.extract_strided_slice %2 {offsets = [2, 1, 0], sizes = [16, 16, 8], strides = [1, 1, 1]} : vector<18x18x8xf32> to vector<16x16x8xf32>
    %11 = vector.extract_strided_slice %2 {offsets = [2, 2, 0], sizes = [16, 16, 8], strides = [1, 1, 1]} : vector<18x18x8xf32> to vector<16x16x8xf32>
    %12 = tpu.concatenate %3, %4, %5, %6, %7, %8, %9, %10, %11 in 2 : vector<16x16x8xf32>, vector<16x16x8xf32>, vector<16x16x8xf32>, vector<16x16x8xf32>, vector<16x16x8xf32>, vector<16x16x8xf32>, vector<16x16x8xf32>, vector<16x16x8xf32>, vector<16x16x8xf32> -> vector<16x16x72xf32>
    %13 = vector.shape_cast %12 : vector<16x16x72xf32> to vector<256x72xf32>
    %14 = arith.truncf %13 : vector<256x72xf32> to vector<256x72xbf16>
    %c0_3 = arith.constant 0 : index
    %c0_4 = arith.constant 0 : index
    %15 = vector.load %arg2[%c0_3, %c0_4] : memref<72x8xbf16, #tpu.memory_space<vmem>>, vector<72x8xbf16>
    %cst = arith.constant dense<0.000000e+00> : vector<256x8xf32>
    %16 = tpu.matmul %14, %15, %cst {dimension_numbers = #tpu.dot_dimension_numbers<[1], [0], [0], [1], [0, 0, 1, 1], [], []>} : vector<256x72xbf16>, vector<72x8xbf16>, vector<256x8xf32> -> vector<256x8xf32>
    %c0_5 = arith.constant 0 : index
    %c0_6 = arith.constant 0 : index
    %17 = vector.load %arg3[%c0_5, %c0_6] : memref<1x8xf32, #tpu.memory_space<vmem>>, vector<1x8xf32>
    %18 = vector.broadcast %17 : vector<1x8xf32> to vector<256x8xf32>
    %19 = arith.mulf %16, %18 : vector<256x8xf32>
    %c0_7 = arith.constant 0 : index
    %c0_8 = arith.constant 0 : index
    %20 = vector.load %arg4[%c0_7, %c0_8] : memref<1x8xf32, #tpu.memory_space<vmem>>, vector<1x8xf32>
    %21 = vector.broadcast %20 : vector<1x8xf32> to vector<256x8xf32>
    %22 = arith.addf %19, %21 : vector<256x8xf32>
    %c0_9 = arith.constant 0 : index
    %c0_10 = arith.constant 0 : index
    %c0_11 = arith.constant 0 : index
    %23 = vector.load %arg5[%c0_9, %c0_10, %c0_11] : memref<1x256x8xf32, #tpu.memory_space<vmem>>, vector<1x256x8xf32>
    %24 = vector.shape_cast %23 : vector<1x256x8xf32> to vector<256x8xf32>
    %25 = vector.shape_cast %22 : vector<256x8xf32> to vector<1x256x8xf32>
    tpu.vector_store %arg5[%c0_9, %c0_10, %c0_11], %25 {strides = array<i32>} : memref<1x256x8xf32, #tpu.memory_space<vmem>>, vector<1x256x8xf32>,
    return
  }
  func.func @transform_0(%arg0: i32) -> (i32, i32, i32, i32) {
    %c0_i32 = arith.constant 0 : i32
    %c0_i32_0 = arith.constant 0 : i32
    %c0_i32_1 = arith.constant 0 : i32
    %c0_i32_2 = arith.constant 0 : i32
    return %arg0, %c0_i32, %c0_i32_0, %c0_i32_1 : i32, i32, i32, i32
  }
  func.func @transform_1(%arg0: i32) -> (i32, i32) {
    %c0_i32 = arith.constant 0 : i32
    %c0_i32_0 = arith.constant 0 : i32
    %c0_i32_1 = arith.constant 0 : i32
    return %c0_i32, %c0_i32_0 : i32, i32
  }
  func.func @transform_2(%arg0: i32) -> (i32, i32) {
    %c0_i32 = arith.constant 0 : i32
    %c0_i32_0 = arith.constant 0 : i32
    %c0_i32_1 = arith.constant 0 : i32
    return %c0_i32, %c0_i32_0 : i32, i32
  }
  func.func @transform_3(%arg0: i32) -> (i32, i32) {
    %c0_i32 = arith.constant 0 : i32
    %c0_i32_0 = arith.constant 0 : i32
    %c0_i32_1 = arith.constant 0 : i32
    return %c0_i32, %c0_i32_0 : i32, i32
  }
  func.func @transform_4(%arg0: i32) -> (i32, i32, i32) {
    %c0_i32 = arith.constant 0 : i32
    %c0_i32_0 = arith.constant 0 : i32
    %c0_i32_1 = arith.constant 0 : i32
    return %arg0, %c0_i32, %c0_i32_0 : i32, i32, i32
  }
}

module attributes {stable_mosaic.version = 11 : i64} {
  func.func @stats_kernel(%arg0: i32, %arg1: memref<1x18x18x8xbf16, #tpu.memory_space<vmem>>, %arg2: memref<72x8xbf16, #tpu.memory_space<vmem>>, %arg3: memref<1x2x8xf32, #tpu.memory_space<vmem>>) attributes {dimension_semantics = [#tpu.dimension_semantics<parallel>], iteration_bounds = array<i64: 2>, scalar_prefetch = 0 : i64, scratch_operands = 0 : i64, tpu.core_type = #tpu.core_type<tc>, window_params = [{transform_indices = @transform_0, window_bounds = array<i64: 1, 18, 18, 8>}, {pipeline_mode = #tpu.pipeline_mode<synchronous>, transform_indices = @transform_1, window_bounds = array<i64: 72, 8>}, {transform_indices = @transform_2, window_bounds = array<i64: 1, 2, 8>}]} {
    %c0 = arith.constant 0 : index
    %c0_0 = arith.constant 0 : index
    %c0_1 = arith.constant 0 : index
    %c0_2 = arith.constant 0 : index
    %0 = vector.load %arg1[%c0, %c0_0, %c0_1, %c0_2] : memref<1x18x18x8xbf16, #tpu.memory_space<vmem>>, vector<1x18x18x8xbf16>
    %1 = vector.shape_cast %0 : vector<1x18x18x8xbf16> to vector<18x18x8xbf16>
    %2 = arith.extf %1 : vector<18x18x8xbf16> to vector<18x18x8xf32>
    %3 = vector.extract_strided_slice %2 {offsets = [0, 0, 0], sizes = [16, 16, 8], strides = [1, 1, 1]} : vector<18x18x8xf32> to vector<16x16x8xf32>
    %4 = vector.extract_strided_slice %2 {offsets = [0, 1, 0], sizes = [16, 16, 8], strides = [1, 1, 1]} : vector<18x18x8xf32> to vector<16x16x8xf32>
    %5 = vector.extract_strided_slice %2 {offsets = [0, 2, 0], sizes = [16, 16, 8], strides = [1, 1, 1]} : vector<18x18x8xf32> to vector<16x16x8xf32>
    %6 = vector.extract_strided_slice %2 {offsets = [1, 0, 0], sizes = [16, 16, 8], strides = [1, 1, 1]} : vector<18x18x8xf32> to vector<16x16x8xf32>
    %7 = vector.extract_strided_slice %2 {offsets = [1, 1, 0], sizes = [16, 16, 8], strides = [1, 1, 1]} : vector<18x18x8xf32> to vector<16x16x8xf32>
    %8 = vector.extract_strided_slice %2 {offsets = [1, 2, 0], sizes = [16, 16, 8], strides = [1, 1, 1]} : vector<18x18x8xf32> to vector<16x16x8xf32>
    %9 = vector.extract_strided_slice %2 {offsets = [2, 0, 0], sizes = [16, 16, 8], strides = [1, 1, 1]} : vector<18x18x8xf32> to vector<16x16x8xf32>
    %10 = vector.extract_strided_slice %2 {offsets = [2, 1, 0], sizes = [16, 16, 8], strides = [1, 1, 1]} : vector<18x18x8xf32> to vector<16x16x8xf32>
    %11 = vector.extract_strided_slice %2 {offsets = [2, 2, 0], sizes = [16, 16, 8], strides = [1, 1, 1]} : vector<18x18x8xf32> to vector<16x16x8xf32>
    %12 = tpu.concatenate %3, %4, %5, %6, %7, %8, %9, %10, %11 in 2 : vector<16x16x8xf32>, vector<16x16x8xf32>, vector<16x16x8xf32>, vector<16x16x8xf32>, vector<16x16x8xf32>, vector<16x16x8xf32>, vector<16x16x8xf32>, vector<16x16x8xf32>, vector<16x16x8xf32> -> vector<16x16x72xf32>
    %13 = vector.shape_cast %12 : vector<16x16x72xf32> to vector<256x72xf32>
    %14 = arith.truncf %13 : vector<256x72xf32> to vector<256x72xbf16>
    %c0_3 = arith.constant 0 : index
    %c0_4 = arith.constant 0 : index
    %15 = vector.load %arg2[%c0_3, %c0_4] : memref<72x8xbf16, #tpu.memory_space<vmem>>, vector<72x8xbf16>
    %cst = arith.constant dense<0.000000e+00> : vector<256x8xf32>
    %16 = tpu.matmul %14, %15, %cst {dimension_numbers = #tpu.dot_dimension_numbers<[1], [0], [0], [1], [0, 0, 1, 1], [], []>} : vector<256x72xbf16>, vector<72x8xbf16>, vector<256x8xf32> -> vector<256x8xf32>
    %cst_5 = arith.constant dense<0.000000e+00> : vector<8xf32>
    %17 = vector.multi_reduction <add>, %16, %cst_5 [0] : vector<256x8xf32> to vector<8xf32>
    %18 = vector.shape_cast %17 : vector<8xf32> to vector<1x8xf32>
    %19 = arith.mulf %16, %16 : vector<256x8xf32>
    %cst_6 = arith.constant dense<0.000000e+00> : vector<8xf32>
    %20 = vector.multi_reduction <add>, %19, %cst_6 [0] : vector<256x8xf32> to vector<8xf32>
    %21 = vector.shape_cast %20 : vector<8xf32> to vector<1x8xf32>
    %22 = tpu.concatenate %18, %21 in 0 : vector<1x8xf32>, vector<1x8xf32> -> vector<2x8xf32>
    %c0_7 = arith.constant 0 : index
    %c0_8 = arith.constant 0 : index
    %c0_9 = arith.constant 0 : index
    %23 = vector.load %arg3[%c0_7, %c0_8, %c0_9] : memref<1x2x8xf32, #tpu.memory_space<vmem>>, vector<1x2x8xf32>
    %24 = vector.shape_cast %23 : vector<1x2x8xf32> to vector<2x8xf32>
    %25 = vector.shape_cast %22 : vector<2x8xf32> to vector<1x2x8xf32>
    tpu.vector_store %arg3[%c0_7, %c0_8, %c0_9], %25 {strides = array<i32>} : memref<1x2x8xf32, #tpu.memory_space<vmem>>, vector<1x2x8xf32>,
    return
  }
  func.func @transform_0(%arg0: i32) -> (i32, i32, i32, i32) {
    %c0_i32 = arith.constant 0 : i32
    %c0_i32_0 = arith.constant 0 : i32
    %c0_i32_1 = arith.constant 0 : i32
    %c0_i32_2 = arith.constant 0 : i32
    return %arg0, %c0_i32, %c0_i32_0, %c0_i32_1 : i32, i32, i32, i32
  }
  func.func @transform_1(%arg0: i32) -> (i32, i32) {
    %c0_i32 = arith.constant 0 : i32
    %c0_i32_0 = arith.constant 0 : i32
    %c0_i32_1 = arith.constant 0 : i32
    return %c0_i32, %c0_i32_0 : i32, i32
  }
  func.func @transform_2(%arg0: i32) -> (i32, i32, i32) {
    %c0_i32 = arith.constant 0 : i32
    %c0_i32_0 = arith.constant 0 : i32
    %c0_i32_1 = arith.constant 0 : i32
    return %arg0, %c0_i32, %c0_i32_0 : i32, i32, i32
  }
}

</mosaic_0001>

<llo_original>
// kernel: upconv_forward.3
$region0: #{upconv_forward.3}
  #allocation0 [shape = 'u32[]', space=smem, size = 0x4, offset = 0x4, fixed_abs, tag = 'smem constant byte address 0x4 - core index']
  #allocation1 [shape = 'u32[144,128]{1,0:T(1,128)}', space=vmem, size = 0x12000, scoped, tag = 'internal scratch']
  %s0 = inlined_call_operand.vmem [shape: bf16[2,18,18,8], index: 0, kind: input, shape index: {}]
  %s1 = inlined_call_operand.vmem [shape: bf16[72,8], index: 1, kind: input, shape index: {}]
  %s2 = inlined_call_operand.vmem [shape: f32[1,8], index: 2, kind: input, shape index: {}]
  %s3 = inlined_call_operand.vmem [shape: f32[1,8], index: 3, kind: input, shape index: {}]
  %s4 = inlined_call_operand.vmem [shape: f32[2,256,8], index: 4, kind: output, shape index: {}]
  %s5 = sld [smem:[#allocation0]]
  $region49: #{upconv_forward.3} parent=0
    _
  %s7 = ssub.s32 1, %s5
  %s8 = scalar_select 0, %s7, %s5
  loop: start=0, step=1, limit=4
  $region2: #{upconv_forward.3} parent=0 // loop_pre_header
    _
  $region3: #{upconv_forward.3} parent=0 // loop_header
    %s10 = sphi 0, %s14
    %p11 = scmp.ge.s32.totalorder %s10, 4
    %s20 = sphi 0, %s22
    %s23 = sphi 0, %s20
    %s24 = sphi 0, %s23
    %s40 = sphi 0, %s24
    %s44 = sphi 0, %s44
    %s46 = sphi 0, %s44
    %s47 = sphi 0, %s46
    %s61 = sphi 0, %s47
    %s65 = sphi 0, %s65
    %s67 = sphi 0, %s65
    %s68 = sphi 0, %s67
    %s82 = sphi 0, %s68
    %s86 = sphi 0, %s86
    %s88 = sphi 0, %s86
    %s89 = sphi 0, %s88
    %s103 = sphi 0, %s89
    %s109 = sphi 0, %s111
    %s112 = sphi 0, %s109
    %s113 = sphi 0, %s112
    %s129 = sphi 0, %s113
  $region4: #{upconv_forward.3} parent=0 // loop_header_branch
    %13 = sbr.rel (%p11) target = $region8
  $region5: #{upconv_forward.3} parent=0 // loop_body
    %s15 = ssub.s32 %s10, 1
    %s16 = ssub.s32 %s10, 2
    %s17 = sadd.s32 %s10, 1
    %s18 = ssub.s32 %s10, %s17
    %p19 = scmp.eq.s32.totalorder %s18, 0
    %s21 = sadd.s32 %s20, 1
    %s22 = scalar_select %p19, %s20, %s21
    %p25 = pneg %p19
    %p26 = scmp.eq.s32.totalorder %s10, 1
    %p27 = por %p25, %p26
    %p28 = scmp.ne.s32.totalorder %s20, %s23
    %p29 = scmp.eq.s32.totalorder %s10, 0
    %p30 = por %p28, %p29
    %p31 = scmp.ne.s32.totalorder %s20, %s23
    %p32 = scmp.eq.s32.totalorder %s15, 1
    %p33 = por %p31, %p32
    %p34 = scmp.ne.s32.totalorder %s23, %s24
    %p35 = scmp.eq.s32.totalorder %s15, 0
    %p36 = por %p34, %p35
    %p37 = scmp.ne.s32.totalorder %s23, %s24
    %p38 = scmp.eq.s32.totalorder %s16, 1
    %p39 = por %p37, %p38
    %p41 = scmp.ne.s32.totalorder %s24, %s40
    %p42 = scmp.eq.s32.totalorder %s16, 0
    %p43 = por %p41, %p42
    %s45 = sadd.s32 %s44, 1
    %p48 = scmp.eq.s32.totalorder %s10, 1
    %p49 = scmp.ne.s32.totalorder %s44, %s46
    %p50 = scmp.eq.s32.totalorder %s10, 0
    %p51 = por %p49, %p50
    %p52 = scmp.ne.s32.totalorder %s44, %s46
    %p53 = scmp.eq.s32.totalorder %s15, 1
    %p54 = por %p52, %p53
    %p55 = scmp.ne.s32.totalorder %s46, %s47
    %p56 = scmp.eq.s32.totalorder %s15, 0
    %p57 = por %p55, %p56
    %p58 = scmp.ne.s32.totalorder %s46, %s47
    %p59 = scmp.eq.s32.totalorder %s16, 1
    %p60 = por %p58, %p59
    %p62 = scmp.ne.s32.totalorder %s47, %s61
    %p63 = scmp.eq.s32.totalorder %s16, 0
    %p64 = por %p62, %p63
    %s66 = sadd.s32 %s65, 1
    %p69 = scmp.eq.s32.totalorder %s10, 1
    %p70 = scmp.ne.s32.totalorder %s65, %s67
    %p71 = scmp.eq.s32.totalorder %s10, 0
    %p72 = por %p70, %p71
    %p73 = scmp.ne.s32.totalorder %s65, %s67
    %p74 = scmp.eq.s32.totalorder %s15, 1
    %p75 = por %p73, %p74
    %p76 = scmp.ne.s32.totalorder %s67, %s68
    %p77 = scmp.eq.s32.totalorder %s15, 0
    %p78 = por %p76, %p77
    %p79 = scmp.ne.s32.totalorder %s67, %s68
    %p80 = scmp.eq.s32.totalorder %s16, 1
    %p81 = por %p79, %p80
    %p83 = scmp.ne.s32.totalorder %s68, %s82
    %p84 = scmp.eq.s32.totalorder %s16, 0
    %p85 = por %p83, %p84
    %s87 = sadd.s32 %s86, 1
    %p90 = scmp.eq.s32.totalorder %s10, 1
    %p91 = scmp.ne.s32.totalorder %s86, %s88
    %p92 = scmp.eq.s32.totalorder %s10, 0
    %p93 = por %p91, %p92
    %p94 = scmp.ne.s32.totalorder %s86, %s88
    %p95 = scmp.eq.s32.totalorder %s15, 1
    %p96 = por %p94, %p95
    %p97 = scmp.ne.s32.totalorder %s88, %s89
    %p98 = scmp.eq.s32.totalorder %s15, 0
    %p99 = por %p97, %p98
    %p100 = scmp.ne.s32.totalorder %s88, %s89
    %p101 = scmp.eq.s32.totalorder %s16, 1
    %p102 = por %p100, %p101
    %p104 = scmp.ne.s32.totalorder %s89, %s103
    %p105 = scmp.eq.s32.totalorder %s16, 0
    %p106 = por %p104, %p105
    %s107 = ssub.s32 %s10, %s17
    %p108 = scmp.eq.s32.totalorder %s107, 0
    %s110 = sadd.s32 %s109, 1
    %s111 = scalar_select %p108, %s109, %s110
    %p114 = pneg %p108
    %p115 = scmp.eq.s32.totalorder %s10, 1
    %p116 = por %p114, %p115
    %p117 = scmp.ne.s32.totalorder %s109, %s112
    %p118 = scmp.eq.s32.totalorder %s10, 0
    %p119 = por %p117, %p118
    %p120 = scmp.ne.s32.totalorder %s109, %s112
    %p121 = scmp.eq.s32.totalorder %s15, 1
    %p122 = por %p120, %p121
    %p123 = scmp.ne.s32.totalorder %s112, %s113
    %p124 = scmp.eq.s32.totalorder %s15, 0
    %p125 = por %p123, %p124
    %p126 = scmp.ne.s32.totalorder %s112, %s113
    %p127 = scmp.eq.s32.totalorder %s16, 1
    %p128 = por %p126, %p127
    %p130 = scmp.ne.s32.totalorder %s113, %s129
    %p131 = scmp.eq.s32.totalorder %s16, 0
    %p132 = por %p130, %p131
    %p133 = scmp.le.s32.totalorder 1, %s10
    %p134 = scmp.lt.s32.totalorder %s10, 3
    %p135 = pnand %p133, %p134
    %p136 = pneg %p135
    // Predicated region
    $region9: #{upconv_forward.3} parent=5 // pred_check
      _
    $region10: #{upconv_forward.3} parent=5 // pred_check_branch
      %138 = sbr.rel (%p135) target = $region12
    $region11: #{upconv_forward.3} parent=5 // pred_region
      %s139 = ssub.s32 %s10, 1
      // Predicated region
      $region13: #{upconv_forward.3} parent=11 // pred_check
        %p140 = pneg %p57
      $region14: #{upconv_forward.3} parent=11 // pred_check_branch
        %142 = sbr.rel (%p140) target = $region16
      $region15: #{upconv_forward.3} parent=11 // pred_region
        _
      $region16: #{upconv_forward.3} parent=11 // pred_fallthru
        _
      // Predicated region
      $region17: #{upconv_forward.3} parent=11 // pred_check
        %p143 = pneg %p78
      $region18: #{upconv_forward.3} parent=11 // pred_check_branch
        %145 = sbr.rel (%p143) target = $region20
      $region19: #{upconv_forward.3} parent=11 // pred_region
        _
      $region20: #{upconv_forward.3} parent=11 // pred_fallthru
        _
      // Predicated region
      $region21: #{upconv_forward.3} parent=11 // pred_check
        %p146 = pneg %p99
      $region22: #{upconv_forward.3} parent=11 // pred_check_branch
        %148 = sbr.rel (%p146) target = $region24
      $region23: #{upconv_forward.3} parent=11 // pred_region
        _
      $region24: #{upconv_forward.3} parent=11 // pred_fallthru
        _
    $region12: #{upconv_forward.3} parent=5 // pred_fallthru
      _
    %p149 = scmp.lt.s32.totalorder %s10, 2
    // Predicated region
    $region25: #{upconv_forward.3} parent=5 // pred_check
      %p150 = pneg %p149
    $region26: #{upconv_forward.3} parent=5 // pred_check_branch
      %152 = sbr.rel (%p150) target = $region28
    $region27: #{upconv_forward.3} parent=5 // pred_region
      // Predicated region
      $region29: #{upconv_forward.3} parent=27 // pred_check
        %p153 = pneg %p30
      $region30: #{upconv_forward.3} parent=27 // pred_check_branch
        %155 = sbr.rel (%p153) target = $region32
      $region31: #{upconv_forward.3} parent=27 // pred_region
        %p156 = scmp.lt.s32.totalorder %s10, 1
        %s157 = scalar_select %p156, %s10, 1
        %s158 = smul.addr %s157, 54
        %s159 = smul.addr %s158, 4
        %s160 = scalar_lea.vmem %s0, %s159
      $region32: #{upconv_forward.3} parent=27 // pred_fallthru
        _
    $region28: #{upconv_forward.3} parent=5 // pred_fallthru
      _
    %p161 = scmp.le.s32.totalorder 1, %s10
    %p162 = scmp.lt.s32.totalorder %s10, 3
    %p163 = pnand %p161, %p162
    %p164 = pneg %p163
    // Predicated region
    $region33: #{upconv_forward.3} parent=5 // pred_check
      _
    $region34: #{upconv_forward.3} parent=5 // pred_check_branch
      %166 = sbr.rel (%p163) target = $region36
    $region35: #{upconv_forward.3} parent=5 // pred_region
      %s167 = ssub.s32 %s10, 1
      %p168 = scmp.lt.s32.totalorder %s15, 1
      %s169 = scalar_select %p168, %s15, 1
      %s170 = smul.addr %s169, 54
      %s171 = smul.addr %s170, 4
      %s172 = scalar_lea.vmem %s0, %s171
      %p173 = pneg %p36
      %p174 = pneg %p33
      %p175 = pneg %p57
      %p176 = pneg %p54
      %p177 = pneg %p78
      %p178 = pneg %p75
      %p179 = pneg %p99
      %p180 = pneg %p96
      %p181 = pneg %p125
      %p182 = pneg %p122
      %p183 = scmp.lt.s32.totalorder %s15, 1
      %s184 = scalar_select %p183, %s15, 1
      %s185 = smul.addr %s184, 32
      %s186 = smul.addr %s185, 8
      %s187 = scalar_lea.vmem %s4, %s186
      %p188 = scmp.lt.s32.totalorder %s15, 1
      %s189 = scalar_select %p188, %s15, 1
      %s190 = smul.addr %s189, 54
      %s191 = smul.addr %s190, 4
      %s192 = scalar_lea.vmem %s0, %s191
      %p193 = scmp.lt.s32.totalorder %s15, 1
      %s194 = scalar_select %p193, %s15, 1
      %s195 = smul.addr %s194, 32
      %s196 = smul.addr %s195, 8
      %s197 = scalar_lea.vmem %s4, %s196
      %v199 = vld [vmem:[%s192] sm:$0xf]
      %v200 = vld [vmem:[%s192 + $0x4] sm:$0xf]
      %v201 = vld [vmem:[%s192 + $0x8] sm:$0x1]
      %v202 = vld [vmem:[%s192 + $0xc] sm:$0xf]
      %v203 = vld [vmem:[%s192 + $0x10] sm:$0xf]
      %v204 = vld [vmem:[%s192 + $0x14] sm:$0x1]
      %v205 = vld [vmem:[%s192 + $0x18] sm:$0xf]
      %v206 = vld [vmem:[%s192 + $0x1c] sm:$0xf]
      %v207 = vld [vmem:[%s192 + $0x20] sm:$0x1]
      %v208 = vld [vmem:[%s192 + $0x24] sm:$0xf]
      %v209 = vld [vmem:[%s192 + $0x28] sm:$0xf]
      %v210 = vld [vmem:[%s192 + $0x2c] sm:$0x1]
      %v211 = vld [vmem:[%s192 + $0x30] sm:$0xf]
      %v212 = vld [vmem:[%s192 + $0x34] sm:$0xf]
      %v213 = vld [vmem:[%s192 + $0x38] sm:$0x1]
      %v214 = vld [vmem:[%s192 + $0x3c] sm:$0xf]
      %v215 = vld [vmem:[%s192 + $0x40] sm:$0xf]
      %v216 = vld [vmem:[%s192 + $0x44] sm:$0x1]
      %v217 = vld [vmem:[%s192 + $0x48] sm:$0xf]
      %v218 = vld [vmem:[%s192 + $0x4c] sm:$0xf]
      %v219 = vld [vmem:[%s192 + $0x50] sm:$0x1]
      %v220 = vld [vmem:[%s192 + $0x54] sm:$0xf]
      %v221 = vld [vmem:[%s192 + $0x58] sm:$0xf]
      %v222 = vld [vmem:[%s192 + $0x5c] sm:$0x1]
      %v223 = vld [vmem:[%s192 + $0x60] sm:$0xf]
      %v224 = vld [vmem:[%s192 + $0x64] sm:$0xf]
      %v225 = vld [vmem:[%s192 + $0x68] sm:$0x1]
      %v226 = vld [vmem:[%s192 + $0x6c] sm:$0xf]
      %v227 = vld [vmem:[%s192 + $0x70] sm:$0xf]
      %v228 = vld [vmem:[%s192 + $0x74] sm:$0x1]
      %v229 = vld [vmem:[%s192 + $0x78] sm:$0xf]
      %v230 = vld [vmem:[%s192 + $0x7c] sm:$0xf]
      %v231 = vld [vmem:[%s192 + $0x80] sm:$0x1]
      %v232 = vld [vmem:[%s192 + $0x84] sm:$0xf]
      %v233 = vld [vmem:[%s192 + $0x88] sm:$0xf]
      %v234 = vld [vmem:[%s192 + $0x8c] sm:$0x1]
      %v235 = vld [vmem:[%s192 + $0x90] sm:$0xf]
      %v236 = vld [vmem:[%s192 + $0x94] sm:$0xf]
      %v237 = vld [vmem:[%s192 + $0x98] sm:$0x1]
      %v238 = vld [vmem:[%s192 + $0x9c] sm:$0xf]
      %v239 = vld [vmem:[%s192 + $0xa0] sm:$0xf]
      %v240 = vld [vmem:[%s192 + $0xa4] sm:$0x1]
      %v241 = vld [vmem:[%s192 + $0xa8] sm:$0xf]
      %v242 = vld [vmem:[%s192 + $0xac] sm:$0xf]
      %v243 = vld [vmem:[%s192 + $0xb0] sm:$0x1]
      %v244 = vld [vmem:[%s192 + $0xb4] sm:$0xf]
      %v245 = vld [vmem:[%s192 + $0xb8] sm:$0xf]
      %v246 = vld [vmem:[%s192 + $0xbc] sm:$0x1]
      %v247 = vld [vmem:[%s192 + $0xc0] sm:$0xf]
      %v248 = vld [vmem:[%s192 + $0xc4] sm:$0xf]
      %v249 = vld [vmem:[%s192 + $0xc8] sm:$0x1]
      %v250 = vld [vmem:[%s192 + $0xcc] sm:$0xf]
      %v251 = vld [vmem:[%s192 + $0xd0] sm:$0xf]
      %v252 = vld [vmem:[%s192 + $0xd4] sm:$0x1]
      %v253 = vunpack.c.l.bf16 %v199
      %v254 = vunpack.c.l.bf16 %v200
      %v255 = vunpack.c.l.bf16 %v201
      %v256 = vunpack.c.l.bf16 %v202
      %v257 = vunpack.c.l.bf16 %v203
      %v258 = vunpack.c.l.bf16 %v204
      %v259 = vunpack.c.l.bf16 %v205
      %v260 = vunpack.c.l.bf16 %v206
      %v261 = vunpack.c.l.bf16 %v207
      %v262 = vunpack.c.l.bf16 %v208
      %v263 = vunpack.c.l.bf16 %v209
      %v264 = vunpack.c.l.bf16 %v210
      %v265 = vunpack.c.l.bf16 %v211
      %v266 = vunpack.c.l.bf16 %v212
      %v267 = vunpack.c.l.bf16 %v213
      %v268 = vunpack.c.l.bf16 %v214
      %v269 = vunpack.c.l.bf16 %v215
      %v270 = vunpack.c.l.bf16 %v216
      %v271 = vunpack.c.l.bf16 %v217
      %v272 = vunpack.c.l.bf16 %v218
      %v273 = vunpack.c.l.bf16 %v219
      %v274 = vunpack.c.l.bf16 %v220
      %v275 = vunpack.c.l.bf16 %v221
      %v276 = vunpack.c.l.bf16 %v222
      %v277 = vunpack.c.l.bf16 %v223
      %v278 = vunpack.c.l.bf16 %v224
      %v279 = vunpack.c.l.bf16 %v225
      %v280 = vunpack.c.l.bf16 %v226
      %v281 = vunpack.c.l.bf16 %v227
      %v282 = vunpack.c.l.bf16 %v228
      %v283 = vunpack.c.l.bf16 %v229
      %v284 = vunpack.c.l.bf16 %v230
      %v285 = vunpack.c.l.bf16 %v231
      %v286 = vunpack.c.l.bf16 %v232
      %v287 = vunpack.c.l.bf16 %v233
      %v288 = vunpack.c.l.bf16 %v234
      %v289 = vunpack.c.l.bf16 %v235
      %v290 = vunpack.c.l.bf16 %v236
      %v291 = vunpack.c.l.bf16 %v237
      %v292 = vunpack.c.l.bf16 %v238
      %v293 = vunpack.c.l.bf16 %v239
      %v294 = vunpack.c.l.bf16 %v240
      %v295 = vunpack.c.l.bf16 %v241
      %v296 = vunpack.c.l.bf16 %v242
      %v297 = vunpack.c.l.bf16 %v243
      %v298 = vunpack.c.l.bf16 %v244
      %v299 = vunpack.c.l.bf16 %v245
      %v300 = vunpack.c.l.bf16 %v246
      %v301 = vunpack.c.l.bf16 %v247
      %v302 = vunpack.c.l.bf16 %v248
      %v303 = vunpack.c.l.bf16 %v249
      %v304 = vunpack.c.l.bf16 %v250
      %v305 = vunpack.c.l.bf16 %v251
      %v306 = vunpack.c.l.bf16 %v252
      %vm355 = vcmask 1046528
      %v356 = vrot.slane %v253, 1
      %v357 = vrot.slane %v254, 1
      %v358 = vsel %vm355, %v356, %v357
      %v359 = vrot.slane %v255, 1
      %v360 = vsel %vm355, %v357, %v359
      %v361 = vrot.slane %v256, 1
      %v362 = vrot.slane %v257, 1
      %v363 = vsel %vm355, %v361, %v362
      %v364 = vrot.slane %v258, 1
      %v365 = vsel %vm355, %v362, %v364
      %v366 = vrot.slane %v259, 1
      %v367 = vrot.slane %v260, 1
      %v368 = vsel %vm355, %v366, %v367
      %v369 = vrot.slane %v261, 1
      %v370 = vsel %vm355, %v367, %v369
      %v371 = vrot.slane %v262, 1
      %v372 = vrot.slane %v263, 1
      %v373 = vsel %vm355, %v371, %v372
      %v374 = vrot.slane %v264, 1
      %v375 = vsel %vm355, %v372, %v374
      %v376 = vrot.slane %v265, 1
      %v377 = vrot.slane %v266, 1
      %v378 = vsel %vm355, %v376, %v377
      %v379 = vrot.slane %v267, 1
      %v380 = vsel %vm355, %v377, %v379
      %v381 = vrot.slane %v268, 1
      %v382 = vrot.slane %v269, 1
      %v383 = vsel %vm355, %v381, %v382
      %v384 = vrot.slane %v270, 1
      %v385 = vsel %vm355, %v382, %v384
      %v386 = vrot.slane %v271, 1
      %v387 = vrot.slane %v272, 1
      %v388 = vsel %vm355, %v386, %v387
      %v389 = vrot.slane %v273, 1
      %v390 = vsel %vm355, %v387, %v389
      %v391 = vrot.slane %v274, 1
      %v392 = vrot.slane %v275, 1
      %v393 = vsel %vm355, %v391, %v392
      %v394 = vrot.slane %v276, 1
      %v395 = vsel %vm355, %v392, %v394
      %v396 = vrot.slane %v277, 1
      %v397 = vrot.slane %v278, 1
      %v398 = vsel %vm355, %v396, %v397
      %v399 = vrot.slane %v279, 1
      %v400 = vsel %vm355, %v397, %v399
      %v401 = vrot.slane %v280, 1
      %v402 = vrot.slane %v281, 1
      %v403 = vsel %vm355, %v401, %v402
      %v404 = vrot.slane %v282, 1
      %v405 = vsel %vm355, %v402, %v404
      %v406 = vrot.slane %v283, 1
      %v407 = vrot.slane %v284, 1
      %v408 = vsel %vm355, %v406, %v407
      %v409 = vrot.slane %v285, 1
      %v410 = vsel %vm355, %v407, %v409
      %v411 = vrot.slane %v286, 1
      %v412 = vrot.slane %v287, 1
      %v413 = vsel %vm355, %v411, %v412
      %v414 = vrot.slane %v288, 1
      %v415 = vsel %vm355, %v412, %v414
      %v416 = vrot.slane %v289, 1
      %v417 = vrot.slane %v290, 1
      %v418 = vsel %vm355, %v416, %v417
      %v419 = vrot.slane %v291, 1
      %v420 = vsel %vm355, %v417, %v419
      %v421 = vrot.slane %v292, 1
      %v422 = vrot.slane %v293, 1
      %v423 = vsel %vm355, %v421, %v422
      %v424 = vrot.slane %v294, 1
      %v425 = vsel %vm355, %v422, %v424
      %v426 = vrot.slane %v295, 1
      %v427 = vrot.slane %v296, 1
      %v428 = vsel %vm355, %v426, %v427
      %v429 = vrot.slane %v297, 1
      %v430 = vsel %vm355, %v427, %v429
      %v431 = vrot.slane %v298, 1
      %v432 = vrot.slane %v299, 1
      %v433 = vsel %vm355, %v431, %v432
      %v434 = vrot.slane %v300, 1
      %v435 = vsel %vm355, %v432, %v434
      %436 = vrot.lane.b32.xlu0 %v358, 8
      %v437 = vpop.permute.xlu0 %436
      %438 = vrot.lane.b32.xlu0 %v360, 8
      %v439 = vpop.permute.xlu0 %438
      %440 = vrot.lane.b32.xlu0 %v363, 8
      %v441 = vpop.permute.xlu0 %440
      %442 = vrot.lane.b32.xlu0 %v365, 8
      %v443 = vpop.permute.xlu0 %442
      %444 = vrot.lane.b32.xlu0 %v368, 8
      %v445 = vpop.permute.xlu0 %444
      %446 = vrot.lane.b32.xlu0 %v370, 8
      %v447 = vpop.permute.xlu0 %446
      %448 = vrot.lane.b32.xlu0 %v373, 8
      %v449 = vpop.permute.xlu0 %448
      %450 = vrot.lane.b32.xlu0 %v375, 8
      %v451 = vpop.permute.xlu0 %450
      %452 = vrot.lane.b32.xlu0 %v378, 8
      %v453 = vpop.permute.xlu0 %452
      %454 = vrot.lane.b32.xlu0 %v380, 8
      %v455 = vpop.permute.xlu0 %454
      %456 = vrot.lane.b32.xlu0 %v383, 8
      %v457 = vpop.permute.xlu0 %456
      %458 = vrot.lane.b32.xlu0 %v385, 8
      %v459 = vpop.permute.xlu0 %458
      %460 = vrot.lane.b32.xlu0 %v388, 8
      %v461 = vpop.permute.xlu0 %460
      %462 = vrot.lane.b32.xlu0 %v390, 8
      %v463 = vpop.permute.xlu0 %462
      %464 = vrot.lane.b32.xlu0 %v393, 8
      %v465 = vpop.permute.xlu0 %464
      %466 = vrot.lane.b32.xlu0 %v395, 8
      %v467 = vpop.permute.xlu0 %466
      %468 = vrot.lane.b32.xlu0 %v398, 8
      %v469 = vpop.permute.xlu0 %468
      %470 = vrot.lane.b32.xlu0 %v400, 8
      %v471 = vpop.permute.xlu0 %470
      %472 = vrot.lane.b32.xlu0 %v403, 8
      %v473 = vpop.permute.xlu0 %472
      %474 = vrot.lane.b32.xlu0 %v405, 8
      %v475 = vpop.permute.xlu0 %474
      %476 = vrot.lane.b32.xlu0 %v408, 8
      %v477 = vpop.permute.xlu0 %476
      %478 = vrot.lane.b32.xlu0 %v410, 8
      %v479 = vpop.permute.xlu0 %478
      %480 = vrot.lane.b32.xlu0 %v413, 8
      %v481 = vpop.permute.xlu0 %480
      %482 = vrot.lane.b32.xlu0 %v415, 8
      %v483 = vpop.permute.xlu0 %482
      %484 = vrot.lane.b32.xlu0 %v418, 8
      %v485 = vpop.permute.xlu0 %484
      %486 = vrot.lane.b32.xlu0 %v420, 8
      %v487 = vpop.permute.xlu0 %486
      %488 = vrot.lane.b32.xlu0 %v423, 8
      %v489 = vpop.permute.xlu0 %488
      %490 = vrot.lane.b32.xlu0 %v425, 8
      %v491 = vpop.permute.xlu0 %490
      %492 = vrot.lane.b32.xlu0 %v428, 8
      %v493 = vpop.permute.xlu0 %492
      %494 = vrot.lane.b32.xlu0 %v430, 8
      %v495 = vpop.permute.xlu0 %494
      %496 = vrot.lane.b32.xlu0 %v433, 8
      %v497 = vpop.permute.xlu0 %496
      %498 = vrot.lane.b32.xlu0 %v435, 8
      %v499 = vpop.permute.xlu0 %498
      %vm532 = vcmask 1045504
      %v533 = vrot.slane %v253, 2
      %v534 = vrot.slane %v254, 2
      %v535 = vsel %vm532, %v533, %v534
      %v536 = vrot.slane %v255, 2
      %v537 = vsel %vm532, %v534, %v536
      %v538 = vrot.slane %v256, 2
      %v539 = vrot.slane %v257, 2
      %v540 = vsel %vm532, %v538, %v539
      %v541 = vrot.slane %v258, 2
      %v542 = vsel %vm532, %v539, %v541
      %v543 = vrot.slane %v259, 2
      %v544 = vrot.slane %v260, 2
      %v545 = vsel %vm532, %v543, %v544
      %v546 = vrot.slane %v261, 2
      %v547 = vsel %vm532, %v544, %v546
      %v548 = vrot.slane %v262, 2
      %v549 = vrot.slane %v263, 2
      %v550 = vsel %vm532, %v548, %v549
      %v551 = vrot.slane %v264, 2
      %v552 = vsel %vm532, %v549, %v551
      %v553 = vrot.slane %v265, 2
      %v554 = vrot.slane %v266, 2
      %v555 = vsel %vm532, %v553, %v554
      %v556 = vrot.slane %v267, 2
      %v557 = vsel %vm532, %v554, %v556
      %v558 = vrot.slane %v268, 2
      %v559 = vrot.slane %v269, 2
      %v560 = vsel %vm532, %v558, %v559
      %v561 = vrot.slane %v270, 2
      %v562 = vsel %vm532, %v559, %v561
      %v563 = vrot.slane %v271, 2
      %v564 = vrot.slane %v272, 2
      %v565 = vsel %vm532, %v563, %v564
      %v566 = vrot.slane %v273, 2
      %v567 = vsel %vm532, %v564, %v566
      %v568 = vrot.slane %v274, 2
      %v569 = vrot.slane %v275, 2
      %v570 = vsel %vm532, %v568, %v569
      %v571 = vrot.slane %v276, 2
      %v572 = vsel %vm532, %v569, %v571
      %v573 = vrot.slane %v277, 2
      %v574 = vrot.slane %v278, 2
      %v575 = vsel %vm532, %v573, %v574
      %v576 = vrot.slane %v279, 2
      %v577 = vsel %vm532, %v574, %v576
      %v578 = vrot.slane %v280, 2
      %v579 = vrot.slane %v281, 2
      %v580 = vsel %vm532, %v578, %v579
      %v581 = vrot.slane %v282, 2
      %v582 = vsel %vm532, %v579, %v581
      %v583 = vrot.slane %v283, 2
      %v584 = vrot.slane %v284, 2
      %v585 = vsel %vm532, %v583, %v584
      %v586 = vrot.slane %v285, 2
      %v587 = vsel %vm532, %v584, %v586
      %v588 = vrot.slane %v286, 2
      %v589 = vrot.slane %v287, 2
      %v590 = vsel %vm532, %v588, %v589
      %v591 = vrot.slane %v288, 2
      %v592 = vsel %vm532, %v589, %v591
      %v593 = vrot.slane %v289, 2
      %v594 = vrot.slane %v290, 2
      %v595 = vsel %vm532, %v593, %v594
      %v596 = vrot.slane %v291, 2
      %v597 = vsel %vm532, %v594, %v596
      %v598 = vrot.slane %v292, 2
      %v599 = vrot.slane %v293, 2
      %v600 = vsel %vm532, %v598, %v599
      %v601 = vrot.slane %v294, 2
      %v602 = vsel %vm532, %v599, %v601
      %v603 = vrot.slane %v295, 2
      %v604 = vrot.slane %v296, 2
      %v605 = vsel %vm532, %v603, %v604
      %v606 = vrot.slane %v297, 2
      %v607 = vsel %vm532, %v604, %v606
      %v608 = vrot.slane %v298, 2
      %v609 = vrot.slane %v299, 2
      %v610 = vsel %vm532, %v608, %v609
      %v611 = vrot.slane %v300, 2
      %v612 = vsel %vm532, %v609, %v611
      %613 = vrot.lane.b32.xlu0 %v535, 16
      %v614 = vpop.permute.xlu0 %613
      %615 = vrot.lane.b32.xlu0 %v537, 16
      %v616 = vpop.permute.xlu0 %615
      %617 = vrot.lane.b32.xlu0 %v540, 16
      %v618 = vpop.permute.xlu0 %617
      %619 = vrot.lane.b32.xlu0 %v542, 16
      %v620 = vpop.permute.xlu0 %619
      %621 = vrot.lane.b32.xlu0 %v545, 16
      %v622 = vpop.permute.xlu0 %621
      %623 = vrot.lane.b32.xlu0 %v547, 16
      %v624 = vpop.permute.xlu0 %623
      %625 = vrot.lane.b32.xlu0 %v550, 16
      %v626 = vpop.permute.xlu0 %625
      %627 = vrot.lane.b32.xlu0 %v552, 16
      %v628 = vpop.permute.xlu0 %627
      %629 = vrot.lane.b32.xlu0 %v555, 16
      %v630 = vpop.permute.xlu0 %629
      %631 = vrot.lane.b32.xlu0 %v557, 16
      %v632 = vpop.permute.xlu0 %631
      %633 = vrot.lane.b32.xlu0 %v560, 16
      %v634 = vpop.permute.xlu0 %633
      %635 = vrot.lane.b32.xlu0 %v562, 16
      %v636 = vpop.permute.xlu0 %635
      %637 = vrot.lane.b32.xlu0 %v565, 16
      %v638 = vpop.permute.xlu0 %637
      %639 = vrot.lane.b32.xlu0 %v567, 16
      %v640 = vpop.permute.xlu0 %639
      %641 = vrot.lane.b32.xlu0 %v570, 16
      %v642 = vpop.permute.xlu0 %641
      %643 = vrot.lane.b32.xlu0 %v572, 16
      %v644 = vpop.permute.xlu0 %643
      %645 = vrot.lane.b32.xlu0 %v575, 16
      %v646 = vpop.permute.xlu0 %645
      %647 = vrot.lane.b32.xlu0 %v577, 16
      %v648 = vpop.permute.xlu0 %647
      %649 = vrot.lane.b32.xlu0 %v580, 16
      %v650 = vpop.permute.xlu0 %649
      %651 = vrot.lane.b32.xlu0 %v582, 16
      %v652 = vpop.permute.xlu0 %651
      %653 = vrot.lane.b32.xlu0 %v585, 16
      %v654 = vpop.permute.xlu0 %653
      %655 = vrot.lane.b32.xlu0 %v587, 16
      %v656 = vpop.permute.xlu0 %655
      %657 = vrot.lane.b32.xlu0 %v590, 16
      %v658 = vpop.permute.xlu0 %657
      %659 = vrot.lane.b32.xlu0 %v592, 16
      %v660 = vpop.permute.xlu0 %659
      %661 = vrot.lane.b32.xlu0 %v595, 16
      %v662 = vpop.permute.xlu0 %661
      %663 = vrot.lane.b32.xlu0 %v597, 16
      %v664 = vpop.permute.xlu0 %663
      %665 = vrot.lane.b32.xlu0 %v600, 16
      %v666 = vpop.permute.xlu0 %665
      %667 = vrot.lane.b32.xlu0 %v602, 16
      %v668 = vpop.permute.xlu0 %667
      %669 = vrot.lane.b32.xlu0 %v605, 16
      %v670 = vpop.permute.xlu0 %669
      %671 = vrot.lane.b32.xlu0 %v607, 16
      %v672 = vpop.permute.xlu0 %671
      %673 = vrot.lane.b32.xlu0 %v610, 16
      %v674 = vpop.permute.xlu0 %673
      %675 = vrot.lane.b32.xlu0 %v612, 16
      %v676 = vpop.permute.xlu0 %675
      %711 = vrot.lane.b32.xlu0 %v256, 24
      %v712 = vpop.permute.xlu0 %711
      %713 = vrot.lane.b32.xlu0 %v257, 24
      %v714 = vpop.permute.xlu0 %713
      %715 = vrot.lane.b32.xlu0 %v259, 24
      %v716 = vpop.permute.xlu0 %715
      %717 = vrot.lane.b32.xlu0 %v260, 24
      %v718 = vpop.permute.xlu0 %717
      %719 = vrot.lane.b32.xlu0 %v262, 24
      %v720 = vpop.permute.xlu0 %719
      %721 = vrot.lane.b32.xlu0 %v263, 24
      %v722 = vpop.permute.xlu0 %721
      %723 = vrot.lane.b32.xlu0 %v265, 24
      %v724 = vpop.permute.xlu0 %723
      %725 = vrot.lane.b32.xlu0 %v266, 24
      %v726 = vpop.permute.xlu0 %725
      %727 = vrot.lane.b32.xlu0 %v268, 24
      %v728 = vpop.permute.xlu0 %727
      %729 = vrot.lane.b32.xlu0 %v269, 24
      %v730 = vpop.permute.xlu0 %729
      %731 = vrot.lane.b32.xlu0 %v271, 24
      %v732 = vpop.permute.xlu0 %731
      %733 = vrot.lane.b32.xlu0 %v272, 24
      %v734 = vpop.permute.xlu0 %733
      %735 = vrot.lane.b32.xlu0 %v274, 24
      %v736 = vpop.permute.xlu0 %735
      %737 = vrot.lane.b32.xlu0 %v275, 24
      %v738 = vpop.permute.xlu0 %737
      %739 = vrot.lane.b32.xlu0 %v277, 24
      %v740 = vpop.permute.xlu0 %739
      %741 = vrot.lane.b32.xlu0 %v278, 24
      %v742 = vpop.permute.xlu0 %741
      %743 = vrot.lane.b32.xlu0 %v280, 24
      %v744 = vpop.permute.xlu0 %743
      %745 = vrot.lane.b32.xlu0 %v281, 24
      %v746 = vpop.permute.xlu0 %745
      %747 = vrot.lane.b32.xlu0 %v283, 24
      %v748 = vpop.permute.xlu0 %747
      %749 = vrot.lane.b32.xlu0 %v284, 24
      %v750 = vpop.permute.xlu0 %749
      %751 = vrot.lane.b32.xlu0 %v286, 24
      %v752 = vpop.permute.xlu0 %751
      %753 = vrot.lane.b32.xlu0 %v287, 24
      %v754 = vpop.permute.xlu0 %753
      %755 = vrot.lane.b32.xlu0 %v289, 24
      %v756 = vpop.permute.xlu0 %755
      %757 = vrot.lane.b32.xlu0 %v290, 24
      %v758 = vpop.permute.xlu0 %757
      %759 = vrot.lane.b32.xlu0 %v292, 24
      %v760 = vpop.permute.xlu0 %759
      %761 = vrot.lane.b32.xlu0 %v293, 24
      %v762 = vpop.permute.xlu0 %761
      %763 = vrot.lane.b32.xlu0 %v295, 24
      %v764 = vpop.permute.xlu0 %763
      %765 = vrot.lane.b32.xlu0 %v296, 24
      %v766 = vpop.permute.xlu0 %765
      %767 = vrot.lane.b32.xlu0 %v298, 24
      %v768 = vpop.permute.xlu0 %767
      %769 = vrot.lane.b32.xlu0 %v299, 24
      %v770 = vpop.permute.xlu0 %769
      %771 = vrot.lane.b32.xlu0 %v301, 24
      %v772 = vpop.permute.xlu0 %771
      %773 = vrot.lane.b32.xlu0 %v302, 24
      %v774 = vpop.permute.xlu0 %773
      %v808 = vrot.slane %v301, 1
      %v809 = vrot.slane %v302, 1
      %v810 = vsel %vm355, %v808, %v809
      %v811 = vrot.slane %v303, 1
      %v812 = vsel %vm355, %v809, %v811
      %813 = vrot.lane.b32.xlu0 %v363, 32
      %v814 = vpop.permute.xlu0 %813
      %815 = vrot.lane.b32.xlu0 %v365, 32
      %v816 = vpop.permute.xlu0 %815
      %817 = vrot.lane.b32.xlu0 %v368, 32
      %v818 = vpop.permute.xlu0 %817
      %819 = vrot.lane.b32.xlu0 %v370, 32
      %v820 = vpop.permute.xlu0 %819
      %821 = vrot.lane.b32.xlu0 %v373, 32
      %v822 = vpop.permute.xlu0 %821
      %823 = vrot.lane.b32.xlu0 %v375, 32
      %v824 = vpop.permute.xlu0 %823
      %825 = vrot.lane.b32.xlu0 %v378, 32
      %v826 = vpop.permute.xlu0 %825
      %827 = vrot.lane.b32.xlu0 %v380, 32
      %v828 = vpop.permute.xlu0 %827
      %829 = vrot.lane.b32.xlu0 %v383, 32
      %v830 = vpop.permute.xlu0 %829
      %831 = vrot.lane.b32.xlu0 %v385, 32
      %v832 = vpop.permute.xlu0 %831
      %833 = vrot.lane.b32.xlu0 %v388, 32
      %v834 = vpop.permute.xlu0 %833
      %835 = vrot.lane.b32.xlu0 %v390, 32
      %v836 = vpop.permute.xlu0 %835
      %837 = vrot.lane.b32.xlu0 %v393, 32
      %v838 = vpop.permute.xlu0 %837
      %839 = vrot.lane.b32.xlu0 %v395, 32
      %v840 = vpop.permute.xlu0 %839
      %841 = vrot.lane.b32.xlu0 %v398, 32
      %v842 = vpop.permute.xlu0 %841
      %843 = vrot.lane.b32.xlu0 %v400, 32
      %v844 = vpop.permute.xlu0 %843
      %845 = vrot.lane.b32.xlu0 %v403, 32
      %v846 = vpop.permute.xlu0 %845
      %847 = vrot.lane.b32.xlu0 %v405, 32
      %v848 = vpop.permute.xlu0 %847
      %849 = vrot.lane.b32.xlu0 %v408, 32
      %v850 = vpop.permute.xlu0 %849
      %851 = vrot.lane.b32.xlu0 %v410, 32
      %v852 = vpop.permute.xlu0 %851
      %853 = vrot.lane.b32.xlu0 %v413, 32
      %v854 = vpop.permute.xlu0 %853
      %855 = vrot.lane.b32.xlu0 %v415, 32
      %v856 = vpop.permute.xlu0 %855
      %857 = vrot.lane.b32.xlu0 %v418, 32
      %v858 = vpop.permute.xlu0 %857
      %859 = vrot.lane.b32.xlu0 %v420, 32
      %v860 = vpop.permute.xlu0 %859
      %861 = vrot.lane.b32.xlu0 %v423, 32
      %v862 = vpop.permute.xlu0 %861
      %863 = vrot.lane.b32.xlu0 %v425, 32
      %v864 = vpop.permute.xlu0 %863
      %865 = vrot.lane.b32.xlu0 %v428, 32
      %v866 = vpop.permute.xlu0 %865
      %867 = vrot.lane.b32.xlu0 %v430, 32
      %v868 = vpop.permute.xlu0 %867
      %869 = vrot.lane.b32.xlu0 %v433, 32
      %v870 = vpop.permute.xlu0 %869
      %871 = vrot.lane.b32.xlu0 %v435, 32
      %v872 = vpop.permute.xlu0 %871
      %873 = vrot.lane.b32.xlu0 %v810, 32
      %v874 = vpop.permute.xlu0 %873
      %875 = vrot.lane.b32.xlu0 %v812, 32
      %v876 = vpop.permute.xlu0 %875
      %v909 = vrot.slane %v301, 2
      %v910 = vrot.slane %v302, 2
      %v911 = vsel %vm532, %v909, %v910
      %v912 = vrot.slane %v303, 2
      %v913 = vsel %vm532, %v910, %v912
      %914 = vrot.lane.b32.xlu0 %v540, 40
      %v915 = vpop.permute.xlu0 %914
      %916 = vrot.lane.b32.xlu0 %v542, 40
      %v917 = vpop.permute.xlu0 %916
      %918 = vrot.lane.b32.xlu0 %v545, 40
      %v919 = vpop.permute.xlu0 %918
      %920 = vrot.lane.b32.xlu0 %v547, 40
      %v921 = vpop.permute.xlu0 %920
      %922 = vrot.lane.b32.xlu0 %v550, 40
      %v923 = vpop.permute.xlu0 %922
      %924 = vrot.lane.b32.xlu0 %v552, 40
      %v925 = vpop.permute.xlu0 %924
      %926 = vrot.lane.b32.xlu0 %v555, 40
      %v927 = vpop.permute.xlu0 %926
      %928 = vrot.lane.b32.xlu0 %v557, 40
      %v929 = vpop.permute.xlu0 %928
      %930 = vrot.lane.b32.xlu0 %v560, 40
      %v931 = vpop.permute.xlu0 %930
      %932 = vrot.lane.b32.xlu0 %v562, 40
      %v933 = vpop.permute.xlu0 %932
      %934 = vrot.lane.b32.xlu0 %v565, 40
      %v935 = vpop.permute.xlu0 %934
      %936 = vrot.lane.b32.xlu0 %v567, 40
      %v937 = vpop.permute.xlu0 %936
      %938 = vrot.lane.b32.xlu0 %v570, 40
      %v939 = vpop.permute.xlu0 %938
      %940 = vrot.lane.b32.xlu0 %v572, 40
      %v941 = vpop.permute.xlu0 %940
      %942 = vrot.lane.b32.xlu0 %v575, 40
      %v943 = vpop.permute.xlu0 %942
      %944 = vrot.lane.b32.xlu0 %v577, 40
      %v945 = vpop.permute.xlu0 %944
      %946 = vrot.lane.b32.xlu0 %v580, 40
      %v947 = vpop.permute.xlu0 %946
      %948 = vrot.lane.b32.xlu0 %v582, 40
      %v949 = vpop.permute.xlu0 %948
      %950 = vrot.lane.b32.xlu0 %v585, 40
      %v951 = vpop.permute.xlu0 %950
      %952 = vrot.lane.b32.xlu0 %v587, 40
      %v953 = vpop.permute.xlu0 %952
      %954 = vrot.lane.b32.xlu0 %v590, 40
      %v955 = vpop.permute.xlu0 %954
      %956 = vrot.lane.b32.xlu0 %v592, 40
      %v957 = vpop.permute.xlu0 %956
      %958 = vrot.lane.b32.xlu0 %v595, 40
      %v959 = vpop.permute.xlu0 %958
      %960 = vrot.lane.b32.xlu0 %v597, 40
      %v961 = vpop.permute.xlu0 %960
      %962 = vrot.lane.b32.xlu0 %v600, 40
      %v963 = vpop.permute.xlu0 %962
      %964 = vrot.lane.b32.xlu0 %v602, 40
      %v965 = vpop.permute.xlu0 %964
      %966 = vrot.lane.b32.xlu0 %v605, 40
      %v967 = vpop.permute.xlu0 %966
      %968 = vrot.lane.b32.xlu0 %v607, 40
      %v969 = vpop.permute.xlu0 %968
      %970 = vrot.lane.b32.xlu0 %v610, 40
      %v971 = vpop.permute.xlu0 %970
      %972 = vrot.lane.b32.xlu0 %v612, 40
      %v973 = vpop.permute.xlu0 %972
      %974 = vrot.lane.b32.xlu0 %v911, 40
      %v975 = vpop.permute.xlu0 %974
      %976 = vrot.lane.b32.xlu0 %v913, 40
      %v977 = vpop.permute.xlu0 %976
      %1012 = vrot.lane.b32.xlu0 %v259, 48
      %v1013 = vpop.permute.xlu0 %1012
      %1014 = vrot.lane.b32.xlu0 %v260, 48
      %v1015 = vpop.permute.xlu0 %1014
      %1016 = vrot.lane.b32.xlu0 %v262, 48
      %v1017 = vpop.permute.xlu0 %1016
      %1018 = vrot.lane.b32.xlu0 %v263, 48
      %v1019 = vpop.permute.xlu0 %1018
      %1020 = vrot.lane.b32.xlu0 %v265, 48
      %v1021 = vpop.permute.xlu0 %1020
      %1022 = vrot.lane.b32.xlu0 %v266, 48
      %v1023 = vpop.permute.xlu0 %1022
      %1024 = vrot.lane.b32.xlu0 %v268, 48
      %v1025 = vpop.permute.xlu0 %1024
      %1026 = vrot.lane.b32.xlu0 %v269, 48
      %v1027 = vpop.permute.xlu0 %1026
      %1028 = vrot.lane.b32.xlu0 %v271, 48
      %v1029 = vpop.permute.xlu0 %1028
      %1030 = vrot.lane.b32.xlu0 %v272, 48
      %v1031 = vpop.permute.xlu0 %1030
      %1032 = vrot.lane.b32.xlu0 %v274, 48
      %v1033 = vpop.permute.xlu0 %1032
      %1034 = vrot.lane.b32.xlu0 %v275, 48
      %v1035 = vpop.permute.xlu0 %1034
      %1036 = vrot.lane.b32.xlu0 %v277, 48
      %v1037 = vpop.permute.xlu0 %1036
      %1038 = vrot.lane.b32.xlu0 %v278, 48
      %v1039 = vpop.permute.xlu0 %1038
      %1040 = vrot.lane.b32.xlu0 %v280, 48
      %v1041 = vpop.permute.xlu0 %1040
      %1042 = vrot.lane.b32.xlu0 %v281, 48
      %v1043 = vpop.permute.xlu0 %1042
      %1044 = vrot.lane.b32.xlu0 %v283, 48
      %v1045 = vpop.permute.xlu0 %1044
      %1046 = vrot.lane.b32.xlu0 %v284, 48
      %v1047 = vpop.permute.xlu0 %1046
      %1048 = vrot.lane.b32.xlu0 %v286, 48
      %v1049 = vpop.permute.xlu0 %1048
      %1050 = vrot.lane.b32.xlu0 %v287, 48
      %v1051 = vpop.permute.xlu0 %1050
      %1052 = vrot.lane.b32.xlu0 %v289, 48
      %v1053 = vpop.permute.xlu0 %1052
      %1054 = vrot.lane.b32.xlu0 %v290, 48
      %v1055 = vpop.permute.xlu0 %1054
      %1056 = vrot.lane.b32.xlu0 %v292, 48
      %v1057 = vpop.permute.xlu0 %1056
      %1058 = vrot.lane.b32.xlu0 %v293, 48
      %v1059 = vpop.permute.xlu0 %1058
      %1060 = vrot.lane.b32.xlu0 %v295, 48
      %v1061 = vpop.permute.xlu0 %1060
      %1062 = vrot.lane.b32.xlu0 %v296, 48
      %v1063 = vpop.permute.xlu0 %1062
      %1064 = vrot.lane.b32.xlu0 %v298, 48
      %v1065 = vpop.permute.xlu0 %1064
      %1066 = vrot.lane.b32.xlu0 %v299, 48
      %v1067 = vpop.permute.xlu0 %1066
      %1068 = vrot.lane.b32.xlu0 %v301, 48
      %v1069 = vpop.permute.xlu0 %1068
      %1070 = vrot.lane.b32.xlu0 %v302, 48
      %v1071 = vpop.permute.xlu0 %1070
      %1072 = vrot.lane.b32.xlu0 %v304, 48
      %v1073 = vpop.permute.xlu0 %1072
      %1074 = vrot.lane.b32.xlu0 %v305, 48
      %v1075 = vpop.permute.xlu0 %1074
      %v1109 = vrot.slane %v304, 1
      %v1110 = vrot.slane %v305, 1
      %v1111 = vsel %vm355, %v1109, %v1110
      %v1112 = vrot.slane %v306, 1
      %v1113 = vsel %vm355, %v1110, %v1112
      %1114 = vrot.lane.b32.xlu0 %v368, 56
      %v1115 = vpop.permute.xlu0 %1114
      %1116 = vrot.lane.b32.xlu0 %v370, 56
      %v1117 = vpop.permute.xlu0 %1116
      %1118 = vrot.lane.b32.xlu0 %v373, 56
      %v1119 = vpop.permute.xlu0 %1118
      %1120 = vrot.lane.b32.xlu0 %v375, 56
      %v1121 = vpop.permute.xlu0 %1120
      %1122 = vrot.lane.b32.xlu0 %v378, 56
      %v1123 = vpop.permute.xlu0 %1122
      %1124 = vrot.lane.b32.xlu0 %v380, 56
      %v1125 = vpop.permute.xlu0 %1124
      %1126 = vrot.lane.b32.xlu0 %v383, 56
      %v1127 = vpop.permute.xlu0 %1126
      %1128 = vrot.lane.b32.xlu0 %v385, 56
      %v1129 = vpop.permute.xlu0 %1128
      %1130 = vrot.lane.b32.xlu0 %v388, 56
      %v1131 = vpop.permute.xlu0 %1130
      %1132 = vrot.lane.b32.xlu0 %v390, 56
      %v1133 = vpop.permute.xlu0 %1132
      %1134 = vrot.lane.b32.xlu0 %v393, 56
      %v1135 = vpop.permute.xlu0 %1134
      %1136 = vrot.lane.b32.xlu0 %v395, 56
      %v1137 = vpop.permute.xlu0 %1136
      %1138 = vrot.lane.b32.xlu0 %v398, 56
      %v1139 = vpop.permute.xlu0 %1138
      %1140 = vrot.lane.b32.xlu0 %v400, 56
      %v1141 = vpop.permute.xlu0 %1140
      %1142 = vrot.lane.b32.xlu0 %v403, 56
      %v1143 = vpop.permute.xlu0 %1142
      %1144 = vrot.lane.b32.xlu0 %v405, 56
      %v1145 = vpop.permute.xlu0 %1144
      %1146 = vrot.lane.b32.xlu0 %v408, 56
      %v1147 = vpop.permute.xlu0 %1146
      %1148 = vrot.lane.b32.xlu0 %v410, 56
      %v1149 = vpop.permute.xlu0 %1148
      %1150 = vrot.lane.b32.xlu0 %v413, 56
      %v1151 = vpop.permute.xlu0 %1150
      %1152 = vrot.lane.b32.xlu0 %v415, 56
      %v1153 = vpop.permute.xlu0 %1152
      %1154 = vrot.lane.b32.xlu0 %v418, 56
      %v1155 = vpop.permute.xlu0 %1154
      %1156 = vrot.lane.b32.xlu0 %v420, 56
      %v1157 = vpop.permute.xlu0 %1156
      %1158 = vrot.lane.b32.xlu0 %v423, 56
      %v1159 = vpop.permute.xlu0 %1158
      %1160 = vrot.lane.b32.xlu0 %v425, 56
      %v1161 = vpop.permute.xlu0 %1160
      %1162 = vrot.lane.b32.xlu0 %v428, 56
      %v1163 = vpop.permute.xlu0 %1162
      %1164 = vrot.lane.b32.xlu0 %v430, 56
      %v1165 = vpop.permute.xlu0 %1164
      %1166 = vrot.lane.b32.xlu0 %v433, 56
      %v1167 = vpop.permute.xlu0 %1166
      %1168 = vrot.lane.b32.xlu0 %v435, 56
      %v1169 = vpop.permute.xlu0 %1168
      %1170 = vrot.lane.b32.xlu0 %v810, 56
      %v1171 = vpop.permute.xlu0 %1170
      %1172 = vrot.lane.b32.xlu0 %v812, 56
      %v1173 = vpop.permute.xlu0 %1172
      %1174 = vrot.lane.b32.xlu0 %v1111, 56
      %v1175 = vpop.permute.xlu0 %1174
      %1176 = vrot.lane.b32.xlu0 %v1113, 56
      %v1177 = vpop.permute.xlu0 %1176
      %v1210 = vrot.slane %v304, 2
      %v1211 = vrot.slane %v305, 2
      %v1212 = vsel %vm532, %v1210, %v1211
      %v1213 = vrot.slane %v306, 2
      %v1214 = vsel %vm532, %v1211, %v1213
      %1215 = vrot.lane.b32.xlu0 %v545, 64
      %v1216 = vpop.permute.xlu0 %1215
      %1217 = vrot.lane.b32.xlu0 %v547, 64
      %v1218 = vpop.permute.xlu0 %1217
      %1219 = vrot.lane.b32.xlu0 %v550, 64
      %v1220 = vpop.permute.xlu0 %1219
      %1221 = vrot.lane.b32.xlu0 %v552, 64
      %v1222 = vpop.permute.xlu0 %1221
      %1223 = vrot.lane.b32.xlu0 %v555, 64
      %v1224 = vpop.permute.xlu0 %1223
      %1225 = vrot.lane.b32.xlu0 %v557, 64
      %v1226 = vpop.permute.xlu0 %1225
      %1227 = vrot.lane.b32.xlu0 %v560, 64
      %v1228 = vpop.permute.xlu0 %1227
      %1229 = vrot.lane.b32.xlu0 %v562, 64
      %v1230 = vpop.permute.xlu0 %1229
      %1231 = vrot.lane.b32.xlu0 %v565, 64
      %v1232 = vpop.permute.xlu0 %1231
      %1233 = vrot.lane.b32.xlu0 %v567, 64
      %v1234 = vpop.permute.xlu0 %1233
      %1235 = vrot.lane.b32.xlu0 %v570, 64
      %v1236 = vpop.permute.xlu0 %1235
      %1237 = vrot.lane.b32.xlu0 %v572, 64
      %v1238 = vpop.permute.xlu0 %1237
      %1239 = vrot.lane.b32.xlu0 %v575, 64
      %v1240 = vpop.permute.xlu0 %1239
      %1241 = vrot.lane.b32.xlu0 %v577, 64
      %v1242 = vpop.permute.xlu0 %1241
      %1243 = vrot.lane.b32.xlu0 %v580, 64
      %v1244 = vpop.permute.xlu0 %1243
      %1245 = vrot.lane.b32.xlu0 %v582, 64
      %v1246 = vpop.permute.xlu0 %1245
      %1247 = vrot.lane.b32.xlu0 %v585, 64
      %v1248 = vpop.permute.xlu0 %1247
      %1249 = vrot.lane.b32.xlu0 %v587, 64
      %v1250 = vpop.permute.xlu0 %1249
      %1251 = vrot.lane.b32.xlu0 %v590, 64
      %v1252 = vpop.permute.xlu0 %1251
      %1253 = vrot.lane.b32.xlu0 %v592, 64
      %v1254 = vpop.permute.xlu0 %1253
      %1255 = vrot.lane.b32.xlu0 %v595, 64
      %v1256 = vpop.permute.xlu0 %1255
      %1257 = vrot.lane.b32.xlu0 %v597, 64
      %v1258 = vpop.permute.xlu0 %1257
      %1259 = vrot.lane.b32.xlu0 %v600, 64
      %v1260 = vpop.permute.xlu0 %1259
      %1261 = vrot.lane.b32.xlu0 %v602, 64
      %v1262 = vpop.permute.xlu0 %1261
      %1263 = vrot.lane.b32.xlu0 %v605, 64
      %v1264 = vpop.permute.xlu0 %1263
      %1265 = vrot.lane.b32.xlu0 %v607, 64
      %v1266 = vpop.permute.xlu0 %1265
      %1267 = vrot.lane.b32.xlu0 %v610, 64
      %v1268 = vpop.permute.xlu0 %1267
      %1269 = vrot.lane.b32.xlu0 %v612, 64
      %v1270 = vpop.permute.xlu0 %1269
      %1271 = vrot.lane.b32.xlu0 %v911, 64
      %v1272 = vpop.permute.xlu0 %1271
      %1273 = vrot.lane.b32.xlu0 %v913, 64
      %v1274 = vpop.permute.xlu0 %1273
      %1275 = vrot.lane.b32.xlu0 %v1212, 64
      %v1276 = vpop.permute.xlu0 %1275
      %1277 = vrot.lane.b32.xlu0 %v1214, 64
      %v1278 = vpop.permute.xlu0 %1277
      %vm1311 = vcmask 64512
      %v1312 = vsel %vm1311, %v253, %v437
      %v1313 = vsel %vm1311, %v254, %v439
      %v1314 = vsel %vm1311, %v256, %v441
      %v1315 = vsel %vm1311, %v257, %v443
      %v1316 = vsel %vm1311, %v259, %v445
      %v1317 = vsel %vm1311, %v260, %v447
      %v1318 = vsel %vm1311, %v262, %v449
      %v1319 = vsel %vm1311, %v263, %v451
      %v1320 = vsel %vm1311, %v265, %v453
      %v1321 = vsel %vm1311, %v266, %v455
      %v1322 = vsel %vm1311, %v268, %v457
      %v1323 = vsel %vm1311, %v269, %v459
      %v1324 = vsel %vm1311, %v271, %v461
      %v1325 = vsel %vm1311, %v272, %v463
      %v1326 = vsel %vm1311, %v274, %v465
      %v1327 = vsel %vm1311, %v275, %v467
      %v1328 = vsel %vm1311, %v277, %v469
      %v1329 = vsel %vm1311, %v278, %v471
      %v1330 = vsel %vm1311, %v280, %v473
      %v1331 = vsel %vm1311, %v281, %v475
      %v1332 = vsel %vm1311, %v283, %v477
      %v1333 = vsel %vm1311, %v284, %v479
      %v1334 = vsel %vm1311, %v286, %v481
      %v1335 = vsel %vm1311, %v287, %v483
      %v1336 = vsel %vm1311, %v289, %v485
      %v1337 = vsel %vm1311, %v290, %v487
      %v1338 = vsel %vm1311, %v292, %v489
      %v1339 = vsel %vm1311, %v293, %v491
      %v1340 = vsel %vm1311, %v295, %v493
      %v1341 = vsel %vm1311, %v296, %v495
      %v1342 = vsel %vm1311, %v298, %v497
      %v1343 = vsel %vm1311, %v299, %v499
      %vm1344 = vcmask 130048
      %v1345 = vsel %vm1344, %v1312, %v614
      %v1346 = vsel %vm1344, %v1313, %v616
      %v1347 = vsel %vm1344, %v1314, %v618
      %v1348 = vsel %vm1344, %v1315, %v620
      %v1349 = vsel %vm1344, %v1316, %v622
      %v1350 = vsel %vm1344, %v1317, %v624
      %v1351 = vsel %vm1344, %v1318, %v626
      %v1352 = vsel %vm1344, %v1319, %v628
      %v1353 = vsel %vm1344, %v1320, %v630
      %v1354 = vsel %vm1344, %v1321, %v632
      %v1355 = vsel %vm1344, %v1322, %v634
      %v1356 = vsel %vm1344, %v1323, %v636
      %v1357 = vsel %vm1344, %v1324, %v638
      %v1358 = vsel %vm1344, %v1325, %v640
      %v1359 = vsel %vm1344, %v1326, %v642
      %v1360 = vsel %vm1344, %v1327, %v644
      %v1361 = vsel %vm1344, %v1328, %v646
      %v1362 = vsel %vm1344, %v1329, %v648
      %v1363 = vsel %vm1344, %v1330, %v650
      %v1364 = vsel %vm1344, %v1331, %v652
      %v1365 = vsel %vm1344, %v1332, %v654
      %v1366 = vsel %vm1344, %v1333, %v656
      %v1367 = vsel %vm1344, %v1334, %v658
      %v1368 = vsel %vm1344, %v1335, %v660
      %v1369 = vsel %vm1344, %v1336, %v662
      %v1370 = vsel %vm1344, %v1337, %v664
      %v1371 = vsel %vm1344, %v1338, %v666
      %v1372 = vsel %vm1344, %v1339, %v668
      %v1373 = vsel %vm1344, %v1340, %v670
      %v1374 = vsel %vm1344, %v1341, %v672
      %v1375 = vsel %vm1344, %v1342, %v674
      %v1376 = vsel %vm1344, %v1343, %v676
      %vm1377 = vcmask 195584
      %v1378 = vsel %vm1377, %v1345, %v712
      %v1379 = vsel %vm1377, %v1346, %v714
      %v1380 = vsel %vm1377, %v1347, %v716
      %v1381 = vsel %vm1377, %v1348, %v718
      %v1382 = vsel %vm1377, %v1349, %v720
      %v1383 = vsel %vm1377, %v1350, %v722
      %v1384 = vsel %vm1377, %v1351, %v724
      %v1385 = vsel %vm1377, %v1352, %v726
      %v1386 = vsel %vm1377, %v1353, %v728
      %v1387 = vsel %vm1377, %v1354, %v730
      %v1388 = vsel %vm1377, %v1355, %v732
      %v1389 = vsel %vm1377, %v1356, %v734
      %v1390 = vsel %vm1377, %v1357, %v736
      %v1391 = vsel %vm1377, %v1358, %v738
      %v1392 = vsel %vm1377, %v1359, %v740
      %v1393 = vsel %vm1377, %v1360, %v742
      %v1394 = vsel %vm1377, %v1361, %v744
      %v1395 = vsel %vm1377, %v1362, %v746
      %v1396 = vsel %vm1377, %v1363, %v748
      %v1397 = vsel %vm1377, %v1364, %v750
      %v1398 = vsel %vm1377, %v1365, %v752
      %v1399 = vsel %vm1377, %v1366, %v754
      %v1400 = vsel %vm1377, %v1367, %v756
      %v1401 = vsel %vm1377, %v1368, %v758
      %v1402 = vsel %vm1377, %v1369, %v760
      %v1403 = vsel %vm1377, %v1370, %v762
      %v1404 = vsel %vm1377, %v1371, %v764
      %v1405 = vsel %vm1377, %v1372, %v766
      %v1406 = vsel %vm1377, %v1373, %v768
      %v1407 = vsel %vm1377, %v1374, %v770
      %v1408 = vsel %vm1377, %v1375, %v772
      %v1409 = vsel %vm1377, %v1376, %v774
      %vm1410 = vcmask 261120
      %v1411 = vsel %vm1410, %v1378, %v814
      %v1412 = vsel %vm1410, %v1379, %v816
      %v1413 = vsel %vm1410, %v1380, %v818
      %v1414 = vsel %vm1410, %v1381, %v820
      %v1415 = vsel %vm1410, %v1382, %v822
      %v1416 = vsel %vm1410, %v1383, %v824
      %v1417 = vsel %vm1410, %v1384, %v826
      %v1418 = vsel %vm1410, %v1385, %v828
      %v1419 = vsel %vm1410, %v1386, %v830
      %v1420 = vsel %vm1410, %v1387, %v832
      %v1421 = vsel %vm1410, %v1388, %v834
      %v1422 = vsel %vm1410, %v1389, %v836
      %v1423 = vsel %vm1410, %v1390, %v838
      %v1424 = vsel %vm1410, %v1391, %v840
      %v1425 = vsel %vm1410, %v1392, %v842
      %v1426 = vsel %vm1410, %v1393, %v844
      %v1427 = vsel %vm1410, %v1394, %v846
      %v1428 = vsel %vm1410, %v1395, %v848
      %v1429 = vsel %vm1410, %v1396, %v850
      %v1430 = vsel %vm1410, %v1397, %v852
      %v1431 = vsel %vm1410, %v1398, %v854
      %v1432 = vsel %vm1410, %v1399, %v856
      %v1433 = vsel %vm1410, %v1400, %v858
      %v1434 = vsel %vm1410, %v1401, %v860
      %v1435 = vsel %vm1410, %v1402, %v862
      %v1436 = vsel %vm1410, %v1403, %v864
      %v1437 = vsel %vm1410, %v1404, %v866
      %v1438 = vsel %vm1410, %v1405, %v868
      %v1439 = vsel %vm1410, %v1406, %v870
      %v1440 = vsel %vm1410, %v1407, %v872
      %v1441 = vsel %vm1410, %v1408, %v874
      %v1442 = vsel %vm1410, %v1409, %v876
      %vm1443 = vcmask 326656
      %v1444 = vsel %vm1443, %v1411, %v915
      %v1445 = vsel %vm1443, %v1412, %v917
      %v1446 = vsel %vm1443, %v1413, %v919
      %v1447 = vsel %vm1443, %v1414, %v921
      %v1448 = vsel %vm1443, %v1415, %v923
      %v1449 = vsel %vm1443, %v1416, %v925
      %v1450 = vsel %vm1443, %v1417, %v927
      %v1451 = vsel %vm1443, %v1418, %v929
      %v1452 = vsel %vm1443, %v1419, %v931
      %v1453 = vsel %vm1443, %v1420, %v933
      %v1454 = vsel %vm1443, %v1421, %v935
      %v1455 = vsel %vm1443, %v1422, %v937
      %v1456 = vsel %vm1443, %v1423, %v939
      %v1457 = vsel %vm1443, %v1424, %v941
      %v1458 = vsel %vm1443, %v1425, %v943
      %v1459 = vsel %vm1443, %v1426, %v945
      %v1460 = vsel %vm1443, %v1427, %v947
      %v1461 = vsel %vm1443, %v1428, %v949
      %v1462 = vsel %vm1443, %v1429, %v951
      %v1463 = vsel %vm1443, %v1430, %v953
      %v1464 = vsel %vm1443, %v1431, %v955
      %v1465 = vsel %vm1443, %v1432, %v957
      %v1466 = vsel %vm1443, %v1433, %v959
      %v1467 = vsel %vm1443, %v1434, %v961
      %v1468 = vsel %vm1443, %v1435, %v963
      %v1469 = vsel %vm1443, %v1436, %v965
      %v1470 = vsel %vm1443, %v1437, %v967
      %v1471 = vsel %vm1443, %v1438, %v969
      %v1472 = vsel %vm1443, %v1439, %v971
      %v1473 = vsel %vm1443, %v1440, %v973
      %v1474 = vsel %vm1443, %v1441, %v975
      %v1475 = vsel %vm1443, %v1442, %v977
      %vm1476 = vcmask 392192
      %v1477 = vsel %vm1476, %v1444, %v1013
      %v1478 = vsel %vm1476, %v1445, %v1015
      %v1479 = vsel %vm1476, %v1446, %v1017
      %v1480 = vsel %vm1476, %v1447, %v1019
      %v1481 = vsel %vm1476, %v1448, %v1021
      %v1482 = vsel %vm1476, %v1449, %v1023
      %v1483 = vsel %vm1476, %v1450, %v1025
      %v1484 = vsel %vm1476, %v1451, %v1027
      %v1485 = vsel %vm1476, %v1452, %v1029
      %v1486 = vsel %vm1476, %v1453, %v1031
      %v1487 = vsel %vm1476, %v1454, %v1033
      %v1488 = vsel %vm1476, %v1455, %v1035
      %v1489 = vsel %vm1476, %v1456, %v1037
      %v1490 = vsel %vm1476, %v1457, %v1039
      %v1491 = vsel %vm1476, %v1458, %v1041
      %v1492 = vsel %vm1476, %v1459, %v1043
      %v1493 = vsel %vm1476, %v1460, %v1045
      %v1494 = vsel %vm1476, %v1461, %v1047
      %v1495 = vsel %vm1476, %v1462, %v1049
      %v1496 = vsel %vm1476, %v1463, %v1051
      %v1497 = vsel %vm1476, %v1464, %v1053
      %v1498 = vsel %vm1476, %v1465, %v1055
      %v1499 = vsel %vm1476, %v1466, %v1057
      %v1500 = vsel %vm1476, %v1467, %v1059
      %v1501 = vsel %vm1476, %v1468, %v1061
      %v1502 = vsel %vm1476, %v1469, %v1063
      %v1503 = vsel %vm1476, %v1470, %v1065
      %v1504 = vsel %vm1476, %v1471, %v1067
      %v1505 = vsel %vm1476, %v1472, %v1069
      %v1506 = vsel %vm1476, %v1473, %v1071
      %v1507 = vsel %vm1476, %v1474, %v1073
      %v1508 = vsel %vm1476, %v1475, %v1075
      %vm1509 = vcmask 457728
      %v1510 = vsel %vm1509, %v1477, %v1115
      %v1511 = vsel %vm1509, %v1478, %v1117
      %v1512 = vsel %vm1509, %v1479, %v1119
      %v1513 = vsel %vm1509, %v1480, %v1121
      %v1514 = vsel %vm1509, %v1481, %v1123
      %v1515 = vsel %vm1509, %v1482, %v1125
      %v1516 = vsel %vm1509, %v1483, %v1127
      %v1517 = vsel %vm1509, %v1484, %v1129
      %v1518 = vsel %vm1509, %v1485, %v1131
      %v1519 = vsel %vm1509, %v1486, %v1133
      %v1520 = vsel %vm1509, %v1487, %v1135
      %v1521 = vsel %vm1509, %v1488, %v1137
      %v1522 = vsel %vm1509, %v1489, %v1139
      %v1523 = vsel %vm1509, %v1490, %v1141
      %v1524 = vsel %vm1509, %v1491, %v1143
      %v1525 = vsel %vm1509, %v1492, %v1145
      %v1526 = vsel %vm1509, %v1493, %v1147
      %v1527 = vsel %vm1509, %v1494, %v1149
      %v1528 = vsel %vm1509, %v1495, %v1151
      %v1529 = vsel %vm1509, %v1496, %v1153
      %v1530 = vsel %vm1509, %v1497, %v1155
      %v1531 = vsel %vm1509, %v1498, %v1157
      %v1532 = vsel %vm1509, %v1499, %v1159
      %v1533 = vsel %vm1509, %v1500, %v1161
      %v1534 = vsel %vm1509, %v1501, %v1163
      %v1535 = vsel %vm1509, %v1502, %v1165
      %v1536 = vsel %vm1509, %v1503, %v1167
      %v1537 = vsel %vm1509, %v1504, %v1169
      %v1538 = vsel %vm1509, %v1505, %v1171
      %v1539 = vsel %vm1509, %v1506, %v1173
      %v1540 = vsel %vm1509, %v1507, %v1175
      %v1541 = vsel %vm1509, %v1508, %v1177
      %vm1542 = vcmask 523264
      %v1543 = vsel %vm1542, %v1510, %v1216
      %v1544 = vsel %vm1542, %v1511, %v1218
      %v1545 = vsel %vm1542, %v1512, %v1220
      %v1546 = vsel %vm1542, %v1513, %v1222
      %v1547 = vsel %vm1542, %v1514, %v1224
      %v1548 = vsel %vm1542, %v1515, %v1226
      %v1549 = vsel %vm1542, %v1516, %v1228
      %v1550 = vsel %vm1542, %v1517, %v1230
      %v1551 = vsel %vm1542, %v1518, %v1232
      %v1552 = vsel %vm1542, %v1519, %v1234
      %v1553 = vsel %vm1542, %v1520, %v1236
      %v1554 = vsel %vm1542, %v1521, %v1238
      %v1555 = vsel %vm1542, %v1522, %v1240
      %v1556 = vsel %vm1542, %v1523, %v1242
      %v1557 = vsel %vm1542, %v1524, %v1244
      %v1558 = vsel %vm1542, %v1525, %v1246
      %v1559 = vsel %vm1542, %v1526, %v1248
      %v1560 = vsel %vm1542, %v1527, %v1250
      %v1561 = vsel %vm1542, %v1528, %v1252
      %v1562 = vsel %vm1542, %v1529, %v1254
      %v1563 = vsel %vm1542, %v1530, %v1256
      %v1564 = vsel %vm1542, %v1531, %v1258
      %v1565 = vsel %vm1542, %v1532, %v1260
      %v1566 = vsel %vm1542, %v1533, %v1262
      %v1567 = vsel %vm1542, %v1534, %v1264
      %v1568 = vsel %vm1542, %v1535, %v1266
      %v1569 = vsel %vm1542, %v1536, %v1268
      %v1570 = vsel %vm1542, %v1537, %v1270
      %v1571 = vsel %vm1542, %v1538, %v1272
      %v1572 = vsel %vm1542, %v1539, %v1274
      %v1573 = vsel %vm1542, %v1540, %v1276
      %v1574 = vsel %vm1542, %v1541, %v1278
      %v1575 = vpack.c.bf16 %v1544, %v1543
      %v1576 = vpack.c.bf16 %v1546, %v1545
      %v1577 = vpack.c.bf16 %v1548, %v1547
      %v1578 = vpack.c.bf16 %v1550, %v1549
      %v1579 = vpack.c.bf16 %v1552, %v1551
      %v1580 = vpack.c.bf16 %v1554, %v1553
      %v1581 = vpack.c.bf16 %v1556, %v1555
      %v1582 = vpack.c.bf16 %v1558, %v1557
      %v1583 = vpack.c.bf16 %v1560, %v1559
      %v1584 = vpack.c.bf16 %v1562, %v1561
      %v1585 = vpack.c.bf16 %v1564, %v1563
      %v1586 = vpack.c.bf16 %v1566, %v1565
      %v1587 = vpack.c.bf16 %v1568, %v1567
      %v1588 = vpack.c.bf16 %v1570, %v1569
      %v1589 = vpack.c.bf16 %v1572, %v1571
      %v1590 = vpack.c.bf16 %v1574, %v1573
      %v1591 = vld [vmem:[%s1] sm:$0xf]
      %v1592 = vld [vmem:[%s1 + $0x4] sm:$0xf]
      %v1593 = vld [vmem:[%s1 + $0x8] sm:$0xf]
      %v1594 = vld [vmem:[%s1 + $0xc] sm:$0xf]
      %v1595 = vld [vmem:[%s1 + $0x10] sm:$0xf]
      %v1596 = vld [vmem:[%s1 + $0x14] sm:$0xf]
      %v1597 = vld [vmem:[%s1 + $0x18] sm:$0xf]
      %v1598 = vld [vmem:[%s1 + $0x1c] sm:$0xf]
      %v1599 = vld [vmem:[%s1 + $0x20] sm:$0xf]
      %v1609 = vunpack.c.l.b16 %v1591
      %v1610 = vunpack.c.l.b16 %v1592
      %v1611 = vunpack.c.l.b16 %v1593
      %v1612 = vunpack.c.l.b16 %v1594
      %v1613 = vunpack.c.l.b16 %v1595
      %v1614 = vunpack.c.l.b16 %v1596
      %v1615 = vunpack.c.l.b16 %v1597
      %v1616 = vunpack.c.l.b16 %v1598
      %v1617 = vunpack.c.l.b16 %v1599
      %v1618 = vpack.c.b16 %v1610, %v1609
      %v1619 = vpack.c.b16 %v1612, %v1611
      %v1620 = vpack.c.b16 %v1614, %v1613
      %v1621 = vpack.c.b16 %v1616, %v1615
      %v1622 = vpack.c.b16 %v1617, %v1617
      %vm1627 = vcmask 588800
      %v1629 = vsel %vm1627, %v1575, 0
      %v1632 = vsel %vm1627, %v1576, 0
      %v1635 = vsel %vm1627, %v1577, 0
      %v1638 = vsel %vm1627, %v1578, 0
      %v1641 = vsel %vm1627, %v1579, 0
      %v1644 = vsel %vm1627, %v1580, 0
      %v1647 = vsel %vm1627, %v1581, 0
      %v1650 = vsel %vm1627, %v1582, 0
      %v1653 = vsel %vm1627, %v1583, 0
      %v1656 = vsel %vm1627, %v1584, 0
      %v1659 = vsel %vm1627, %v1585, 0
      %v1662 = vsel %vm1627, %v1586, 0
      %v1665 = vsel %vm1627, %v1587, 0
      %v1668 = vsel %vm1627, %v1588, 0
      %v1671 = vsel %vm1627, %v1589, 0
      %v1674 = vsel %vm1627, %v1590, 0
      %vm1676 = vcmask 1043456
      %v1678 = vsel %vm1676, %v1622, 0
      %1680 = vmatprep.subr.bf16.mxu0 0
      %1681 = vmatpush1.bf16.msra.mxu0 %v1618
      %1682 = vmatprep.subr.bf16.mxu0 0
      %1683 = vmatpush1.bf16.msra.mxu0 %v1619
      %1684 = vmatprep.subr.bf16.mxu0 0
      %1685 = vmatpush1.bf16.msra.mxu0 %v1620
      %1686 = vmatprep.subr.bf16.mxu0 0
      %1687 = vmatpush1.bf16.msra.mxu0 %v1621
      %1688 = vmatprep.subr.bf16.mxu0 0
      %1689 = vmatpush1.bf16.msra.mxu0 %v1678
      %1690 = vmatprep.subr.bf16.mxu0 0
      %1691 = vmatpush1.bf16.msra.mxu0 0
      %1692 = vmatprep.subr.bf16.mxu0 0
      %1693 = vmatpush1.bf16.msra.mxu0 0
      %1694 = vmatprep.subr.bf16.mxu0 0
      %1695 = vmatpush1.bf16.msra.mxu0 0
      %1696 = vmatprep.subr.bf16.mxu0 0
      %1697 = vmatpush1.bf16.msra.mxu0 0
      %1698 = vmatprep.subr.bf16.mxu0 0
      %1699 = vmatpush1.bf16.msra.mxu0 0
      %1700 = vmatprep.subr.bf16.mxu0 0
      %1701 = vmatpush1.bf16.msra.mxu0 0
      %1702 = vmatprep.subr.bf16.mxu0 0
      %1703 = vmatpush1.bf16.msra.mxu0 0
      %1704 = vmatprep.subr.bf16.mxu0 0
      %1705 = vmatpush1.bf16.msra.mxu0 0
      %1706 = vmatprep.subr.bf16.mxu0 0
      %1707 = vmatpush1.bf16.msra.mxu0 0
      %1708 = vmatprep.subr.bf16.mxu0 0
      %1709 = vmatpush1.bf16.msra.mxu0 0
      %1710 = vmatprep.subr.bf16.mxu0 0
      %1711 = vmatpush1.bf16.msra.mxu0 0
      %1712 = vmatprep.mubr.bf16.mxu0 0
      %1713 = vmatmul.mubr.bf16.gmra.mrb[0].mxu0 %v1629
      %v1714 = vpop.f32.mrb[0].mxu0
      %v1715 = vadd.f32 0.0, %v1714
      %v1716 = vpop.f32.mrb[0].mxu0
      %v1717 = vpop.f32.mrb[0].mxu0
      %v1718 = vadd.f32 0.0, %v1717
      %v1719 = vpop.f32.mrb[0].mxu0
      %1720 = vmatprep.mubr.bf16.mxu0 0
      %1721 = vmatmul.mubr.bf16.gmra.mrb[0].mxu0 %v1632
      %v1722 = vpop.f32.mrb[0].mxu0
      %v1723 = vadd.f32 0.0, %v1722
      %v1724 = vpop.f32.mrb[0].mxu0
      %v1725 = vpop.f32.mrb[0].mxu0
      %v1726 = vadd.f32 0.0, %v1725
      %v1727 = vpop.f32.mrb[0].mxu0
      %1728 = vmatprep.mubr.bf16.mxu0 0
      %1729 = vmatmul.mubr.bf16.gmra.mrb[0].mxu0 %v1635
      %v1730 = vpop.f32.mrb[0].mxu0
      %v1731 = vadd.f32 0.0, %v1730
      %v1732 = vpop.f32.mrb[0].mxu0
      %v1733 = vpop.f32.mrb[0].mxu0
      %v1734 = vadd.f32 0.0, %v1733
      %v1735 = vpop.f32.mrb[0].mxu0
      %1736 = vmatprep.mubr.bf16.mxu0 0
      %1737 = vmatmul.mubr.bf16.gmra.mrb[0].mxu0 %v1638
      %v1738 = vpop.f32.mrb[0].mxu0
      %v1739 = vadd.f32 0.0, %v1738
      %v1740 = vpop.f32.mrb[0].mxu0
      %v1741 = vpop.f32.mrb[0].mxu0
      %v1742 = vadd.f32 0.0, %v1741
      %v1743 = vpop.f32.mrb[0].mxu0
      %1744 = vmatprep.mubr.bf16.mxu0 0
      %1745 = vmatmul.mubr.bf16.gmra.mrb[0].mxu0 %v1641
      %v1746 = vpop.f32.mrb[0].mxu0
      %v1747 = vadd.f32 0.0, %v1746
      %v1748 = vpop.f32.mrb[0].mxu0
      %v1749 = vpop.f32.mrb[0].mxu0
      %v1750 = vadd.f32 0.0, %v1749
      %v1751 = vpop.f32.mrb[0].mxu0
      %1752 = vmatprep.mubr.bf16.mxu0 0
      %1753 = vmatmul.mubr.bf16.gmra.mrb[0].mxu0 %v1644
      %v1754 = vpop.f32.mrb[0].mxu0
      %v1755 = vadd.f32 0.0, %v1754
      %v1756 = vpop.f32.mrb[0].mxu0
      %v1757 = vpop.f32.mrb[0].mxu0
      %v1758 = vadd.f32 0.0, %v1757
      %v1759 = vpop.f32.mrb[0].mxu0
      %1760 = vmatprep.mubr.bf16.mxu0 0
      %1761 = vmatmul.mubr.bf16.gmra.mrb[0].mxu0 %v1647
      %v1762 = vpop.f32.mrb[0].mxu0
      %v1763 = vadd.f32 0.0, %v1762
      %v1764 = vpop.f32.mrb[0].mxu0
      %v1765 = vpop.f32.mrb[0].mxu0
      %v1766 = vadd.f32 0.0, %v1765
      %v1767 = vpop.f32.mrb[0].mxu0
      %1768 = vmatprep.mubr.bf16.mxu0 0
      %1769 = vmatmul.mubr.bf16.gmra.mrb[0].mxu0 %v1650
      %v1770 = vpop.f32.mrb[0].mxu0
      %v1771 = vadd.f32 0.0, %v1770
      %v1772 = vpop.f32.mrb[0].mxu0
      %v1773 = vpop.f32.mrb[0].mxu0
      %v1774 = vadd.f32 0.0, %v1773
      %v1775 = vpop.f32.mrb[0].mxu0
      %1776 = vmatprep.mubr.bf16.mxu0 0
      %1777 = vmatmul.mubr.bf16.gmra.mrb[0].mxu0 %v1653
      %v1778 = vpop.f32.mrb[0].mxu0
      %v1779 = vadd.f32 0.0, %v1778
      %v1780 = vpop.f32.mrb[0].mxu0
      %v1781 = vpop.f32.mrb[0].mxu0
      %v1782 = vadd.f32 0.0, %v1781
      %v1783 = vpop.f32.mrb[0].mxu0
      %1784 = vmatprep.mubr.bf16.mxu0 0
      %1785 = vmatmul.mubr.bf16.gmra.mrb[0].mxu0 %v1656
      %v1786 = vpop.f32.mrb[0].mxu0
      %v1787 = vadd.f32 0.0, %v1786
      %v1788 = vpop.f32.mrb[0].mxu0
      %v1789 = vpop.f32.mrb[0].mxu0
      %v1790 = vadd.f32 0.0, %v1789
      %v1791 = vpop.f32.mrb[0].mxu0
      %1792 = vmatprep.mubr.bf16.mxu0 0
      %1793 = vmatmul.mubr.bf16.gmra.mrb[0].mxu0 %v1659
      %v1794 = vpop.f32.mrb[0].mxu0
      %v1795 = vadd.f32 0.0, %v1794
      %v1796 = vpop.f32.mrb[0].mxu0
      %v1797 = vpop.f32.mrb[0].mxu0
      %v1798 = vadd.f32 0.0, %v1797
      %v1799 = vpop.f32.mrb[0].mxu0
      %1800 = vmatprep.mubr.bf16.mxu0 0
      %1801 = vmatmul.mubr.bf16.gmra.mrb[0].mxu0 %v1662
      %v1802 = vpop.f32.mrb[0].mxu0
      %v1803 = vadd.f32 0.0, %v1802
      %v1804 = vpop.f32.mrb[0].mxu0
      %v1805 = vpop.f32.mrb[0].mxu0
      %v1806 = vadd.f32 0.0, %v1805
      %v1807 = vpop.f32.mrb[0].mxu0
      %1808 = vmatprep.mubr.bf16.mxu0 0
      %1809 = vmatmul.mubr.bf16.gmra.mrb[0].mxu0 %v1665
      %v1810 = vpop.f32.mrb[0].mxu0
      %v1811 = vadd.f32 0.0, %v1810
      %v1812 = vpop.f32.mrb[0].mxu0
      %v1813 = vpop.f32.mrb[0].mxu0
      %v1814 = vadd.f32 0.0, %v1813
      %v1815 = vpop.f32.mrb[0].mxu0
      %1816 = vmatprep.mubr.bf16.mxu0 0
      %1817 = vmatmul.mubr.bf16.gmra.mrb[0].mxu0 %v1668
      %v1818 = vpop.f32.mrb[0].mxu0
      %v1819 = vadd.f32 0.0, %v1818
      %v1820 = vpop.f32.mrb[0].mxu0
      %v1821 = vpop.f32.mrb[0].mxu0
      %v1822 = vadd.f32 0.0, %v1821
      %v1823 = vpop.f32.mrb[0].mxu0
      %1824 = vmatprep.mubr.bf16.mxu0 0
      %1825 = vmatmul.mubr.bf16.gmra.mrb[0].mxu0 %v1671
      %v1826 = vpop.f32.mrb[0].mxu0
      %v1827 = vadd.f32 0.0, %v1826
      %v1828 = vpop.f32.mrb[0].mxu0
      %v1829 = vpop.f32.mrb[0].mxu0
      %v1830 = vadd.f32 0.0, %v1829
      %v1831 = vpop.f32.mrb[0].mxu0
      %1832 = vmatprep.mubr.bf16.mxu0 0
      %1833 = vmatmul.mubr.bf16.gmra.mrb[0].mxu0 %v1674
      %v1834 = vpop.f32.mrb[0].mxu0
      %v1835 = vadd.f32 0.0, %v1834
      %v1836 = vpop.f32.mrb[0].mxu0
      %v1837 = vpop.f32.mrb[0].mxu0
      %v1838 = vadd.f32 0.0, %v1837
      %v1839 = vpop.f32.mrb[0].mxu0
      %1840 = vdwg.mxu0
      %v1841 = vld [vmem:[%s2] sm:$0x1]
      %v1843 = vlaneseq
      %v1844 = vshrl.u32 %v1843, 7
      %v1845 = vsub.s32 0, %v1844
      %v1846 = vrot.slane %v1841, %v1845
      %v1848 = vmul.f32 %v1715, %v1846
      %v1849 = vmul.f32 %v1718, %v1846
      %v1850 = vmul.f32 %v1723, %v1846
      %v1851 = vmul.f32 %v1726, %v1846
      %v1852 = vmul.f32 %v1731, %v1846
      %v1853 = vmul.f32 %v1734, %v1846
      %v1854 = vmul.f32 %v1739, %v1846
      %v1855 = vmul.f32 %v1742, %v1846
      %v1856 = vmul.f32 %v1747, %v1846
      %v1857 = vmul.f32 %v1750, %v1846
      %v1858 = vmul.f32 %v1755, %v1846
      %v1859 = vmul.f32 %v1758, %v1846
      %v1860 = vmul.f32 %v1763, %v1846
      %v1861 = vmul.f32 %v1766, %v1846
      %v1862 = vmul.f32 %v1771, %v1846
      %v1863 = vmul.f32 %v1774, %v1846
      %v1864 = vmul.f32 %v1779, %v1846
      %v1865 = vmul.f32 %v1782, %v1846
      %v1866 = vmul.f32 %v1787, %v1846
      %v1867 = vmul.f32 %v1790, %v1846
      %v1868 = vmul.f32 %v1795, %v1846
      %v1869 = vmul.f32 %v1798, %v1846
      %v1870 = vmul.f32 %v1803, %v1846
      %v1871 = vmul.f32 %v1806, %v1846
      %v1872 = vmul.f32 %v1811, %v1846
      %v1873 = vmul.f32 %v1814, %v1846
      %v1874 = vmul.f32 %v1819, %v1846
      %v1875 = vmul.f32 %v1822, %v1846
      %v1876 = vmul.f32 %v1827, %v1846
      %v1877 = vmul.f32 %v1830, %v1846
      %v1878 = vmul.f32 %v1835, %v1846
      %v1879 = vmul.f32 %v1838, %v1846
      %v1880 = vld [vmem:[%s3] sm:$0x1]
      %v1882 = vlaneseq
      %v1883 = vshrl.u32 %v1882, 7
      %v1884 = vsub.s32 0, %v1883
      %v1885 = vrot.slane %v1880, %v1884
      %v1887 = vadd.f32 %v1848, %v1885
      %v1888 = vadd.f32 %v1849, %v1885
      %v1889 = vadd.f32 %v1850, %v1885
      %v1890 = vadd.f32 %v1851, %v1885
      %v1891 = vadd.f32 %v1852, %v1885
      %v1892 = vadd.f32 %v1853, %v1885
      %v1893 = vadd.f32 %v1854, %v1885
      %v1894 = vadd.f32 %v1855, %v1885
      %v1895 = vadd.f32 %v1856, %v1885
      %v1896 = vadd.f32 %v1857, %v1885
      %v1897 = vadd.f32 %v1858, %v1885
      %v1898 = vadd.f32 %v1859, %v1885
      %v1899 = vadd.f32 %v1860, %v1885
      %v1900 = vadd.f32 %v1861, %v1885
      %v1901 = vadd.f32 %v1862, %v1885
      %v1902 = vadd.f32 %v1863, %v1885
      %v1903 = vadd.f32 %v1864, %v1885
      %v1904 = vadd.f32 %v1865, %v1885
      %v1905 = vadd.f32 %v1866, %v1885
      %v1906 = vadd.f32 %v1867, %v1885
      %v1907 = vadd.f32 %v1868, %v1885
      %v1908 = vadd.f32 %v1869, %v1885
      %v1909 = vadd.f32 %v1870, %v1885
      %v1910 = vadd.f32 %v1871, %v1885
      %v1911 = vadd.f32 %v1872, %v1885
      %v1912 = vadd.f32 %v1873, %v1885
      %v1913 = vadd.f32 %v1874, %v1885
      %v1914 = vadd.f32 %v1875, %v1885
      %v1915 = vadd.f32 %v1876, %v1885
      %v1916 = vadd.f32 %v1877, %v1885
      %v1917 = vadd.f32 %v1878, %v1885
      %v1918 = vadd.f32 %v1879, %v1885
      %1919 = vst.msk [vmem:[%s197] sm:$0xff] %vm1311, %v1887
      %1920 = vst.msk [vmem:[%s197 + $0x8] sm:$0xff] %vm1311, %v1888
      %1921 = vst.msk [vmem:[%s197 + $0x10] sm:$0xff] %vm1311, %v1889
      %1922 = vst.msk [vmem:[%s197 + $0x18] sm:$0xff] %vm1311, %v1890
      %1923 = vst.msk [vmem:[%s197 + $0x20] sm:$0xff] %vm1311, %v1891
      %1924 = vst.msk [vmem:[%s197 + $0x28] sm:$0xff] %vm1311, %v1892
      %1925 = vst.msk [vmem:[%s197 + $0x30] sm:$0xff] %vm1311, %v1893
      %1926 = vst.msk [vmem:[%s197 + $0x38] sm:$0xff] %vm1311, %v1894
      %1927 = vst.msk [vmem:[%s197 + $0x40] sm:$0xff] %vm1311, %v1895
      %1928 = vst.msk [vmem:[%s197 + $0x48] sm:$0xff] %vm1311, %v1896
      %1929 = vst.msk [vmem:[%s197 + $0x50] sm:$0xff] %vm1311, %v1897
      %1930 = vst.msk [vmem:[%s197 + $0x58] sm:$0xff] %vm1311, %v1898
      %1931 = vst.msk [vmem:[%s197 + $0x60] sm:$0xff] %vm1311, %v1899
      %1932 = vst.msk [vmem:[%s197 + $0x68] sm:$0xff] %vm1311, %v1900
      %1933 = vst.msk [vmem:[%s197 + $0x70] sm:$0xff] %vm1311, %v1901
      %1934 = vst.msk [vmem:[%s197 + $0x78] sm:$0xff] %vm1311, %v1902
      %1935 = vst.msk [vmem:[%s197 + $0x80] sm:$0xff] %vm1311, %v1903
      %1936 = vst.msk [vmem:[%s197 + $0x88] sm:$0xff] %vm1311, %v1904
      %1937 = vst.msk [vmem:[%s197 + $0x90] sm:$0xff] %vm1311, %v1905
      %1938 = vst.msk [vmem:[%s197 + $0x98] sm:$0xff] %vm1311, %v1906
      %1939 = vst.msk [vmem:[%s197 + $0xa0] sm:$0xff] %vm1311, %v1907
      %1940 = vst.msk [vmem:[%s197 + $0xa8] sm:$0xff] %vm1311, %v1908
      %1941 = vst.msk [vmem:[%s197 + $0xb0] sm:$0xff] %vm1311, %v1909
      %1942 = vst.msk [vmem:[%s197 + $0xb8] sm:$0xff] %vm1311, %v1910
      %1943 = vst.msk [vmem:[%s197 + $0xc0] sm:$0xff] %vm1311, %v1911
      %1944 = vst.msk [vmem:[%s197 + $0xc8] sm:$0xff] %vm1311, %v1912
      %1945 = vst.msk [vmem:[%s197 + $0xd0] sm:$0xff] %vm1311, %v1913
      %1946 = vst.msk [vmem:[%s197 + $0xd8] sm:$0xff] %vm1311, %v1914
      %1947 = vst.msk [vmem:[%s197 + $0xe0] sm:$0xff] %vm1311, %v1915
      %1948 = vst.msk [vmem:[%s197 + $0xe8] sm:$0xff] %vm1311, %v1916
      %1949 = vst.msk [vmem:[%s197 + $0xf0] sm:$0xff] %vm1311, %v1917
      %1950 = vst.msk [vmem:[%s197 + $0xf8] sm:$0xff] %vm1311, %v1918
      %p1951 = scmp.lt.s32.totalorder %s15, 1
      %s1952 = scalar_select %p1951, %s15, 1
      %s1953 = smul.addr %s1952, 32
      %s1954 = smul.addr %s1953, 8
      %s1955 = scalar_lea.vmem %s4, %s1954
      // Predicated region
      $region37: #{upconv_forward.3} parent=35 // pred_check
        %p1956 = pneg %p122
      $region38: #{upconv_forward.3} parent=35 // pred_check_branch
        %1958 = sbr.rel (%p1956) target = $region40
      $region39: #{upconv_forward.3} parent=35 // pred_region
        _
      $region40: #{upconv_forward.3} parent=35 // pred_fallthru
        _
    $region36: #{upconv_forward.3} parent=5 // pred_fallthru
      _
    %p1959 = scmp.le.s32.totalorder 2, %s10
    // Predicated region
    $region41: #{upconv_forward.3} parent=5 // pred_check
      %p1960 = pneg %p1959
    $region42: #{upconv_forward.3} parent=5 // pred_check_branch
      %1962 = sbr.rel (%p1960) target = $region44
    $region43: #{upconv_forward.3} parent=5 // pred_region
      %s1963 = ssub.s32 %s10, 2
      // Predicated region
      $region45: #{upconv_forward.3} parent=43 // pred_check
        %p1964 = pneg %p128
      $region46: #{upconv_forward.3} parent=43 // pred_check_branch
        %1966 = sbr.rel (%p1964) target = $region48
      $region47: #{upconv_forward.3} parent=43 // pred_region
        %p1967 = scmp.lt.s32.totalorder %s16, 1
        %s1968 = scalar_select %p1967, %s16, 1
        %s1969 = smul.addr %s1968, 32
        %s1970 = smul.addr %s1969, 8
        %s1971 = scalar_lea.vmem %s4, %s1970
      $region48: #{upconv_forward.3} parent=43 // pred_fallthru
        _
    $region44: #{upconv_forward.3} parent=5 // pred_fallthru
      _
  $region6: #{upconv_forward.3} parent=0 // loop_footer
    %s14 = sadd.s32 1, %s10
  $region7: #{upconv_forward.3} parent=0 // loop_footer_branch
    %9 = sbr.rel target = $region3
  $region8: #{upconv_forward.3} parent=0 // loop_exit
    _

// kernel: upconv_forward.2
$region0: #{upconv_forward.2}
  #allocation0 [shape = 'u32[]', space=smem, size = 0x4, offset = 0x4, fixed_abs, tag = 'smem constant byte address 0x4 - core index']
  #allocation1 [shape = 'u32[144,128]{1,0:T(1,128)}', space=vmem, size = 0x12000, scoped, tag = 'internal scratch']
  %s0 = inlined_call_operand.vmem [shape: bf16[2,18,18,8], index: 0, kind: input, shape index: {}]
  %s1 = inlined_call_operand.vmem [shape: bf16[72,8], index: 1, kind: input, shape index: {}]
  %s2 = inlined_call_operand.vmem [shape: f32[2,2,8], index: 2, kind: output, shape index: {}]
  %s3 = sld [smem:[#allocation0]]
  $region41: #{upconv_forward.2} parent=0
    _
  %s5 = ssub.s32 1, %s3
  %s6 = scalar_select 0, %s5, %s3
  loop: start=0, step=1, limit=4
  $region2: #{upconv_forward.2} parent=0 // loop_pre_header
    _
  $region3: #{upconv_forward.2} parent=0 // loop_header
    %s8 = sphi 0, %s12
    %p9 = scmp.ge.s32.totalorder %s8, 4
    %s18 = sphi 0, %s20
    %s21 = sphi 0, %s18
    %s22 = sphi 0, %s21
    %s38 = sphi 0, %s22
    %s42 = sphi 0, %s42
    %s44 = sphi 0, %s42
    %s45 = sphi 0, %s44
    %s59 = sphi 0, %s45
    %s65 = sphi 0, %s67
    %s68 = sphi 0, %s65
    %s69 = sphi 0, %s68
    %s85 = sphi 0, %s69
  $region4: #{upconv_forward.2} parent=0 // loop_header_branch
    %11 = sbr.rel (%p9) target = $region8
  $region5: #{upconv_forward.2} parent=0 // loop_body
    %s13 = ssub.s32 %s8, 1
    %s14 = ssub.s32 %s8, 2
    %s15 = sadd.s32 %s8, 1
    %s16 = ssub.s32 %s8, %s15
    %p17 = scmp.eq.s32.totalorder %s16, 0
    %s19 = sadd.s32 %s18, 1
    %s20 = scalar_select %p17, %s18, %s19
    %p23 = pneg %p17
    %p24 = scmp.eq.s32.totalorder %s8, 1
    %p25 = por %p23, %p24
    %p26 = scmp.ne.s32.totalorder %s18, %s21
    %p27 = scmp.eq.s32.totalorder %s8, 0
    %p28 = por %p26, %p27
    %p29 = scmp.ne.s32.totalorder %s18, %s21
    %p30 = scmp.eq.s32.totalorder %s13, 1
    %p31 = por %p29, %p30
    %p32 = scmp.ne.s32.totalorder %s21, %s22
    %p33 = scmp.eq.s32.totalorder %s13, 0
    %p34 = por %p32, %p33
    %p35 = scmp.ne.s32.totalorder %s21, %s22
    %p36 = scmp.eq.s32.totalorder %s14, 1
    %p37 = por %p35, %p36
    %p39 = scmp.ne.s32.totalorder %s22, %s38
    %p40 = scmp.eq.s32.totalorder %s14, 0
    %p41 = por %p39, %p40
    %s43 = sadd.s32 %s42, 1
    %p46 = scmp.eq.s32.totalorder %s8, 1
    %p47 = scmp.ne.s32.totalorder %s42, %s44
    %p48 = scmp.eq.s32.totalorder %s8, 0
    %p49 = por %p47, %p48
    %p50 = scmp.ne.s32.totalorder %s42, %s44
    %p51 = scmp.eq.s32.totalorder %s13, 1
    %p52 = por %p50, %p51
    %p53 = scmp.ne.s32.totalorder %s44, %s45
    %p54 = scmp.eq.s32.totalorder %s13, 0
    %p55 = por %p53, %p54
    %p56 = scmp.ne.s32.totalorder %s44, %s45
    %p57 = scmp.eq.s32.totalorder %s14, 1
    %p58 = por %p56, %p57
    %p60 = scmp.ne.s32.totalorder %s45, %s59
    %p61 = scmp.eq.s32.totalorder %s14, 0
    %p62 = por %p60, %p61
    %s63 = ssub.s32 %s8, %s15
    %p64 = scmp.eq.s32.totalorder %s63, 0
    %s66 = sadd.s32 %s65, 1
    %s67 = scalar_select %p64, %s65, %s66
    %p70 = pneg %p64
    %p71 = scmp.eq.s32.totalorder %s8, 1
    %p72 = por %p70, %p71
    %p73 = scmp.ne.s32.totalorder %s65, %s68
    %p74 = scmp.eq.s32.totalorder %s8, 0
    %p75 = por %p73, %p74
    %p76 = scmp.ne.s32.totalorder %s65, %s68
    %p77 = scmp.eq.s32.totalorder %s13, 1
    %p78 = por %p76, %p77
    %p79 = scmp.ne.s32.totalorder %s68, %s69
    %p80 = scmp.eq.s32.totalorder %s13, 0
    %p81 = por %p79, %p80
    %p82 = scmp.ne.s32.totalorder %s68, %s69
    %p83 = scmp.eq.s32.totalorder %s14, 1
    %p84 = por %p82, %p83
    %p86 = scmp.ne.s32.totalorder %s69, %s85
    %p87 = scmp.eq.s32.totalorder %s14, 0
    %p88 = por %p86, %p87
    %p89 = scmp.le.s32.totalorder 1, %s8
    %p90 = scmp.lt.s32.totalorder %s8, 3
    %p91 = pnand %p89, %p90
    %p92 = pneg %p91
    // Predicated region
    $region9: #{upconv_forward.2} parent=5 // pred_check
      _
    $region10: #{upconv_forward.2} parent=5 // pred_check_branch
      %94 = sbr.rel (%p91) target = $region12
    $region11: #{upconv_forward.2} parent=5 // pred_region
      %s95 = ssub.s32 %s8, 1
      // Predicated region
      $region13: #{upconv_forward.2} parent=11 // pred_check
        %p96 = pneg %p55
      $region14: #{upconv_forward.2} parent=11 // pred_check_branch
        %98 = sbr.rel (%p96) target = $region16
      $region15: #{upconv_forward.2} parent=11 // pred_region
        _
      $region16: #{upconv_forward.2} parent=11 // pred_fallthru
        _
    $region12: #{upconv_forward.2} parent=5 // pred_fallthru
      _
    %p99 = scmp.lt.s32.totalorder %s8, 2
    // Predicated region
    $region17: #{upconv_forward.2} parent=5 // pred_check
      %p100 = pneg %p99
    $region18: #{upconv_forward.2} parent=5 // pred_check_branch
      %102 = sbr.rel (%p100) target = $region20
    $region19: #{upconv_forward.2} parent=5 // pred_region
      // Predicated region
      $region21: #{upconv_forward.2} parent=19 // pred_check
        %p103 = pneg %p28
      $region22: #{upconv_forward.2} parent=19 // pred_check_branch
        %105 = sbr.rel (%p103) target = $region24
      $region23: #{upconv_forward.2} parent=19 // pred_region
        %p106 = scmp.lt.s32.totalorder %s8, 1
        %s107 = scalar_select %p106, %s8, 1
        %s108 = smul.addr %s107, 54
        %s109 = smul.addr %s108, 4
        %s110 = scalar_lea.vmem %s0, %s109
      $region24: #{upconv_forward.2} parent=19 // pred_fallthru
        _
    $region20: #{upconv_forward.2} parent=5 // pred_fallthru
      _
    %p111 = scmp.le.s32.totalorder 1, %s8
    %p112 = scmp.lt.s32.totalorder %s8, 3
    %p113 = pnand %p111, %p112
    %p114 = pneg %p113
    // Predicated region
    $region25: #{upconv_forward.2} parent=5 // pred_check
      _
    $region26: #{upconv_forward.2} parent=5 // pred_check_branch
      %116 = sbr.rel (%p113) target = $region28
    $region27: #{upconv_forward.2} parent=5 // pred_region
      %s117 = ssub.s32 %s8, 1
      %p118 = scmp.lt.s32.totalorder %s13, 1
      %s119 = scalar_select %p118, %s13, 1
      %s120 = smul.addr %s119, 54
      %s121 = smul.addr %s120, 4
      %s122 = scalar_lea.vmem %s0, %s121
      %p123 = pneg %p34
      %p124 = pneg %p31
      %p125 = pneg %p55
      %p126 = pneg %p52
      %p127 = pneg %p81
      %p128 = pneg %p78
      %p129 = scmp.lt.s32.totalorder %s13, 1
      %s130 = scalar_select %p129, %s13, 1
      %s131 = smul.addr %s130, 2
      %s132 = scalar_lea.vmem %s2, %s131
      %p133 = scmp.lt.s32.totalorder %s13, 1
      %s134 = scalar_select %p133, %s13, 1
      %s135 = smul.addr %s134, 54
      %s136 = smul.addr %s135, 4
      %s137 = scalar_lea.vmem %s0, %s136
      %p138 = scmp.lt.s32.totalorder %s13, 1
      %s139 = scalar_select %p138, %s13, 1
      %s140 = smul.addr %s139, 2
      %s141 = scalar_lea.vmem %s2, %s140
      %v143 = vld [vmem:[%s137] sm:$0xf]
      %v144 = vld [vmem:[%s137 + $0x4] sm:$0xf]
      %v145 = vld [vmem:[%s137 + $0x8] sm:$0x1]
      %v146 = vld [vmem:[%s137 + $0xc] sm:$0xf]
      %v147 = vld [vmem:[%s137 + $0x10] sm:$0xf]
      %v148 = vld [vmem:[%s137 + $0x14] sm:$0x1]
      %v149 = vld [vmem:[%s137 + $0x18] sm:$0xf]
      %v150 = vld [vmem:[%s137 + $0x1c] sm:$0xf]
      %v151 = vld [vmem:[%s137 + $0x20] sm:$0x1]
      %v152 = vld [vmem:[%s137 + $0x24] sm:$0xf]
      %v153 = vld [vmem:[%s137 + $0x28] sm:$0xf]
      %v154 = vld [vmem:[%s137 + $0x2c] sm:$0x1]
      %v155 = vld [vmem:[%s137 + $0x30] sm:$0xf]
      %v156 = vld [vmem:[%s137 + $0x34] sm:$0xf]
      %v157 = vld [vmem:[%s137 + $0x38] sm:$0x1]
      %v158 = vld [vmem:[%s137 + $0x3c] sm:$0xf]
      %v159 = vld [vmem:[%s137 + $0x40] sm:$0xf]
      %v160 = vld [vmem:[%s137 + $0x44] sm:$0x1]
      %v161 = vld [vmem:[%s137 + $0x48] sm:$0xf]
      %v162 = vld [vmem:[%s137 + $0x4c] sm:$0xf]
      %v163 = vld [vmem:[%s137 + $0x50] sm:$0x1]
      %v164 = vld [vmem:[%s137 + $0x54] sm:$0xf]
      %v165 = vld [vmem:[%s137 + $0x58] sm:$0xf]
      %v166 = vld [vmem:[%s137 + $0x5c] sm:$0x1]
      %v167 = vld [vmem:[%s137 + $0x60] sm:$0xf]
      %v168 = vld [vmem:[%s137 + $0x64] sm:$0xf]
      %v169 = vld [vmem:[%s137 + $0x68] sm:$0x1]
      %v170 = vld [vmem:[%s137 + $0x6c] sm:$0xf]
      %v171 = vld [vmem:[%s137 + $0x70] sm:$0xf]
      %v172 = vld [vmem:[%s137 + $0x74] sm:$0x1]
      %v173 = vld [vmem:[%s137 + $0x78] sm:$0xf]
      %v174 = vld [vmem:[%s137 + $0x7c] sm:$0xf]
      %v175 = vld [vmem:[%s137 + $0x80] sm:$0x1]
      %v176 = vld [vmem:[%s137 + $0x84] sm:$0xf]
      %v177 = vld [vmem:[%s137 + $0x88] sm:$0xf]
      %v178 = vld [vmem:[%s137 + $0x8c] sm:$0x1]
      %v179 = vld [vmem:[%s137 + $0x90] sm:$0xf]
      %v180 = vld [vmem:[%s137 + $0x94] sm:$0xf]
      %v181 = vld [vmem:[%s137 + $0x98] sm:$0x1]
      %v182 = vld [vmem:[%s137 + $0x9c] sm:$0xf]
      %v183 = vld [vmem:[%s137 + $0xa0] sm:$0xf]
      %v184 = vld [vmem:[%s137 + $0xa4] sm:$0x1]
      %v185 = vld [vmem:[%s137 + $0xa8] sm:$0xf]
      %v186 = vld [vmem:[%s137 + $0xac] sm:$0xf]
      %v187 = vld [vmem:[%s137 + $0xb0] sm:$0x1]
      %v188 = vld [vmem:[%s137 + $0xb4] sm:$0xf]
      %v189 = vld [vmem:[%s137 + $0xb8] sm:$0xf]
      %v190 = vld [vmem:[%s137 + $0xbc] sm:$0x1]
      %v191 = vld [vmem:[%s137 + $0xc0] sm:$0xf]
      %v192 = vld [vmem:[%s137 + $0xc4] sm:$0xf]
      %v193 = vld [vmem:[%s137 + $0xc8] sm:$0x1]
      %v194 = vld [vmem:[%s137 + $0xcc] sm:$0xf]
      %v195 = vld [vmem:[%s137 + $0xd0] sm:$0xf]
      %v196 = vld [vmem:[%s137 + $0xd4] sm:$0x1]
      %v197 = vunpack.c.l.bf16 %v143
      %v198 = vunpack.c.l.bf16 %v144
      %v199 = vunpack.c.l.bf16 %v145
      %v200 = vunpack.c.l.bf16 %v146
      %v201 = vunpack.c.l.bf16 %v147
      %v202 = vunpack.c.l.bf16 %v148
      %v203 = vunpack.c.l.bf16 %v149
      %v204 = vunpack.c.l.bf16 %v150
      %v205 = vunpack.c.l.bf16 %v151
      %v206 = vunpack.c.l.bf16 %v152
      %v207 = vunpack.c.l.bf16 %v153
      %v208 = vunpack.c.l.bf16 %v154
      %v209 = vunpack.c.l.bf16 %v155
      %v210 = vunpack.c.l.bf16 %v156
      %v211 = vunpack.c.l.bf16 %v157
      %v212 = vunpack.c.l.bf16 %v158
      %v213 = vunpack.c.l.bf16 %v159
      %v214 = vunpack.c.l.bf16 %v160
      %v215 = vunpack.c.l.bf16 %v161
      %v216 = vunpack.c.l.bf16 %v162
      %v217 = vunpack.c.l.bf16 %v163
      %v218 = vunpack.c.l.bf16 %v164
      %v219 = vunpack.c.l.bf16 %v165
      %v220 = vunpack.c.l.bf16 %v166
      %v221 = vunpack.c.l.bf16 %v167
      %v222 = vunpack.c.l.bf16 %v168
      %v223 = vunpack.c.l.bf16 %v169
      %v224 = vunpack.c.l.bf16 %v170
      %v225 = vunpack.c.l.bf16 %v171
      %v226 = vunpack.c.l.bf16 %v172
      %v227 = vunpack.c.l.bf16 %v173
      %v228 = vunpack.c.l.bf16 %v174
      %v229 = vunpack.c.l.bf16 %v175
      %v230 = vunpack.c.l.bf16 %v176
      %v231 = vunpack.c.l.bf16 %v177
      %v232 = vunpack.c.l.bf16 %v178
      %v233 = vunpack.c.l.bf16 %v179
      %v234 = vunpack.c.l.bf16 %v180
      %v235 = vunpack.c.l.bf16 %v181
      %v236 = vunpack.c.l.bf16 %v182
      %v237 = vunpack.c.l.bf16 %v183
      %v238 = vunpack.c.l.bf16 %v184
      %v239 = vunpack.c.l.bf16 %v185
      %v240 = vunpack.c.l.bf16 %v186
      %v241 = vunpack.c.l.bf16 %v187
      %v242 = vunpack.c.l.bf16 %v188
      %v243 = vunpack.c.l.bf16 %v189
      %v244 = vunpack.c.l.bf16 %v190
      %v245 = vunpack.c.l.bf16 %v191
      %v246 = vunpack.c.l.bf16 %v192
      %v247 = vunpack.c.l.bf16 %v193
      %v248 = vunpack.c.l.bf16 %v194
      %v249 = vunpack.c.l.bf16 %v195
      %v250 = vunpack.c.l.bf16 %v196
      %vm299 = vcmask 1046528
      %v300 = vrot.slane %v197, 1
      %v301 = vrot.slane %v198, 1
      %v302 = vsel %vm299, %v300, %v301
      %v303 = vrot.slane %v199, 1
      %v304 = vsel %vm299, %v301, %v303
      %v305 = vrot.slane %v200, 1
      %v306 = vrot.slane %v201, 1
      %v307 = vsel %vm299, %v305, %v306
      %v308 = vrot.slane %v202, 1
      %v309 = vsel %vm299, %v306, %v308
      %v310 = vrot.slane %v203, 1
      %v311 = vrot.slane %v204, 1
      %v312 = vsel %vm299, %v310, %v311
      %v313 = vrot.slane %v205, 1
      %v314 = vsel %vm299, %v311, %v313
      %v315 = vrot.slane %v206, 1
      %v316 = vrot.slane %v207, 1
      %v317 = vsel %vm299, %v315, %v316
      %v318 = vrot.slane %v208, 1
      %v319 = vsel %vm299, %v316, %v318
      %v320 = vrot.slane %v209, 1
      %v321 = vrot.slane %v210, 1
      %v322 = vsel %vm299, %v320, %v321
      %v323 = vrot.slane %v211, 1
      %v324 = vsel %vm299, %v321, %v323
      %v325 = vrot.slane %v212, 1
      %v326 = vrot.slane %v213, 1
      %v327 = vsel %vm299, %v325, %v326
      %v328 = vrot.slane %v214, 1
      %v329 = vsel %vm299, %v326, %v328
      %v330 = vrot.slane %v215, 1
      %v331 = vrot.slane %v216, 1
      %v332 = vsel %vm299, %v330, %v331
      %v333 = vrot.slane %v217, 1
      %v334 = vsel %vm299, %v331, %v333
      %v335 = vrot.slane %v218, 1
      %v336 = vrot.slane %v219, 1
      %v337 = vsel %vm299, %v335, %v336
      %v338 = vrot.slane %v220, 1
      %v339 = vsel %vm299, %v336, %v338
      %v340 = vrot.slane %v221, 1
      %v341 = vrot.slane %v222, 1
      %v342 = vsel %vm299, %v340, %v341
      %v343 = vrot.slane %v223, 1
      %v344 = vsel %vm299, %v341, %v343
      %v345 = vrot.slane %v224, 1
      %v346 = vrot.slane %v225, 1
      %v347 = vsel %vm299, %v345, %v346
      %v348 = vrot.slane %v226, 1
      %v349 = vsel %vm299, %v346, %v348
      %v350 = vrot.slane %v227, 1
      %v351 = vrot.slane %v228, 1
      %v352 = vsel %vm299, %v350, %v351
      %v353 = vrot.slane %v229, 1
      %v354 = vsel %vm299, %v351, %v353
      %v355 = vrot.slane %v230, 1
      %v356 = vrot.slane %v231, 1
      %v357 = vsel %vm299, %v355, %v356
      %v358 = vrot.slane %v232, 1
      %v359 = vsel %vm299, %v356, %v358
      %v360 = vrot.slane %v233, 1
      %v361 = vrot.slane %v234, 1
      %v362 = vsel %vm299, %v360, %v361
      %v363 = vrot.slane %v235, 1
      %v364 = vsel %vm299, %v361, %v363
      %v365 = vrot.slane %v236, 1
      %v366 = vrot.slane %v237, 1
      %v367 = vsel %vm299, %v365, %v366
      %v368 = vrot.slane %v238, 1
      %v369 = vsel %vm299, %v366, %v368
      %v370 = vrot.slane %v239, 1
      %v371 = vrot.slane %v240, 1
      %v372 = vsel %vm299, %v370, %v371
      %v373 = vrot.slane %v241, 1
      %v374 = vsel %vm299, %v371, %v373
      %v375 = vrot.slane %v242, 1
      %v376 = vrot.slane %v243, 1
      %v377 = vsel %vm299, %v375, %v376
      %v378 = vrot.slane %v244, 1
      %v379 = vsel %vm299, %v376, %v378
      %380 = vrot.lane.b32.xlu0 %v302, 8
      %v381 = vpop.permute.xlu0 %380
      %382 = vrot.lane.b32.xlu0 %v304, 8
      %v383 = vpop.permute.xlu0 %382
      %384 = vrot.lane.b32.xlu0 %v307, 8
      %v385 = vpop.permute.xlu0 %384
      %386 = vrot.lane.b32.xlu0 %v309, 8
      %v387 = vpop.permute.xlu0 %386
      %388 = vrot.lane.b32.xlu0 %v312, 8
      %v389 = vpop.permute.xlu0 %388
      %390 = vrot.lane.b32.xlu0 %v314, 8
      %v391 = vpop.permute.xlu0 %390
      %392 = vrot.lane.b32.xlu0 %v317, 8
      %v393 = vpop.permute.xlu0 %392
      %394 = vrot.lane.b32.xlu0 %v319, 8
      %v395 = vpop.permute.xlu0 %394
      %396 = vrot.lane.b32.xlu0 %v322, 8
      %v397 = vpop.permute.xlu0 %396
      %398 = vrot.lane.b32.xlu0 %v324, 8
      %v399 = vpop.permute.xlu0 %398
      %400 = vrot.lane.b32.xlu0 %v327, 8
      %v401 = vpop.permute.xlu0 %400
      %402 = vrot.lane.b32.xlu0 %v329, 8
      %v403 = vpop.permute.xlu0 %402
      %404 = vrot.lane.b32.xlu0 %v332, 8
      %v405 = vpop.permute.xlu0 %404
      %406 = vrot.lane.b32.xlu0 %v334, 8
      %v407 = vpop.permute.xlu0 %406
      %408 = vrot.lane.b32.xlu0 %v337, 8
      %v409 = vpop.permute.xlu0 %408
      %410 = vrot.lane.b32.xlu0 %v339, 8
      %v411 = vpop.permute.xlu0 %410
      %412 = vrot.lane.b32.xlu0 %v342, 8
      %v413 = vpop.permute.xlu0 %412
      %414 = vrot.lane.b32.xlu0 %v344, 8
      %v415 = vpop.permute.xlu0 %414
      %416 = vrot.lane.b32.xlu0 %v347, 8
      %v417 = vpop.permute.xlu0 %416
      %418 = vrot.lane.b32.xlu0 %v349, 8
      %v419 = vpop.permute.xlu0 %418
      %420 = vrot.lane.b32.xlu0 %v352, 8
      %v421 = vpop.permute.xlu0 %420
      %422 = vrot.lane.b32.xlu0 %v354, 8
      %v423 = vpop.permute.xlu0 %422
      %424 = vrot.lane.b32.xlu0 %v357, 8
      %v425 = vpop.permute.xlu0 %424
      %426 = vrot.lane.b32.xlu0 %v359, 8
      %v427 = vpop.permute.xlu0 %426
      %428 = vrot.lane.b32.xlu0 %v362, 8
      %v429 = vpop.permute.xlu0 %428
      %430 = vrot.lane.b32.xlu0 %v364, 8
      %v431 = vpop.permute.xlu0 %430
      %432 = vrot.lane.b32.xlu0 %v367, 8
      %v433 = vpop.permute.xlu0 %432
      %434 = vrot.lane.b32.xlu0 %v369, 8
      %v435 = vpop.permute.xlu0 %434
      %436 = vrot.lane.b32.xlu0 %v372, 8
      %v437 = vpop.permute.xlu0 %436
      %438 = vrot.lane.b32.xlu0 %v374, 8
      %v439 = vpop.permute.xlu0 %438
      %440 = vrot.lane.b32.xlu0 %v377, 8
      %v441 = vpop.permute.xlu0 %440
      %442 = vrot.lane.b32.xlu0 %v379, 8
      %v443 = vpop.permute.xlu0 %442
      %vm476 = vcmask 1045504
      %v477 = vrot.slane %v197, 2
      %v478 = vrot.slane %v198, 2
      %v479 = vsel %vm476, %v477, %v478
      %v480 = vrot.slane %v199, 2
      %v481 = vsel %vm476, %v478, %v480
      %v482 = vrot.slane %v200, 2
      %v483 = vrot.slane %v201, 2
      %v484 = vsel %vm476, %v482, %v483
      %v485 = vrot.slane %v202, 2
      %v486 = vsel %vm476, %v483, %v485
      %v487 = vrot.slane %v203, 2
      %v488 = vrot.slane %v204, 2
      %v489 = vsel %vm476, %v487, %v488
      %v490 = vrot.slane %v205, 2
      %v491 = vsel %vm476, %v488, %v490
      %v492 = vrot.slane %v206, 2
      %v493 = vrot.slane %v207, 2
      %v494 = vsel %vm476, %v492, %v493
      %v495 = vrot.slane %v208, 2
      %v496 = vsel %vm476, %v493, %v495
      %v497 = vrot.slane %v209, 2
      %v498 = vrot.slane %v210, 2
      %v499 = vsel %vm476, %v497, %v498
      %v500 = vrot.slane %v211, 2
      %v501 = vsel %vm476, %v498, %v500
      %v502 = vrot.slane %v212, 2
      %v503 = vrot.slane %v213, 2
      %v504 = vsel %vm476, %v502, %v503
      %v505 = vrot.slane %v214, 2
      %v506 = vsel %vm476, %v503, %v505
      %v507 = vrot.slane %v215, 2
      %v508 = vrot.slane %v216, 2
      %v509 = vsel %vm476, %v507, %v508
      %v510 = vrot.slane %v217, 2
      %v511 = vsel %vm476, %v508, %v510
      %v512 = vrot.slane %v218, 2
      %v513 = vrot.slane %v219, 2
      %v514 = vsel %vm476, %v512, %v513
      %v515 = vrot.slane %v220, 2
      %v516 = vsel %vm476, %v513, %v515
      %v517 = vrot.slane %v221, 2
      %v518 = vrot.slane %v222, 2
      %v519 = vsel %vm476, %v517, %v518
      %v520 = vrot.slane %v223, 2
      %v521 = vsel %vm476, %v518, %v520
      %v522 = vrot.slane %v224, 2
      %v523 = vrot.slane %v225, 2
      %v524 = vsel %vm476, %v522, %v523
      %v525 = vrot.slane %v226, 2
      %v526 = vsel %vm476, %v523, %v525
      %v527 = vrot.slane %v227, 2
      %v528 = vrot.slane %v228, 2
      %v529 = vsel %vm476, %v527, %v528
      %v530 = vrot.slane %v229, 2
      %v531 = vsel %vm476, %v528, %v530
      %v532 = vrot.slane %v230, 2
      %v533 = vrot.slane %v231, 2
      %v534 = vsel %vm476, %v532, %v533
      %v535 = vrot.slane %v232, 2
      %v536 = vsel %vm476, %v533, %v535
      %v537 = vrot.slane %v233, 2
      %v538 = vrot.slane %v234, 2
      %v539 = vsel %vm476, %v537, %v538
      %v540 = vrot.slane %v235, 2
      %v541 = vsel %vm476, %v538, %v540
      %v542 = vrot.slane %v236, 2
      %v543 = vrot.slane %v237, 2
      %v544 = vsel %vm476, %v542, %v543
      %v545 = vrot.slane %v238, 2
      %v546 = vsel %vm476, %v543, %v545
      %v547 = vrot.slane %v239, 2
      %v548 = vrot.slane %v240, 2
      %v549 = vsel %vm476, %v547, %v548
      %v550 = vrot.slane %v241, 2
      %v551 = vsel %vm476, %v548, %v550
      %v552 = vrot.slane %v242, 2
      %v553 = vrot.slane %v243, 2
      %v554 = vsel %vm476, %v552, %v553
      %v555 = vrot.slane %v244, 2
      %v556 = vsel %vm476, %v553, %v555
      %557 = vrot.lane.b32.xlu0 %v479, 16
      %v558 = vpop.permute.xlu0 %557
      %559 = vrot.lane.b32.xlu0 %v481, 16
      %v560 = vpop.permute.xlu0 %559
      %561 = vrot.lane.b32.xlu0 %v484, 16
      %v562 = vpop.permute.xlu0 %561
      %563 = vrot.lane.b32.xlu0 %v486, 16
      %v564 = vpop.permute.xlu0 %563
      %565 = vrot.lane.b32.xlu0 %v489, 16
      %v566 = vpop.permute.xlu0 %565
      %567 = vrot.lane.b32.xlu0 %v491, 16
      %v568 = vpop.permute.xlu0 %567
      %569 = vrot.lane.b32.xlu0 %v494, 16
      %v570 = vpop.permute.xlu0 %569
      %571 = vrot.lane.b32.xlu0 %v496, 16
      %v572 = vpop.permute.xlu0 %571
      %573 = vrot.lane.b32.xlu0 %v499, 16
      %v574 = vpop.permute.xlu0 %573
      %575 = vrot.lane.b32.xlu0 %v501, 16
      %v576 = vpop.permute.xlu0 %575
      %577 = vrot.lane.b32.xlu0 %v504, 16
      %v578 = vpop.permute.xlu0 %577
      %579 = vrot.lane.b32.xlu0 %v506, 16
      %v580 = vpop.permute.xlu0 %579
      %581 = vrot.lane.b32.xlu0 %v509, 16
      %v582 = vpop.permute.xlu0 %581
      %583 = vrot.lane.b32.xlu0 %v511, 16
      %v584 = vpop.permute.xlu0 %583
      %585 = vrot.lane.b32.xlu0 %v514, 16
      %v586 = vpop.permute.xlu0 %585
      %587 = vrot.lane.b32.xlu0 %v516, 16
      %v588 = vpop.permute.xlu0 %587
      %589 = vrot.lane.b32.xlu0 %v519, 16
      %v590 = vpop.permute.xlu0 %589
      %591 = vrot.lane.b32.xlu0 %v521, 16
      %v592 = vpop.permute.xlu0 %591
      %593 = vrot.lane.b32.xlu0 %v524, 16
      %v594 = vpop.permute.xlu0 %593
      %595 = vrot.lane.b32.xlu0 %v526, 16
      %v596 = vpop.permute.xlu0 %595
      %597 = vrot.lane.b32.xlu0 %v529, 16
      %v598 = vpop.permute.xlu0 %597
      %599 = vrot.lane.b32.xlu0 %v531, 16
      %v600 = vpop.permute.xlu0 %599
      %601 = vrot.lane.b32.xlu0 %v534, 16
      %v602 = vpop.permute.xlu0 %601
      %603 = vrot.lane.b32.xlu0 %v536, 16
      %v604 = vpop.permute.xlu0 %603
      %605 = vrot.lane.b32.xlu0 %v539, 16
      %v606 = vpop.permute.xlu0 %605
      %607 = vrot.lane.b32.xlu0 %v541, 16
      %v608 = vpop.permute.xlu0 %607
      %609 = vrot.lane.b32.xlu0 %v544, 16
      %v610 = vpop.permute.xlu0 %609
      %611 = vrot.lane.b32.xlu0 %v546, 16
      %v612 = vpop.permute.xlu0 %611
      %613 = vrot.lane.b32.xlu0 %v549, 16
      %v614 = vpop.permute.xlu0 %613
      %615 = vrot.lane.b32.xlu0 %v551, 16
      %v616 = vpop.permute.xlu0 %615
      %617 = vrot.lane.b32.xlu0 %v554, 16
      %v618 = vpop.permute.xlu0 %617
      %619 = vrot.lane.b32.xlu0 %v556, 16
      %v620 = vpop.permute.xlu0 %619
      %655 = vrot.lane.b32.xlu0 %v200, 24
      %v656 = vpop.permute.xlu0 %655
      %657 = vrot.lane.b32.xlu0 %v201, 24
      %v658 = vpop.permute.xlu0 %657
      %659 = vrot.lane.b32.xlu0 %v203, 24
      %v660 = vpop.permute.xlu0 %659
      %661 = vrot.lane.b32.xlu0 %v204, 24
      %v662 = vpop.permute.xlu0 %661
      %663 = vrot.lane.b32.xlu0 %v206, 24
      %v664 = vpop.permute.xlu0 %663
      %665 = vrot.lane.b32.xlu0 %v207, 24
      %v666 = vpop.permute.xlu0 %665
      %667 = vrot.lane.b32.xlu0 %v209, 24
      %v668 = vpop.permute.xlu0 %667
      %669 = vrot.lane.b32.xlu0 %v210, 24
      %v670 = vpop.permute.xlu0 %669
      %671 = vrot.lane.b32.xlu0 %v212, 24
      %v672 = vpop.permute.xlu0 %671
      %673 = vrot.lane.b32.xlu0 %v213, 24
      %v674 = vpop.permute.xlu0 %673
      %675 = vrot.lane.b32.xlu0 %v215, 24
      %v676 = vpop.permute.xlu0 %675
      %677 = vrot.lane.b32.xlu0 %v216, 24
      %v678 = vpop.permute.xlu0 %677
      %679 = vrot.lane.b32.xlu0 %v218, 24
      %v680 = vpop.permute.xlu0 %679
      %681 = vrot.lane.b32.xlu0 %v219, 24
      %v682 = vpop.permute.xlu0 %681
      %683 = vrot.lane.b32.xlu0 %v221, 24
      %v684 = vpop.permute.xlu0 %683
      %685 = vrot.lane.b32.xlu0 %v222, 24
      %v686 = vpop.permute.xlu0 %685
      %687 = vrot.lane.b32.xlu0 %v224, 24
      %v688 = vpop.permute.xlu0 %687
      %689 = vrot.lane.b32.xlu0 %v225, 24
      %v690 = vpop.permute.xlu0 %689
      %691 = vrot.lane.b32.xlu0 %v227, 24
      %v692 = vpop.permute.xlu0 %691
      %693 = vrot.lane.b32.xlu0 %v228, 24
      %v694 = vpop.permute.xlu0 %693
      %695 = vrot.lane.b32.xlu0 %v230, 24
      %v696 = vpop.permute.xlu0 %695
      %697 = vrot.lane.b32.xlu0 %v231, 24
      %v698 = vpop.permute.xlu0 %697
      %699 = vrot.lane.b32.xlu0 %v233, 24
      %v700 = vpop.permute.xlu0 %699
      %701 = vrot.lane.b32.xlu0 %v234, 24
      %v702 = vpop.permute.xlu0 %701
      %703 = vrot.lane.b32.xlu0 %v236, 24
      %v704 = vpop.permute.xlu0 %703
      %705 = vrot.lane.b32.xlu0 %v237, 24
      %v706 = vpop.permute.xlu0 %705
      %707 = vrot.lane.b32.xlu0 %v239, 24
      %v708 = vpop.permute.xlu0 %707
      %709 = vrot.lane.b32.xlu0 %v240, 24
      %v710 = vpop.permute.xlu0 %709
      %711 = vrot.lane.b32.xlu0 %v242, 24
      %v712 = vpop.permute.xlu0 %711
      %713 = vrot.lane.b32.xlu0 %v243, 24
      %v714 = vpop.permute.xlu0 %713
      %715 = vrot.lane.b32.xlu0 %v245, 24
      %v716 = vpop.permute.xlu0 %715
      %717 = vrot.lane.b32.xlu0 %v246, 24
      %v718 = vpop.permute.xlu0 %717
      %v752 = vrot.slane %v245, 1
      %v753 = vrot.slane %v246, 1
      %v754 = vsel %vm299, %v752, %v753
      %v755 = vrot.slane %v247, 1
      %v756 = vsel %vm299, %v753, %v755
      %757 = vrot.lane.b32.xlu0 %v307, 32
      %v758 = vpop.permute.xlu0 %757
      %759 = vrot.lane.b32.xlu0 %v309, 32
      %v760 = vpop.permute.xlu0 %759
      %761 = vrot.lane.b32.xlu0 %v312, 32
      %v762 = vpop.permute.xlu0 %761
      %763 = vrot.lane.b32.xlu0 %v314, 32
      %v764 = vpop.permute.xlu0 %763
      %765 = vrot.lane.b32.xlu0 %v317, 32
      %v766 = vpop.permute.xlu0 %765
      %767 = vrot.lane.b32.xlu0 %v319, 32
      %v768 = vpop.permute.xlu0 %767
      %769 = vrot.lane.b32.xlu0 %v322, 32
      %v770 = vpop.permute.xlu0 %769
      %771 = vrot.lane.b32.xlu0 %v324, 32
      %v772 = vpop.permute.xlu0 %771
      %773 = vrot.lane.b32.xlu0 %v327, 32
      %v774 = vpop.permute.xlu0 %773
      %775 = vrot.lane.b32.xlu0 %v329, 32
      %v776 = vpop.permute.xlu0 %775
      %777 = vrot.lane.b32.xlu0 %v332, 32
      %v778 = vpop.permute.xlu0 %777
      %779 = vrot.lane.b32.xlu0 %v334, 32
      %v780 = vpop.permute.xlu0 %779
      %781 = vrot.lane.b32.xlu0 %v337, 32
      %v782 = vpop.permute.xlu0 %781
      %783 = vrot.lane.b32.xlu0 %v339, 32
      %v784 = vpop.permute.xlu0 %783
      %785 = vrot.lane.b32.xlu0 %v342, 32
      %v786 = vpop.permute.xlu0 %785
      %787 = vrot.lane.b32.xlu0 %v344, 32
      %v788 = vpop.permute.xlu0 %787
      %789 = vrot.lane.b32.xlu0 %v347, 32
      %v790 = vpop.permute.xlu0 %789
      %791 = vrot.lane.b32.xlu0 %v349, 32
      %v792 = vpop.permute.xlu0 %791
      %793 = vrot.lane.b32.xlu0 %v352, 32
      %v794 = vpop.permute.xlu0 %793
      %795 = vrot.lane.b32.xlu0 %v354, 32
      %v796 = vpop.permute.xlu0 %795
      %797 = vrot.lane.b32.xlu0 %v357, 32
      %v798 = vpop.permute.xlu0 %797
      %799 = vrot.lane.b32.xlu0 %v359, 32
      %v800 = vpop.permute.xlu0 %799
      %801 = vrot.lane.b32.xlu0 %v362, 32
      %v802 = vpop.permute.xlu0 %801
      %803 = vrot.lane.b32.xlu0 %v364, 32
      %v804 = vpop.permute.xlu0 %803
      %805 = vrot.lane.b32.xlu0 %v367, 32
      %v806 = vpop.permute.xlu0 %805
      %807 = vrot.lane.b32.xlu0 %v369, 32
      %v808 = vpop.permute.xlu0 %807
      %809 = vrot.lane.b32.xlu0 %v372, 32
      %v810 = vpop.permute.xlu0 %809
      %811 = vrot.lane.b32.xlu0 %v374, 32
      %v812 = vpop.permute.xlu0 %811
      %813 = vrot.lane.b32.xlu0 %v377, 32
      %v814 = vpop.permute.xlu0 %813
      %815 = vrot.lane.b32.xlu0 %v379, 32
      %v816 = vpop.permute.xlu0 %815
      %817 = vrot.lane.b32.xlu0 %v754, 32
      %v818 = vpop.permute.xlu0 %817
      %819 = vrot.lane.b32.xlu0 %v756, 32
      %v820 = vpop.permute.xlu0 %819
      %v853 = vrot.slane %v245, 2
      %v854 = vrot.slane %v246, 2
      %v855 = vsel %vm476, %v853, %v854
      %v856 = vrot.slane %v247, 2
      %v857 = vsel %vm476, %v854, %v856
      %858 = vrot.lane.b32.xlu0 %v484, 40
      %v859 = vpop.permute.xlu0 %858
      %860 = vrot.lane.b32.xlu0 %v486, 40
      %v861 = vpop.permute.xlu0 %860
      %862 = vrot.lane.b32.xlu0 %v489, 40
      %v863 = vpop.permute.xlu0 %862
      %864 = vrot.lane.b32.xlu0 %v491, 40
      %v865 = vpop.permute.xlu0 %864
      %866 = vrot.lane.b32.xlu0 %v494, 40
      %v867 = vpop.permute.xlu0 %866
      %868 = vrot.lane.b32.xlu0 %v496, 40
      %v869 = vpop.permute.xlu0 %868
      %870 = vrot.lane.b32.xlu0 %v499, 40
      %v871 = vpop.permute.xlu0 %870
      %872 = vrot.lane.b32.xlu0 %v501, 40
      %v873 = vpop.permute.xlu0 %872
      %874 = vrot.lane.b32.xlu0 %v504, 40
      %v875 = vpop.permute.xlu0 %874
      %876 = vrot.lane.b32.xlu0 %v506, 40
      %v877 = vpop.permute.xlu0 %876
      %878 = vrot.lane.b32.xlu0 %v509, 40
      %v879 = vpop.permute.xlu0 %878
      %880 = vrot.lane.b32.xlu0 %v511, 40
      %v881 = vpop.permute.xlu0 %880
      %882 = vrot.lane.b32.xlu0 %v514, 40
      %v883 = vpop.permute.xlu0 %882
      %884 = vrot.lane.b32.xlu0 %v516, 40
      %v885 = vpop.permute.xlu0 %884
      %886 = vrot.lane.b32.xlu0 %v519, 40
      %v887 = vpop.permute.xlu0 %886
      %888 = vrot.lane.b32.xlu0 %v521, 40
      %v889 = vpop.permute.xlu0 %888
      %890 = vrot.lane.b32.xlu0 %v524, 40
      %v891 = vpop.permute.xlu0 %890
      %892 = vrot.lane.b32.xlu0 %v526, 40
      %v893 = vpop.permute.xlu0 %892
      %894 = vrot.lane.b32.xlu0 %v529, 40
      %v895 = vpop.permute.xlu0 %894
      %896 = vrot.lane.b32.xlu0 %v531, 40
      %v897 = vpop.permute.xlu0 %896
      %898 = vrot.lane.b32.xlu0 %v534, 40
      %v899 = vpop.permute.xlu0 %898
      %900 = vrot.lane.b32.xlu0 %v536, 40
      %v901 = vpop.permute.xlu0 %900
      %902 = vrot.lane.b32.xlu0 %v539, 40
      %v903 = vpop.permute.xlu0 %902
      %904 = vrot.lane.b32.xlu0 %v541, 40
      %v905 = vpop.permute.xlu0 %904
      %906 = vrot.lane.b32.xlu0 %v544, 40
      %v907 = vpop.permute.xlu0 %906
      %908 = vrot.lane.b32.xlu0 %v546, 40
      %v909 = vpop.permute.xlu0 %908
      %910 = vrot.lane.b32.xlu0 %v549, 40
      %v911 = vpop.permute.xlu0 %910
      %912 = vrot.lane.b32.xlu0 %v551, 40
      %v913 = vpop.permute.xlu0 %912
      %914 = vrot.lane.b32.xlu0 %v554, 40
      %v915 = vpop.permute.xlu0 %914
      %916 = vrot.lane.b32.xlu0 %v556, 40
      %v917 = vpop.permute.xlu0 %916
      %918 = vrot.lane.b32.xlu0 %v855, 40
      %v919 = vpop.permute.xlu0 %918
      %920 = vrot.lane.b32.xlu0 %v857, 40
      %v921 = vpop.permute.xlu0 %920
      %956 = vrot.lane.b32.xlu0 %v203, 48
      %v957 = vpop.permute.xlu0 %956
      %958 = vrot.lane.b32.xlu0 %v204, 48
      %v959 = vpop.permute.xlu0 %958
      %960 = vrot.lane.b32.xlu0 %v206, 48
      %v961 = vpop.permute.xlu0 %960
      %962 = vrot.lane.b32.xlu0 %v207, 48
      %v963 = vpop.permute.xlu0 %962
      %964 = vrot.lane.b32.xlu0 %v209, 48
      %v965 = vpop.permute.xlu0 %964
      %966 = vrot.lane.b32.xlu0 %v210, 48
      %v967 = vpop.permute.xlu0 %966
      %968 = vrot.lane.b32.xlu0 %v212, 48
      %v969 = vpop.permute.xlu0 %968
      %970 = vrot.lane.b32.xlu0 %v213, 48
      %v971 = vpop.permute.xlu0 %970
      %972 = vrot.lane.b32.xlu0 %v215, 48
      %v973 = vpop.permute.xlu0 %972
      %974 = vrot.lane.b32.xlu0 %v216, 48
      %v975 = vpop.permute.xlu0 %974
      %976 = vrot.lane.b32.xlu0 %v218, 48
      %v977 = vpop.permute.xlu0 %976
      %978 = vrot.lane.b32.xlu0 %v219, 48
      %v979 = vpop.permute.xlu0 %978
      %980 = vrot.lane.b32.xlu0 %v221, 48
      %v981 = vpop.permute.xlu0 %980
      %982 = vrot.lane.b32.xlu0 %v222, 48
      %v983 = vpop.permute.xlu0 %982
      %984 = vrot.lane.b32.xlu0 %v224, 48
      %v985 = vpop.permute.xlu0 %984
      %986 = vrot.lane.b32.xlu0 %v225, 48
      %v987 = vpop.permute.xlu0 %986
      %988 = vrot.lane.b32.xlu0 %v227, 48
      %v989 = vpop.permute.xlu0 %988
      %990 = vrot.lane.b32.xlu0 %v228, 48
      %v991 = vpop.permute.xlu0 %990
      %992 = vrot.lane.b32.xlu0 %v230, 48
      %v993 = vpop.permute.xlu0 %992
      %994 = vrot.lane.b32.xlu0 %v231, 48
      %v995 = vpop.permute.xlu0 %994
      %996 = vrot.lane.b32.xlu0 %v233, 48
      %v997 = vpop.permute.xlu0 %996
      %998 = vrot.lane.b32.xlu0 %v234, 48
      %v999 = vpop.permute.xlu0 %998
      %1000 = vrot.lane.b32.xlu0 %v236, 48
      %v1001 = vpop.permute.xlu0 %1000
      %1002 = vrot.lane.b32.xlu0 %v237, 48
      %v1003 = vpop.permute.xlu0 %1002
      %1004 = vrot.lane.b32.xlu0 %v239, 48
      %v1005 = vpop.permute.xlu0 %1004
      %1006 = vrot.lane.b32.xlu0 %v240, 48
      %v1007 = vpop.permute.xlu0 %1006
      %1008 = vrot.lane.b32.xlu0 %v242, 48
      %v1009 = vpop.permute.xlu0 %1008
      %1010 = vrot.lane.b32.xlu0 %v243, 48
      %v1011 = vpop.permute.xlu0 %1010
      %1012 = vrot.lane.b32.xlu0 %v245, 48
      %v1013 = vpop.permute.xlu0 %1012
      %1014 = vrot.lane.b32.xlu0 %v246, 48
      %v1015 = vpop.permute.xlu0 %1014
      %1016 = vrot.lane.b32.xlu0 %v248, 48
      %v1017 = vpop.permute.xlu0 %1016
      %1018 = vrot.lane.b32.xlu0 %v249, 48
      %v1019 = vpop.permute.xlu0 %1018
      %v1053 = vrot.slane %v248, 1
      %v1054 = vrot.slane %v249, 1
      %v1055 = vsel %vm299, %v1053, %v1054
      %v1056 = vrot.slane %v250, 1
      %v1057 = vsel %vm299, %v1054, %v1056
      %1058 = vrot.lane.b32.xlu0 %v312, 56
      %v1059 = vpop.permute.xlu0 %1058
      %1060 = vrot.lane.b32.xlu0 %v314, 56
      %v1061 = vpop.permute.xlu0 %1060
      %1062 = vrot.lane.b32.xlu0 %v317, 56
      %v1063 = vpop.permute.xlu0 %1062
      %1064 = vrot.lane.b32.xlu0 %v319, 56
      %v1065 = vpop.permute.xlu0 %1064
      %1066 = vrot.lane.b32.xlu0 %v322, 56
      %v1067 = vpop.permute.xlu0 %1066
      %1068 = vrot.lane.b32.xlu0 %v324, 56
      %v1069 = vpop.permute.xlu0 %1068
      %1070 = vrot.lane.b32.xlu0 %v327, 56
      %v1071 = vpop.permute.xlu0 %1070
      %1072 = vrot.lane.b32.xlu0 %v329, 56
      %v1073 = vpop.permute.xlu0 %1072
      %1074 = vrot.lane.b32.xlu0 %v332, 56
      %v1075 = vpop.permute.xlu0 %1074
      %1076 = vrot.lane.b32.xlu0 %v334, 56
      %v1077 = vpop.permute.xlu0 %1076
      %1078 = vrot.lane.b32.xlu0 %v337, 56
      %v1079 = vpop.permute.xlu0 %1078
      %1080 = vrot.lane.b32.xlu0 %v339, 56
      %v1081 = vpop.permute.xlu0 %1080
      %1082 = vrot.lane.b32.xlu0 %v342, 56
      %v1083 = vpop.permute.xlu0 %1082
      %1084 = vrot.lane.b32.xlu0 %v344, 56
      %v1085 = vpop.permute.xlu0 %1084
      %1086 = vrot.lane.b32.xlu0 %v347, 56
      %v1087 = vpop.permute.xlu0 %1086
      %1088 = vrot.lane.b32.xlu0 %v349, 56
      %v1089 = vpop.permute.xlu0 %1088
      %1090 = vrot.lane.b32.xlu0 %v352, 56
      %v1091 = vpop.permute.xlu0 %1090
      %1092 = vrot.lane.b32.xlu0 %v354, 56
      %v1093 = vpop.permute.xlu0 %1092
      %1094 = vrot.lane.b32.xlu0 %v357, 56
      %v1095 = vpop.permute.xlu0 %1094
      %1096 = vrot.lane.b32.xlu0 %v359, 56
      %v1097 = vpop.permute.xlu0 %1096
      %1098 = vrot.lane.b32.xlu0 %v362, 56
      %v1099 = vpop.permute.xlu0 %1098
      %1100 = vrot.lane.b32.xlu0 %v364, 56
      %v1101 = vpop.permute.xlu0 %1100
      %1102 = vrot.lane.b32.xlu0 %v367, 56
      %v1103 = vpop.permute.xlu0 %1102
      %1104 = vrot.lane.b32.xlu0 %v369, 56
      %v1105 = vpop.permute.xlu0 %1104
      %1106 = vrot.lane.b32.xlu0 %v372, 56
      %v1107 = vpop.permute.xlu0 %1106
      %1108 = vrot.lane.b32.xlu0 %v374, 56
      %v1109 = vpop.permute.xlu0 %1108
      %1110 = vrot.lane.b32.xlu0 %v377, 56
      %v1111 = vpop.permute.xlu0 %1110
      %1112 = vrot.lane.b32.xlu0 %v379, 56
      %v1113 = vpop.permute.xlu0 %1112
      %1114 = vrot.lane.b32.xlu0 %v754, 56
      %v1115 = vpop.permute.xlu0 %1114
      %1116 = vrot.lane.b32.xlu0 %v756, 56
      %v1117 = vpop.permute.xlu0 %1116
      %1118 = vrot.lane.b32.xlu0 %v1055, 56
      %v1119 = vpop.permute.xlu0 %1118
      %1120 = vrot.lane.b32.xlu0 %v1057, 56
      %v1121 = vpop.permute.xlu0 %1120
      %v1154 = vrot.slane %v248, 2
      %v1155 = vrot.slane %v249, 2
      %v1156 = vsel %vm476, %v1154, %v1155
      %v1157 = vrot.slane %v250, 2
      %v1158 = vsel %vm476, %v1155, %v1157
      %1159 = vrot.lane.b32.xlu0 %v489, 64
      %v1160 = vpop.permute.xlu0 %1159
      %1161 = vrot.lane.b32.xlu0 %v491, 64
      %v1162 = vpop.permute.xlu0 %1161
      %1163 = vrot.lane.b32.xlu0 %v494, 64
      %v1164 = vpop.permute.xlu0 %1163
      %1165 = vrot.lane.b32.xlu0 %v496, 64
      %v1166 = vpop.permute.xlu0 %1165
      %1167 = vrot.lane.b32.xlu0 %v499, 64
      %v1168 = vpop.permute.xlu0 %1167
      %1169 = vrot.lane.b32.xlu0 %v501, 64
      %v1170 = vpop.permute.xlu0 %1169
      %1171 = vrot.lane.b32.xlu0 %v504, 64
      %v1172 = vpop.permute.xlu0 %1171
      %1173 = vrot.lane.b32.xlu0 %v506, 64
      %v1174 = vpop.permute.xlu0 %1173
      %1175 = vrot.lane.b32.xlu0 %v509, 64
      %v1176 = vpop.permute.xlu0 %1175
      %1177 = vrot.lane.b32.xlu0 %v511, 64
      %v1178 = vpop.permute.xlu0 %1177
      %1179 = vrot.lane.b32.xlu0 %v514, 64
      %v1180 = vpop.permute.xlu0 %1179
      %1181 = vrot.lane.b32.xlu0 %v516, 64
      %v1182 = vpop.permute.xlu0 %1181
      %1183 = vrot.lane.b32.xlu0 %v519, 64
      %v1184 = vpop.permute.xlu0 %1183
      %1185 = vrot.lane.b32.xlu0 %v521, 64
      %v1186 = vpop.permute.xlu0 %1185
      %1187 = vrot.lane.b32.xlu0 %v524, 64
      %v1188 = vpop.permute.xlu0 %1187
      %1189 = vrot.lane.b32.xlu0 %v526, 64
      %v1190 = vpop.permute.xlu0 %1189
      %1191 = vrot.lane.b32.xlu0 %v529, 64
      %v1192 = vpop.permute.xlu0 %1191
      %1193 = vrot.lane.b32.xlu0 %v531, 64
      %v1194 = vpop.permute.xlu0 %1193
      %1195 = vrot.lane.b32.xlu0 %v534, 64
      %v1196 = vpop.permute.xlu0 %1195
      %1197 = vrot.lane.b32.xlu0 %v536, 64
      %v1198 = vpop.permute.xlu0 %1197
      %1199 = vrot.lane.b32.xlu0 %v539, 64
      %v1200 = vpop.permute.xlu0 %1199
      %1201 = vrot.lane.b32.xlu0 %v541, 64
      %v1202 = vpop.permute.xlu0 %1201
      %1203 = vrot.lane.b32.xlu0 %v544, 64
      %v1204 = vpop.permute.xlu0 %1203
      %1205 = vrot.lane.b32.xlu0 %v546, 64
      %v1206 = vpop.permute.xlu0 %1205
      %1207 = vrot.lane.b32.xlu0 %v549, 64
      %v1208 = vpop.permute.xlu0 %1207
      %1209 = vrot.lane.b32.xlu0 %v551, 64
      %v1210 = vpop.permute.xlu0 %1209
      %1211 = vrot.lane.b32.xlu0 %v554, 64
      %v1212 = vpop.permute.xlu0 %1211
      %1213 = vrot.lane.b32.xlu0 %v556, 64
      %v1214 = vpop.permute.xlu0 %1213
      %1215 = vrot.lane.b32.xlu0 %v855, 64
      %v1216 = vpop.permute.xlu0 %1215
      %1217 = vrot.lane.b32.xlu0 %v857, 64
      %v1218 = vpop.permute.xlu0 %1217
      %1219 = vrot.lane.b32.xlu0 %v1156, 64
      %v1220 = vpop.permute.xlu0 %1219
      %1221 = vrot.lane.b32.xlu0 %v1158, 64
      %v1222 = vpop.permute.xlu0 %1221
      %vm1255 = vcmask 64512
      %v1256 = vsel %vm1255, %v197, %v381
      %v1257 = vsel %vm1255, %v198, %v383
      %v1258 = vsel %vm1255, %v200, %v385
      %v1259 = vsel %vm1255, %v201, %v387
      %v1260 = vsel %vm1255, %v203, %v389
      %v1261 = vsel %vm1255, %v204, %v391
      %v1262 = vsel %vm1255, %v206, %v393
      %v1263 = vsel %vm1255, %v207, %v395
      %v1264 = vsel %vm1255, %v209, %v397
      %v1265 = vsel %vm1255, %v210, %v399
      %v1266 = vsel %vm1255, %v212, %v401
      %v1267 = vsel %vm1255, %v213, %v403
      %v1268 = vsel %vm1255, %v215, %v405
      %v1269 = vsel %vm1255, %v216, %v407
      %v1270 = vsel %vm1255, %v218, %v409
      %v1271 = vsel %vm1255, %v219, %v411
      %v1272 = vsel %vm1255, %v221, %v413
      %v1273 = vsel %vm1255, %v222, %v415
      %v1274 = vsel %vm1255, %v224, %v417
      %v1275 = vsel %vm1255, %v225, %v419
      %v1276 = vsel %vm1255, %v227, %v421
      %v1277 = vsel %vm1255, %v228, %v423
      %v1278 = vsel %vm1255, %v230, %v425
      %v1279 = vsel %vm1255, %v231, %v427
      %v1280 = vsel %vm1255, %v233, %v429
      %v1281 = vsel %vm1255, %v234, %v431
      %v1282 = vsel %vm1255, %v236, %v433
      %v1283 = vsel %vm1255, %v237, %v435
      %v1284 = vsel %vm1255, %v239, %v437
      %v1285 = vsel %vm1255, %v240, %v439
      %v1286 = vsel %vm1255, %v242, %v441
      %v1287 = vsel %vm1255, %v243, %v443
      %vm1288 = vcmask 130048
      %v1289 = vsel %vm1288, %v1256, %v558
      %v1290 = vsel %vm1288, %v1257, %v560
      %v1291 = vsel %vm1288, %v1258, %v562
      %v1292 = vsel %vm1288, %v1259, %v564
      %v1293 = vsel %vm1288, %v1260, %v566
      %v1294 = vsel %vm1288, %v1261, %v568
      %v1295 = vsel %vm1288, %v1262, %v570
      %v1296 = vsel %vm1288, %v1263, %v572
      %v1297 = vsel %vm1288, %v1264, %v574
      %v1298 = vsel %vm1288, %v1265, %v576
      %v1299 = vsel %vm1288, %v1266, %v578
      %v1300 = vsel %vm1288, %v1267, %v580
      %v1301 = vsel %vm1288, %v1268, %v582
      %v1302 = vsel %vm1288, %v1269, %v584
      %v1303 = vsel %vm1288, %v1270, %v586
      %v1304 = vsel %vm1288, %v1271, %v588
      %v1305 = vsel %vm1288, %v1272, %v590
      %v1306 = vsel %vm1288, %v1273, %v592
      %v1307 = vsel %vm1288, %v1274, %v594
      %v1308 = vsel %vm1288, %v1275, %v596
      %v1309 = vsel %vm1288, %v1276, %v598
      %v1310 = vsel %vm1288, %v1277, %v600
      %v1311 = vsel %vm1288, %v1278, %v602
      %v1312 = vsel %vm1288, %v1279, %v604
      %v1313 = vsel %vm1288, %v1280, %v606
      %v1314 = vsel %vm1288, %v1281, %v608
      %v1315 = vsel %vm1288, %v1282, %v610
      %v1316 = vsel %vm1288, %v1283, %v612
      %v1317 = vsel %vm1288, %v1284, %v614
      %v1318 = vsel %vm1288, %v1285, %v616
      %v1319 = vsel %vm1288, %v1286, %v618
      %v1320 = vsel %vm1288, %v1287, %v620
      %vm1321 = vcmask 195584
      %v1322 = vsel %vm1321, %v1289, %v656
      %v1323 = vsel %vm1321, %v1290, %v658
      %v1324 = vsel %vm1321, %v1291, %v660
      %v1325 = vsel %vm1321, %v1292, %v662
      %v1326 = vsel %vm1321, %v1293, %v664
      %v1327 = vsel %vm1321, %v1294, %v666
      %v1328 = vsel %vm1321, %v1295, %v668
      %v1329 = vsel %vm1321, %v1296, %v670
      %v1330 = vsel %vm1321, %v1297, %v672
      %v1331 = vsel %vm1321, %v1298, %v674
      %v1332 = vsel %vm1321, %v1299, %v676
      %v1333 = vsel %vm1321, %v1300, %v678
      %v1334 = vsel %vm1321, %v1301, %v680
      %v1335 = vsel %vm1321, %v1302, %v682
      %v1336 = vsel %vm1321, %v1303, %v684
      %v1337 = vsel %vm1321, %v1304, %v686
      %v1338 = vsel %vm1321, %v1305, %v688
      %v1339 = vsel %vm1321, %v1306, %v690
      %v1340 = vsel %vm1321, %v1307, %v692
      %v1341 = vsel %vm1321, %v1308, %v694
      %v1342 = vsel %vm1321, %v1309, %v696
      %v1343 = vsel %vm1321, %v1310, %v698
      %v1344 = vsel %vm1321, %v1311, %v700
      %v1345 = vsel %vm1321, %v1312, %v702
      %v1346 = vsel %vm1321, %v1313, %v704
      %v1347 = vsel %vm1321, %v1314, %v706
      %v1348 = vsel %vm1321, %v1315, %v708
      %v1349 = vsel %vm1321, %v1316, %v710
      %v1350 = vsel %vm1321, %v1317, %v712
      %v1351 = vsel %vm1321, %v1318, %v714
      %v1352 = vsel %vm1321, %v1319, %v716
      %v1353 = vsel %vm1321, %v1320, %v718
      %vm1354 = vcmask 261120
      %v1355 = vsel %vm1354, %v1322, %v758
      %v1356 = vsel %vm1354, %v1323, %v760
      %v1357 = vsel %vm1354, %v1324, %v762
      %v1358 = vsel %vm1354, %v1325, %v764
      %v1359 = vsel %vm1354, %v1326, %v766
      %v1360 = vsel %vm1354, %v1327, %v768
      %v1361 = vsel %vm1354, %v1328, %v770
      %v1362 = vsel %vm1354, %v1329, %v772
      %v1363 = vsel %vm1354, %v1330, %v774
      %v1364 = vsel %vm1354, %v1331, %v776
      %v1365 = vsel %vm1354, %v1332, %v778
      %v1366 = vsel %vm1354, %v1333, %v780
      %v1367 = vsel %vm1354, %v1334, %v782
      %v1368 = vsel %vm1354, %v1335, %v784
      %v1369 = vsel %vm1354, %v1336, %v786
      %v1370 = vsel %vm1354, %v1337, %v788
      %v1371 = vsel %vm1354, %v1338, %v790
      %v1372 = vsel %vm1354, %v1339, %v792
      %v1373 = vsel %vm1354, %v1340, %v794
      %v1374 = vsel %vm1354, %v1341, %v796
      %v1375 = vsel %vm1354, %v1342, %v798
      %v1376 = vsel %vm1354, %v1343, %v800
      %v1377 = vsel %vm1354, %v1344, %v802
      %v1378 = vsel %vm1354, %v1345, %v804
      %v1379 = vsel %vm1354, %v1346, %v806
      %v1380 = vsel %vm1354, %v1347, %v808
      %v1381 = vsel %vm1354, %v1348, %v810
      %v1382 = vsel %vm1354, %v1349, %v812
      %v1383 = vsel %vm1354, %v1350, %v814
      %v1384 = vsel %vm1354, %v1351, %v816
      %v1385 = vsel %vm1354, %v1352, %v818
      %v1386 = vsel %vm1354, %v1353, %v820
      %vm1387 = vcmask 326656
      %v1388 = vsel %vm1387, %v1355, %v859
      %v1389 = vsel %vm1387, %v1356, %v861
      %v1390 = vsel %vm1387, %v1357, %v863
      %v1391 = vsel %vm1387, %v1358, %v865
      %v1392 = vsel %vm1387, %v1359, %v867
      %v1393 = vsel %vm1387, %v1360, %v869
      %v1394 = vsel %vm1387, %v1361, %v871
      %v1395 = vsel %vm1387, %v1362, %v873
      %v1396 = vsel %vm1387, %v1363, %v875
      %v1397 = vsel %vm1387, %v1364, %v877
      %v1398 = vsel %vm1387, %v1365, %v879
      %v1399 = vsel %vm1387, %v1366, %v881
      %v1400 = vsel %vm1387, %v1367, %v883
      %v1401 = vsel %vm1387, %v1368, %v885
      %v1402 = vsel %vm1387, %v1369, %v887
      %v1403 = vsel %vm1387, %v1370, %v889
      %v1404 = vsel %vm1387, %v1371, %v891
      %v1405 = vsel %vm1387, %v1372, %v893
      %v1406 = vsel %vm1387, %v1373, %v895
      %v1407 = vsel %vm1387, %v1374, %v897
      %v1408 = vsel %vm1387, %v1375, %v899
      %v1409 = vsel %vm1387, %v1376, %v901
      %v1410 = vsel %vm1387, %v1377, %v903
      %v1411 = vsel %vm1387, %v1378, %v905
      %v1412 = vsel %vm1387, %v1379, %v907
      %v1413 = vsel %vm1387, %v1380, %v909
      %v1414 = vsel %vm1387, %v1381, %v911
      %v1415 = vsel %vm1387, %v1382, %v913
      %v1416 = vsel %vm1387, %v1383, %v915
      %v1417 = vsel %vm1387, %v1384, %v917
      %v1418 = vsel %vm1387, %v1385, %v919
      %v1419 = vsel %vm1387, %v1386, %v921
      %vm1420 = vcmask 392192
      %v1421 = vsel %vm1420, %v1388, %v957
      %v1422 = vsel %vm1420, %v1389, %v959
      %v1423 = vsel %vm1420, %v1390, %v961
      %v1424 = vsel %vm1420, %v1391, %v963
      %v1425 = vsel %vm1420, %v1392, %v965
      %v1426 = vsel %vm1420, %v1393, %v967
      %v1427 = vsel %vm1420, %v1394, %v969
      %v1428 = vsel %vm1420, %v1395, %v971
      %v1429 = vsel %vm1420, %v1396, %v973
      %v1430 = vsel %vm1420, %v1397, %v975
      %v1431 = vsel %vm1420, %v1398, %v977
      %v1432 = vsel %vm1420, %v1399, %v979
      %v1433 = vsel %vm1420, %v1400, %v981
      %v1434 = vsel %vm1420, %v1401, %v983
      %v1435 = vsel %vm1420, %v1402, %v985
      %v1436 = vsel %vm1420, %v1403, %v987
      %v1437 = vsel %vm1420, %v1404, %v989
      %v1438 = vsel %vm1420, %v1405, %v991
      %v1439 = vsel %vm1420, %v1406, %v993
      %v1440 = vsel %vm1420, %v1407, %v995
      %v1441 = vsel %vm1420, %v1408, %v997
      %v1442 = vsel %vm1420, %v1409, %v999
      %v1443 = vsel %vm1420, %v1410, %v1001
      %v1444 = vsel %vm1420, %v1411, %v1003
      %v1445 = vsel %vm1420, %v1412, %v1005
      %v1446 = vsel %vm1420, %v1413, %v1007
      %v1447 = vsel %vm1420, %v1414, %v1009
      %v1448 = vsel %vm1420, %v1415, %v1011
      %v1449 = vsel %vm1420, %v1416, %v1013
      %v1450 = vsel %vm1420, %v1417, %v1015
      %v1451 = vsel %vm1420, %v1418, %v1017
      %v1452 = vsel %vm1420, %v1419, %v1019
      %vm1453 = vcmask 457728
      %v1454 = vsel %vm1453, %v1421, %v1059
      %v1455 = vsel %vm1453, %v1422, %v1061
      %v1456 = vsel %vm1453, %v1423, %v1063
      %v1457 = vsel %vm1453, %v1424, %v1065
      %v1458 = vsel %vm1453, %v1425, %v1067
      %v1459 = vsel %vm1453, %v1426, %v1069
      %v1460 = vsel %vm1453, %v1427, %v1071
      %v1461 = vsel %vm1453, %v1428, %v1073
      %v1462 = vsel %vm1453, %v1429, %v1075
      %v1463 = vsel %vm1453, %v1430, %v1077
      %v1464 = vsel %vm1453, %v1431, %v1079
      %v1465 = vsel %vm1453, %v1432, %v1081
      %v1466 = vsel %vm1453, %v1433, %v1083
      %v1467 = vsel %vm1453, %v1434, %v1085
      %v1468 = vsel %vm1453, %v1435, %v1087
      %v1469 = vsel %vm1453, %v1436, %v1089
      %v1470 = vsel %vm1453, %v1437, %v1091
      %v1471 = vsel %vm1453, %v1438, %v1093
      %v1472 = vsel %vm1453, %v1439, %v1095
      %v1473 = vsel %vm1453, %v1440, %v1097
      %v1474 = vsel %vm1453, %v1441, %v1099
      %v1475 = vsel %vm1453, %v1442, %v1101
      %v1476 = vsel %vm1453, %v1443, %v1103
      %v1477 = vsel %vm1453, %v1444, %v1105
      %v1478 = vsel %vm1453, %v1445, %v1107
      %v1479 = vsel %vm1453, %v1446, %v1109
      %v1480 = vsel %vm1453, %v1447, %v1111
      %v1481 = vsel %vm1453, %v1448, %v1113
      %v1482 = vsel %vm1453, %v1449, %v1115
      %v1483 = vsel %vm1453, %v1450, %v1117
      %v1484 = vsel %vm1453, %v1451, %v1119
      %v1485 = vsel %vm1453, %v1452, %v1121
      %vm1486 = vcmask 523264
      %v1487 = vsel %vm1486, %v1454, %v1160
      %v1488 = vsel %vm1486, %v1455, %v1162
      %v1489 = vsel %vm1486, %v1456, %v1164
      %v1490 = vsel %vm1486, %v1457, %v1166
      %v1491 = vsel %vm1486, %v1458, %v1168
      %v1492 = vsel %vm1486, %v1459, %v1170
      %v1493 = vsel %vm1486, %v1460, %v1172
      %v1494 = vsel %vm1486, %v1461, %v1174
      %v1495 = vsel %vm1486, %v1462, %v1176
      %v1496 = vsel %vm1486, %v1463, %v1178
      %v1497 = vsel %vm1486, %v1464, %v1180
      %v1498 = vsel %vm1486, %v1465, %v1182
      %v1499 = vsel %vm1486, %v1466, %v1184
      %v1500 = vsel %vm1486, %v1467, %v1186
      %v1501 = vsel %vm1486, %v1468, %v1188
      %v1502 = vsel %vm1486, %v1469, %v1190
      %v1503 = vsel %vm1486, %v1470, %v1192
      %v1504 = vsel %vm1486, %v1471, %v1194
      %v1505 = vsel %vm1486, %v1472, %v1196
      %v1506 = vsel %vm1486, %v1473, %v1198
      %v1507 = vsel %vm1486, %v1474, %v1200
      %v1508 = vsel %vm1486, %v1475, %v1202
      %v1509 = vsel %vm1486, %v1476, %v1204
      %v1510 = vsel %vm1486, %v1477, %v1206
      %v1511 = vsel %vm1486, %v1478, %v1208
      %v1512 = vsel %vm1486, %v1479, %v1210
      %v1513 = vsel %vm1486, %v1480, %v1212
      %v1514 = vsel %vm1486, %v1481, %v1214
      %v1515 = vsel %vm1486, %v1482, %v1216
      %v1516 = vsel %vm1486, %v1483, %v1218
      %v1517 = vsel %vm1486, %v1484, %v1220
      %v1518 = vsel %vm1486, %v1485, %v1222
      %v1519 = vpack.c.bf16 %v1488, %v1487
      %v1520 = vpack.c.bf16 %v1490, %v1489
      %v1521 = vpack.c.bf16 %v1492, %v1491
      %v1522 = vpack.c.bf16 %v1494, %v1493
      %v1523 = vpack.c.bf16 %v1496, %v1495
      %v1524 = vpack.c.bf16 %v1498, %v1497
      %v1525 = vpack.c.bf16 %v1500, %v1499
      %v1526 = vpack.c.bf16 %v1502, %v1501
      %v1527 = vpack.c.bf16 %v1504, %v1503
      %v1528 = vpack.c.bf16 %v1506, %v1505
      %v1529 = vpack.c.bf16 %v1508, %v1507
      %v1530 = vpack.c.bf16 %v1510, %v1509
      %v1531 = vpack.c.bf16 %v1512, %v1511
      %v1532 = vpack.c.bf16 %v1514, %v1513
      %v1533 = vpack.c.bf16 %v1516, %v1515
      %v1534 = vpack.c.bf16 %v1518, %v1517
      %v1535 = vld [vmem:[%s1] sm:$0xf]
      %v1536 = vld [vmem:[%s1 + $0x4] sm:$0xf]
      %v1537 = vld [vmem:[%s1 + $0x8] sm:$0xf]
      %v1538 = vld [vmem:[%s1 + $0xc] sm:$0xf]
      %v1539 = vld [vmem:[%s1 + $0x10] sm:$0xf]
      %v1540 = vld [vmem:[%s1 + $0x14] sm:$0xf]
      %v1541 = vld [vmem:[%s1 + $0x18] sm:$0xf]
      %v1542 = vld [vmem:[%s1 + $0x1c] sm:$0xf]
      %v1543 = vld [vmem:[%s1 + $0x20] sm:$0xf]
      %v1553 = vunpack.c.l.b16 %v1535
      %v1554 = vunpack.c.l.b16 %v1536
      %v1555 = vunpack.c.l.b16 %v1537
      %v1556 = vunpack.c.l.b16 %v1538
      %v1557 = vunpack.c.l.b16 %v1539
      %v1558 = vunpack.c.l.b16 %v1540
      %v1559 = vunpack.c.l.b16 %v1541
      %v1560 = vunpack.c.l.b16 %v1542
      %v1561 = vunpack.c.l.b16 %v1543
      %v1562 = vpack.c.b16 %v1554, %v1553
      %v1563 = vpack.c.b16 %v1556, %v1555
      %v1564 = vpack.c.b16 %v1558, %v1557
      %v1565 = vpack.c.b16 %v1560, %v1559
      %v1566 = vpack.c.b16 %v1561, %v1561
      %vm1571 = vcmask 588800
      %v1573 = vsel %vm1571, %v1519, 0
      %v1576 = vsel %vm1571, %v1520, 0
      %v1579 = vsel %vm1571, %v1521, 0
      %v1582 = vsel %vm1571, %v1522, 0
      %v1585 = vsel %vm1571, %v1523, 0
      %v1588 = vsel %vm1571, %v1524, 0
      %v1591 = vsel %vm1571, %v1525, 0
      %v1594 = vsel %vm1571, %v1526, 0
      %v1597 = vsel %vm1571, %v1527, 0
      %v1600 = vsel %vm1571, %v1528, 0
      %v1603 = vsel %vm1571, %v1529, 0
      %v1606 = vsel %vm1571, %v1530, 0
      %v1609 = vsel %vm1571, %v1531, 0
      %v1612 = vsel %vm1571, %v1532, 0
      %v1615 = vsel %vm1571, %v1533, 0
      %v1618 = vsel %vm1571, %v1534, 0
      %vm1620 = vcmask 1043456
      %v1622 = vsel %vm1620, %v1566, 0
      %1624 = vmatprep.subr.bf16.mxu0 0
      %1625 = vmatpush1.bf16.msra.mxu0 %v1562
      %1626 = vmatprep.subr.bf16.mxu0 0
      %1627 = vmatpush1.bf16.msra.mxu0 %v1563
      %1628 = vmatprep.subr.bf16.mxu0 0
      %1629 = vmatpush1.bf16.msra.mxu0 %v1564
      %1630 = vmatprep.subr.bf16.mxu0 0
      %1631 = vmatpush1.bf16.msra.mxu0 %v1565
      %1632 = vmatprep.subr.bf16.mxu0 0
      %1633 = vmatpush1.bf16.msra.mxu0 %v1622
      %1634 = vmatprep.subr.bf16.mxu0 0
      %1635 = vmatpush1.bf16.msra.mxu0 0
      %1636 = vmatprep.subr.bf16.mxu0 0
      %1637 = vmatpush1.bf16.msra.mxu0 0
      %1638 = vmatprep.subr.bf16.mxu0 0
      %1639 = vmatpush1.bf16.msra.mxu0 0
      %1640 = vmatprep.subr.bf16.mxu0 0
      %1641 = vmatpush1.bf16.msra.mxu0 0
      %1642 = vmatprep.subr.bf16.mxu0 0
      %1643 = vmatpush1.bf16.msra.mxu0 0
      %1644 = vmatprep.subr.bf16.mxu0 0
      %1645 = vmatpush1.bf16.msra.mxu0 0
      %1646 = vmatprep.subr.bf16.mxu0 0
      %1647 = vmatpush1.bf16.msra.mxu0 0
      %1648 = vmatprep.subr.bf16.mxu0 0
      %1649 = vmatpush1.bf16.msra.mxu0 0
      %1650 = vmatprep.subr.bf16.mxu0 0
      %1651 = vmatpush1.bf16.msra.mxu0 0
      %1652 = vmatprep.subr.bf16.mxu0 0
      %1653 = vmatpush1.bf16.msra.mxu0 0
      %1654 = vmatprep.subr.bf16.mxu0 0
      %1655 = vmatpush1.bf16.msra.mxu0 0
      %1656 = vmatprep.mubr.bf16.mxu0 0
      %1657 = vmatmul.mubr.bf16.gmra.mrb[0].mxu0 %v1573
      %v1658 = vpop.f32.mrb[0].mxu0
      %v1659 = vadd.f32 0.0, %v1658
      %v1660 = vpop.f32.mrb[0].mxu0
      %v1661 = vpop.f32.mrb[0].mxu0
      %v1662 = vadd.f32 0.0, %v1661
      %v1663 = vpop.f32.mrb[0].mxu0
      %1664 = vmatprep.mubr.bf16.mxu0 0
      %1665 = vmatmul.mubr.bf16.gmra.mrb[0].mxu0 %v1576
      %v1666 = vpop.f32.mrb[0].mxu0
      %v1667 = vadd.f32 0.0, %v1666
      %v1668 = vpop.f32.mrb[0].mxu0
      %v1669 = vpop.f32.mrb[0].mxu0
      %v1670 = vadd.f32 0.0, %v1669
      %v1671 = vpop.f32.mrb[0].mxu0
      %1672 = vmatprep.mubr.bf16.mxu0 0
      %1673 = vmatmul.mubr.bf16.gmra.mrb[0].mxu0 %v1579
      %v1674 = vpop.f32.mrb[0].mxu0
      %v1675 = vadd.f32 0.0, %v1674
      %v1676 = vpop.f32.mrb[0].mxu0
      %v1677 = vpop.f32.mrb[0].mxu0
      %v1678 = vadd.f32 0.0, %v1677
      %v1679 = vpop.f32.mrb[0].mxu0
      %1680 = vmatprep.mubr.bf16.mxu0 0
      %1681 = vmatmul.mubr.bf16.gmra.mrb[0].mxu0 %v1582
      %v1682 = vpop.f32.mrb[0].mxu0
      %v1683 = vadd.f32 0.0, %v1682
      %v1684 = vpop.f32.mrb[0].mxu0
      %v1685 = vpop.f32.mrb[0].mxu0
      %v1686 = vadd.f32 0.0, %v1685
      %v1687 = vpop.f32.mrb[0].mxu0
      %1688 = vmatprep.mubr.bf16.mxu0 0
      %1689 = vmatmul.mubr.bf16.gmra.mrb[0].mxu0 %v1585
      %v1690 = vpop.f32.mrb[0].mxu0
      %v1691 = vadd.f32 0.0, %v1690
      %v1692 = vpop.f32.mrb[0].mxu0
      %v1693 = vpop.f32.mrb[0].mxu0
      %v1694 = vadd.f32 0.0, %v1693
      %v1695 = vpop.f32.mrb[0].mxu0
      %1696 = vmatprep.mubr.bf16.mxu0 0
      %1697 = vmatmul.mubr.bf16.gmra.mrb[0].mxu0 %v1588
      %v1698 = vpop.f32.mrb[0].mxu0
      %v1699 = vadd.f32 0.0, %v1698
      %v1700 = vpop.f32.mrb[0].mxu0
      %v1701 = vpop.f32.mrb[0].mxu0
      %v1702 = vadd.f32 0.0, %v1701
      %v1703 = vpop.f32.mrb[0].mxu0
      %1704 = vmatprep.mubr.bf16.mxu0 0
      %1705 = vmatmul.mubr.bf16.gmra.mrb[0].mxu0 %v1591
      %v1706 = vpop.f32.mrb[0].mxu0
      %v1707 = vadd.f32 0.0, %v1706
      %v1708 = vpop.f32.mrb[0].mxu0
      %v1709 = vpop.f32.mrb[0].mxu0
      %v1710 = vadd.f32 0.0, %v1709
      %v1711 = vpop.f32.mrb[0].mxu0
      %1712 = vmatprep.mubr.bf16.mxu0 0
      %1713 = vmatmul.mubr.bf16.gmra.mrb[0].mxu0 %v1594
      %v1714 = vpop.f32.mrb[0].mxu0
      %v1715 = vadd.f32 0.0, %v1714
      %v1716 = vpop.f32.mrb[0].mxu0
      %v1717 = vpop.f32.mrb[0].mxu0
      %v1718 = vadd.f32 0.0, %v1717
      %v1719 = vpop.f32.mrb[0].mxu0
      %1720 = vmatprep.mubr.bf16.mxu0 0
      %1721 = vmatmul.mubr.bf16.gmra.mrb[0].mxu0 %v1597
      %v1722 = vpop.f32.mrb[0].mxu0
      %v1723 = vadd.f32 0.0, %v1722
      %v1724 = vpop.f32.mrb[0].mxu0
      %v1725 = vpop.f32.mrb[0].mxu0
      %v1726 = vadd.f32 0.0, %v1725
      %v1727 = vpop.f32.mrb[0].mxu0
      %1728 = vmatprep.mubr.bf16.mxu0 0
      %1729 = vmatmul.mubr.bf16.gmra.mrb[0].mxu0 %v1600
      %v1730 = vpop.f32.mrb[0].mxu0
      %v1731 = vadd.f32 0.0, %v1730
      %v1732 = vpop.f32.mrb[0].mxu0
      %v1733 = vpop.f32.mrb[0].mxu0
      %v1734 = vadd.f32 0.0, %v1733
      %v1735 = vpop.f32.mrb[0].mxu0
      %1736 = vmatprep.mubr.bf16.mxu0 0
      %1737 = vmatmul.mubr.bf16.gmra.mrb[0].mxu0 %v1603
      %v1738 = vpop.f32.mrb[0].mxu0
      %v1739 = vadd.f32 0.0, %v1738
      %v1740 = vpop.f32.mrb[0].mxu0
      %v1741 = vpop.f32.mrb[0].mxu0
      %v1742 = vadd.f32 0.0, %v1741
      %v1743 = vpop.f32.mrb[0].mxu0
      %1744 = vmatprep.mubr.bf16.mxu0 0
      %1745 = vmatmul.mubr.bf16.gmra.mrb[0].mxu0 %v1606
      %v1746 = vpop.f32.mrb[0].mxu0
      %v1747 = vadd.f32 0.0, %v1746
      %v1748 = vpop.f32.mrb[0].mxu0
      %v1749 = vpop.f32.mrb[0].mxu0
      %v1750 = vadd.f32 0.0, %v1749
      %v1751 = vpop.f32.mrb[0].mxu0
      %1752 = vmatprep.mubr.bf16.mxu0 0
      %1753 = vmatmul.mubr.bf16.gmra.mrb[0].mxu0 %v1609
      %v1754 = vpop.f32.mrb[0].mxu0
      %v1755 = vadd.f32 0.0, %v1754
      %v1756 = vpop.f32.mrb[0].mxu0
      %v1757 = vpop.f32.mrb[0].mxu0
      %v1758 = vadd.f32 0.0, %v1757
      %v1759 = vpop.f32.mrb[0].mxu0
      %1760 = vmatprep.mubr.bf16.mxu0 0
      %1761 = vmatmul.mubr.bf16.gmra.mrb[0].mxu0 %v1612
      %v1762 = vpop.f32.mrb[0].mxu0
      %v1763 = vadd.f32 0.0, %v1762
      %v1764 = vpop.f32.mrb[0].mxu0
      %v1765 = vpop.f32.mrb[0].mxu0
      %v1766 = vadd.f32 0.0, %v1765
      %v1767 = vpop.f32.mrb[0].mxu0
      %1768 = vmatprep.mubr.bf16.mxu0 0
      %1769 = vmatmul.mubr.bf16.gmra.mrb[0].mxu0 %v1615
      %v1770 = vpop.f32.mrb[0].mxu0
      %v1771 = vadd.f32 0.0, %v1770
      %v1772 = vpop.f32.mrb[0].mxu0
      %v1773 = vpop.f32.mrb[0].mxu0
      %v1774 = vadd.f32 0.0, %v1773
      %v1775 = vpop.f32.mrb[0].mxu0
      %1776 = vmatprep.mubr.bf16.mxu0 0
      %1777 = vmatmul.mubr.bf16.gmra.mrb[0].mxu0 %v1618
      %v1778 = vpop.f32.mrb[0].mxu0
      %v1779 = vadd.f32 0.0, %v1778
      %v1780 = vpop.f32.mrb[0].mxu0
      %v1781 = vpop.f32.mrb[0].mxu0
      %v1782 = vadd.f32 0.0, %v1781
      %v1783 = vpop.f32.mrb[0].mxu0
      %1784 = vdwg.mxu0
      %v1785 = vsel %vm1255, %v1659, 0.0
      %v1786 = vsel %vm1255, %v1662, 0.0
      %v1787 = vadd.f32 %v1785, %v1786
      %v1788 = vsel %vm1255, %v1667, 0.0
      %v1789 = vadd.f32 %v1787, %v1788
      %v1790 = vsel %vm1255, %v1670, 0.0
      %v1791 = vadd.f32 %v1789, %v1790
      %v1792 = vsel %vm1255, %v1675, 0.0
      %v1793 = vadd.f32 %v1791, %v1792
      %v1794 = vsel %vm1255, %v1678, 0.0
      %v1795 = vadd.f32 %v1793, %v1794
      %v1796 = vsel %vm1255, %v1683, 0.0
      %v1797 = vadd.f32 %v1795, %v1796
      %v1798 = vsel %vm1255, %v1686, 0.0
      %v1799 = vadd.f32 %v1797, %v1798
      %v1800 = vsel %vm1255, %v1691, 0.0
      %v1801 = vadd.f32 %v1799, %v1800
      %v1802 = vsel %vm1255, %v1694, 0.0
      %v1803 = vadd.f32 %v1801, %v1802
      %v1804 = vsel %vm1255, %v1699, 0.0
      %v1805 = vadd.f32 %v1803, %v1804
      %v1806 = vsel %vm1255, %v1702, 0.0
      %v1807 = vadd.f32 %v1805, %v1806
      %v1808 = vsel %vm1255, %v1707, 0.0
      %v1809 = vadd.f32 %v1807, %v1808
      %v1810 = vsel %vm1255, %v1710, 0.0
      %v1811 = vadd.f32 %v1809, %v1810
      %v1812 = vsel %vm1255, %v1715, 0.0
      %v1813 = vadd.f32 %v1811, %v1812
      %v1814 = vsel %vm1255, %v1718, 0.0
      %v1815 = vadd.f32 %v1813, %v1814
      %v1816 = vsel %vm1255, %v1723, 0.0
      %v1817 = vadd.f32 %v1815, %v1816
      %v1818 = vsel %vm1255, %v1726, 0.0
      %v1819 = vadd.f32 %v1817, %v1818
      %v1820 = vsel %vm1255, %v1731, 0.0
      %v1821 = vadd.f32 %v1819, %v1820
      %v1822 = vsel %vm1255, %v1734, 0.0
      %v1823 = vadd.f32 %v1821, %v1822
      %v1824 = vsel %vm1255, %v1739, 0.0
      %v1825 = vadd.f32 %v1823, %v1824
      %v1826 = vsel %vm1255, %v1742, 0.0
      %v1827 = vadd.f32 %v1825, %v1826
      %v1828 = vsel %vm1255, %v1747, 0.0
      %v1829 = vadd.f32 %v1827, %v1828
      %v1830 = vsel %vm1255, %v1750, 0.0
      %v1831 = vadd.f32 %v1829, %v1830
      %v1832 = vsel %vm1255, %v1755, 0.0
      %v1833 = vadd.f32 %v1831, %v1832
      %v1834 = vsel %vm1255, %v1758, 0.0
      %v1835 = vadd.f32 %v1833, %v1834
      %v1836 = vsel %vm1255, %v1763, 0.0
      %v1837 = vadd.f32 %v1835, %v1836
      %v1838 = vsel %vm1255, %v1766, 0.0
      %v1839 = vadd.f32 %v1837, %v1838
      %v1840 = vsel %vm1255, %v1771, 0.0
      %v1841 = vadd.f32 %v1839, %v1840
      %v1842 = vsel %vm1255, %v1774, 0.0
      %v1843 = vadd.f32 %v1841, %v1842
      %v1844 = vsel %vm1255, %v1779, 0.0
      %v1845 = vadd.f32 %v1843, %v1844
      %v1846 = vsel %vm1255, %v1782, 0.0
      %v1847 = vadd.f32 %v1845, %v1846
      %v1848 = vrot.slane %v1847, 4
      %v1849 = vadd.f32 %v1847, %v1848
      %v1850 = vrot.slane %v1849, 2
      %v1851 = vadd.f32 %v1849, %v1850
      %v1852 = vrot.slane %v1851, 1
      %v1853 = vadd.f32 %v1851, %v1852
      %v1854 = vmul.f32 %v1659, %v1659
      %v1855 = vmul.f32 %v1662, %v1662
      %v1856 = vmul.f32 %v1667, %v1667
      %v1857 = vmul.f32 %v1670, %v1670
      %v1858 = vmul.f32 %v1675, %v1675
      %v1859 = vmul.f32 %v1678, %v1678
      %v1860 = vmul.f32 %v1683, %v1683
      %v1861 = vmul.f32 %v1686, %v1686
      %v1862 = vmul.f32 %v1691, %v1691
      %v1863 = vmul.f32 %v1694, %v1694
      %v1864 = vmul.f32 %v1699, %v1699
      %v1865 = vmul.f32 %v1702, %v1702
      %v1866 = vmul.f32 %v1707, %v1707
      %v1867 = vmul.f32 %v1710, %v1710
      %v1868 = vmul.f32 %v1715, %v1715
      %v1869 = vmul.f32 %v1718, %v1718
      %v1870 = vmul.f32 %v1723, %v1723
      %v1871 = vmul.f32 %v1726, %v1726
      %v1872 = vmul.f32 %v1731, %v1731
      %v1873 = vmul.f32 %v1734, %v1734
      %v1874 = vmul.f32 %v1739, %v1739
      %v1875 = vmul.f32 %v1742, %v1742
      %v1876 = vmul.f32 %v1747, %v1747
      %v1877 = vmul.f32 %v1750, %v1750
      %v1878 = vmul.f32 %v1755, %v1755
      %v1879 = vmul.f32 %v1758, %v1758
      %v1880 = vmul.f32 %v1763, %v1763
      %v1881 = vmul.f32 %v1766, %v1766
      %v1882 = vmul.f32 %v1771, %v1771
      %v1883 = vmul.f32 %v1774, %v1774
      %v1884 = vmul.f32 %v1779, %v1779
      %v1885 = vmul.f32 %v1782, %v1782
      %v1886 = vsel %vm1255, %v1854, 0.0
      %v1887 = vsel %vm1255, %v1855, 0.0
      %v1888 = vadd.f32 %v1886, %v1887
      %v1889 = vsel %vm1255, %v1856, 0.0
      %v1890 = vadd.f32 %v1888, %v1889
      %v1891 = vsel %vm1255, %v1857, 0.0
      %v1892 = vadd.f32 %v1890, %v1891
      %v1893 = vsel %vm1255, %v1858, 0.0
      %v1894 = vadd.f32 %v1892, %v1893
      %v1895 = vsel %vm1255, %v1859, 0.0
      %v1896 = vadd.f32 %v1894, %v1895
      %v1897 = vsel %vm1255, %v1860, 0.0
      %v1898 = vadd.f32 %v1896, %v1897
      %v1899 = vsel %vm1255, %v1861, 0.0
      %v1900 = vadd.f32 %v1898, %v1899
      %v1901 = vsel %vm1255, %v1862, 0.0
      %v1902 = vadd.f32 %v1900, %v1901
      %v1903 = vsel %vm1255, %v1863, 0.0
      %v1904 = vadd.f32 %v1902, %v1903
      %v1905 = vsel %vm1255, %v1864, 0.0
      %v1906 = vadd.f32 %v1904, %v1905
      %v1907 = vsel %vm1255, %v1865, 0.0
      %v1908 = vadd.f32 %v1906, %v1907
      %v1909 = vsel %vm1255, %v1866, 0.0
      %v1910 = vadd.f32 %v1908, %v1909
      %v1911 = vsel %vm1255, %v1867, 0.0
      %v1912 = vadd.f32 %v1910, %v1911
      %v1913 = vsel %vm1255, %v1868, 0.0
      %v1914 = vadd.f32 %v1912, %v1913
      %v1915 = vsel %vm1255, %v1869, 0.0
      %v1916 = vadd.f32 %v1914, %v1915
      %v1917 = vsel %vm1255, %v1870, 0.0
      %v1918 = vadd.f32 %v1916, %v1917
      %v1919 = vsel %vm1255, %v1871, 0.0
      %v1920 = vadd.f32 %v1918, %v1919
      %v1921 = vsel %vm1255, %v1872, 0.0
      %v1922 = vadd.f32 %v1920, %v1921
      %v1923 = vsel %vm1255, %v1873, 0.0
      %v1924 = vadd.f32 %v1922, %v1923
      %v1925 = vsel %vm1255, %v1874, 0.0
      %v1926 = vadd.f32 %v1924, %v1925
      %v1927 = vsel %vm1255, %v1875, 0.0
      %v1928 = vadd.f32 %v1926, %v1927
      %v1929 = vsel %vm1255, %v1876, 0.0
      %v1930 = vadd.f32 %v1928, %v1929
      %v1931 = vsel %vm1255, %v1877, 0.0
      %v1932 = vadd.f32 %v1930, %v1931
      %v1933 = vsel %vm1255, %v1878, 0.0
      %v1934 = vadd.f32 %v1932, %v1933
      %v1935 = vsel %vm1255, %v1879, 0.0
      %v1936 = vadd.f32 %v1934, %v1935
      %v1937 = vsel %vm1255, %v1880, 0.0
      %v1938 = vadd.f32 %v1936, %v1937
      %v1939 = vsel %vm1255, %v1881, 0.0
      %v1940 = vadd.f32 %v1938, %v1939
      %v1941 = vsel %vm1255, %v1882, 0.0
      %v1942 = vadd.f32 %v1940, %v1941
      %v1943 = vsel %vm1255, %v1883, 0.0
      %v1944 = vadd.f32 %v1942, %v1943
      %v1945 = vsel %vm1255, %v1884, 0.0
      %v1946 = vadd.f32 %v1944, %v1945
      %v1947 = vsel %vm1255, %v1885, 0.0
      %v1948 = vadd.f32 %v1946, %v1947
      %v1949 = vrot.slane %v1948, 4
      %v1950 = vadd.f32 %v1948, %v1949
      %v1951 = vrot.slane %v1950, 2
      %v1952 = vadd.f32 %v1950, %v1951
      %v1953 = vrot.slane %v1952, 1
      %v1954 = vadd.f32 %v1952, %v1953
      %vm1955 = vcmask 1040384
      %v1956 = vsel %vm1955, %v1853, %v1954
      %vm1957 = vcmask 58368
      %1958 = vst.msk [vmem:[%s141] sm:$0x3] %vm1957, %v1956
      %p1959 = scmp.lt.s32.totalorder %s13, 1
      %s1960 = scalar_select %p1959, %s13, 1
      %s1961 = smul.addr %s1960, 2
      %s1962 = scalar_lea.vmem %s2, %s1961
      // Predicated region
      $region29: #{upconv_forward.2} parent=27 // pred_check
        %p1963 = pneg %p78
      $region30: #{upconv_forward.2} parent=27 // pred_check_branch
        %1965 = sbr.rel (%p1963) target = $region32
      $region31: #{upconv_forward.2} parent=27 // pred_region
        _
      $region32: #{upconv_forward.2} parent=27 // pred_fallthru
        _
    $region28: #{upconv_forward.2} parent=5 // pred_fallthru
      _
    %p1966 = scmp.le.s32.totalorder 2, %s8
    // Predicated region
    $region33: #{upconv_forward.2} parent=5 // pred_check
      %p1967 = pneg %p1966
    $region34: #{upconv_forward.2} parent=5 // pred_check_branch
      %1969 = sbr.rel (%p1967) target = $region36
    $region35: #{upconv_forward.2} parent=5 // pred_region
      %s1970 = ssub.s32 %s8, 2
      // Predicated region
      $region37: #{upconv_forward.2} parent=35 // pred_check
        %p1971 = pneg %p84
      $region38: #{upconv_forward.2} parent=35 // pred_check_branch
        %1973 = sbr.rel (%p1971) target = $region40
      $region39: #{upconv_forward.2} parent=35 // pred_region
        %p1974 = scmp.lt.s32.totalorder %s14, 1
        %s1975 = scalar_select %p1974, %s14, 1
        %s1976 = smul.addr %s1975, 2
        %s1977 = scalar_lea.vmem %s2, %s1976
      $region40: #{upconv_forward.2} parent=35 // pred_fallthru
        _
    $region36: #{upconv_forward.2} parent=5 // pred_fallthru
      _
  $region6: #{upconv_forward.2} parent=0 // loop_footer
    %s12 = sadd.s32 1, %s8
  $region7: #{upconv_forward.2} parent=0 // loop_footer_branch
    %7 = sbr.rel target = $region3
  $region8: #{upconv_forward.2} parent=0 // loop_exit
    _

</llo_original>
